<compile_context>
chip_gen: v7x
topology: tpu7x:2x2x1
jax: 0.10.0
libtpu: 0.0.40
codegen_flags: <defaults>
</compile_context>

<pallas_src>
import functools

import jax
import jax.numpy as jnp
import numpy as np
from jax import lax
from jax.experimental import pallas as pl
from jax.experimental.pallas import tpu as pltpu


# ----------------------------------------------------------------------------
# Fused kernel: all LSTM layers + attention + tanh(W_c)
# ----------------------------------------------------------------------------
def _vmem_spec():
    return pl.BlockSpec(memory_space=pltpu.MemorySpace.VMEM)


def _make_recurrent_kernel(num_layers, compute_dtype):
    cd = compute_dtype

    def kernel(*refs):
        (emb_ref, h0_ref, c0_ref, enc_ref, lens_ref,
         wa_ref, ba_ref, wc_ctx_ref, wc_dec_ref, bc_ref) = refs[:10]
        lstm_refs = refs[10:10 + 3 * num_layers]
        hidden_ref, h_out_ref, c_out_ref, attw_ref = refs[10 + 3 * num_layers:]

        # ---------------- multi-layer LSTM single step ----------------
        x = emb_ref[...]                                     # (B, E) f32
        for l in range(num_layers):
            wih_ref = lstm_refs[3 * l]                       # (4, d_in, H)
            whh_ref = lstm_refs[3 * l + 1]                   # (4, H,    H)
            b_ref = lstm_refs[3 * l + 2]                     # (4, 1,    H) f32
            h_prev = h0_ref[l]                               # (B, H) f32
            c_prev = c0_ref[l]                               # (B, H) f32
            x_c = x.astype(cd)
            h_c = h_prev.astype(cd)
            # One full-lane (B, H) MXU matmul pair per gate; PyTorch order i,f,g,o.
            gates = [
                jnp.dot(x_c, wih_ref[g], preferred_element_type=jnp.float32)
                + jnp.dot(h_c, whh_ref[g], preferred_element_type=jnp.float32)
                + b_ref[g]
                for g in range(4)
            ]
            i_g = jax.nn.sigmoid(gates[0])
            f_g = jax.nn.sigmoid(gates[1])
            g_g = jnp.tanh(gates[2])
            o_g = jax.nn.sigmoid(gates[3])
            c_new = f_g * c_prev + i_g * g_g                 # f32 cell state
            h_new = o_g * jnp.tanh(c_new)
            h_out_ref[l] = h_new
            c_out_ref[l] = c_new
            x = h_new
            # TODO(synk): training-time inter-layer dropout not applied.
        dec = x                                              # (B, H) f32

        # ---------------- Luong attention (batched MXU matmuls) ----------------
        enc_c = enc_ref[...].astype(cd)                      # (B, S, H)
        # scores[b,s] = dec[b] . (Wa enc[b,s] + ba) = (dec @ Wa) . enc[b,s] + dec.ba
        q = jnp.dot(dec.astype(cd), wa_ref[...],
                    preferred_element_type=jnp.float32)      # (B, H) f32
        q3 = q[:, None, :].astype(cd)                        # (B, 1, H)
        scores = lax.dot_general(                            # 'bqh,bsh->bqs'
            q3, enc_c,
            dimension_numbers=(((2,), (2,)), ((0,), (0,))),
            preferred_element_type=jnp.float32)              # (B, 1, S)
        bias_term = jnp.sum(dec * ba_ref[...], axis=-1, keepdims=True)  # (B, 1)
        scores = scores + bias_term[:, :, None]

        pos = lax.broadcasted_iota(jnp.int32, scores.shape, 2)
        valid = pos < lens_ref[...][:, :, None]              # (B, 1, S)
        # Large-negative finite mask (avoids NaN if a src_len were 0).
        scores = jnp.where(valid, scores, jnp.float32(-1e30))

        m = jnp.max(scores, axis=-1, keepdims=True)
        e = jnp.exp(scores - m)
        denom = jnp.sum(e, axis=-1, keepdims=True)
        w = e * pl.reciprocal(denom, approx=True)            # (B, 1, S) f32
        attw_ref[...] = w[:, 0, :]

        # ctx[b,h] = sum_s w[b,s] * enc[b,s,h]   -> 'bqs,bsh->bqh'
        ctx = lax.dot_general(
            w.astype(cd), enc_c,
            dimension_numbers=(((2,), (1,)), ((0,), (0,))),
            preferred_element_type=jnp.float32)[:, 0, :]     # (B, H) f32

        # tanh(W_c([ctx, dec])) with the concat folded into split matmuls.
        hidden = jnp.tanh(
            jnp.dot(ctx.astype(cd), wc_ctx_ref[...],
                    preferred_element_type=jnp.float32)
            + jnp.dot(dec.astype(cd), wc_dec_ref[...],
                      preferred_element_type=jnp.float32)
            + bc_ref[...])
        hidden_ref[...] = hidden

    return kernel


# ----------------------------------------------------------------------------
# Vocab projection: grid-tiled over V, lane-dense output, parallel on v7x
# ----------------------------------------------------------------------------
def _vocab_proj_kernel(compute_dtype, hidden_ref, ws_ref, bs_ref, out_ref):
    h = hidden_ref[...].astype(compute_dtype)                # (B, H)
    out_ref[...] = (jnp.dot(h, ws_ref[...],
                            preferred_element_type=jnp.float32)
                    + bs_ref[...])


def _pick_vocab_tile(V, H):
    # Lane-dense, MXU-friendly (prefer 256-multiples for v6e/v7x), small enough
    # to double-buffer comfortably inside v7x's 64 MiB VMEM even at H ~ 1-2K.
    if H % 8 != 0:
        return V       # tiling W_s needs an 8-aligned sublane (H) dim
    for t in (1024, 512, 256, 128):
        if V % t == 0:
            return t
    return V


def _vocab_projection(hidden, ws_t, bs, compute_dtype):
    B, H = hidden.shape
    V = ws_t.shape[1]
    tv = _pick_vocab_tile(V, H)
    return pl.pallas_call(
        functools.partial(_vocab_proj_kernel, compute_dtype),
        out_shape=jax.ShapeDtypeStruct((B, V), jnp.float32),
        grid=(V // tv,),
        in_specs=[
            pl.BlockSpec((B, H), lambda j: (0, 0)),    # resident across the grid
            pl.BlockSpec((H, tv), lambda j: (0, j)),   # W_s tile (double-buffered)
            pl.BlockSpec((1, tv), lambda j: (0, j)),
        ],
        out_specs=pl.BlockSpec((B, tv), lambda j: (0, j)),
        compiler_params=pltpu.CompilerParams(
            dimension_semantics=("parallel",)),        # v7x: split vocab over 2 TCs
    )(hidden, ws_t, bs)


# ----------------------------------------------------------------------------
# Parameters (deterministic, mirrors PyTorch init_parameters / layouts)
# ----------------------------------------------------------------------------
def _xavier_normal(key, shape):
    fan_out, fan_in = shape              # PyTorch weight layout (out, in)
    std = (2.0 / (fan_in + fan_out)) ** 0.5
    return std * jax.random.normal(key, shape, dtype=jnp.float32)


def init_params(key, vocab_size, emb_dim, hidden_size, num_layers):
    H = hidden_size
    keys = iter(jax.random.split(key, 1 + 2 * num_layers + 3))
    p = {}
    # nn.Embedding default init N(0,1) (weights are copied into the torch module).
    p["embedding"] = jax.random.normal(next(keys), (vocab_size, emb_dim),
                                       dtype=jnp.float32)
    p["lstm"] = []
    for layer in range(num_layers):
        d_in = emb_dim if layer == 0 else H
        wih = _xavier_normal(next(keys), (4 * H, d_in))      # torch (4H, d_in)
        whh = _xavier_normal(next(keys), (4 * H, H))
        p["lstm"].append({
            # per-gate layouts: (4, d_in, H) so each gate matmul is lane-dense
            "wih": jnp.transpose(wih.reshape(4, H, d_in), (0, 2, 1)),
            "whh": jnp.transpose(whh.reshape(4, H, H), (0, 2, 1)),
            "b": jnp.zeros((4, 1, H), jnp.float32),          # b_ih + b_hh (zero init)
        })
    p["wa"] = _xavier_normal(next(keys), (H, H))             # torch (out, in)
    p["ba"] = jnp.zeros((1, H), jnp.float32)
    wc = _xavier_normal(next(keys), (H, 2 * H))
    p["wc_ctx"] = wc[:, :H].T                                # (H, H)
    p["wc_dec"] = wc[:, H:].T                                # (H, H)
    p["bc"] = jnp.zeros((1, H), jnp.float32)
    ws = _xavier_normal(next(keys), (vocab_size, H))
    p["ws_t"] = ws.T                                         # (H, V)
    p["bs"] = jnp.zeros((1, vocab_size), jnp.float32)
    return p


def cast_matmul_weights(params, dtype):
    """Store matmul-path weights in `dtype` (e.g. bf16).  Biases, embedding and
    recurrent state stay f32; matmuls accumulate in f32."""
    p = dict(params)
    p["lstm"] = [dict(lp, wih=lp["wih"].astype(dtype), whh=lp["whh"].astype(dtype))
                 for lp in params["lstm"]]
    for k in ("wa", "wc_ctx", "wc_dec", "ws_t"):
        p[k] = params[k].astype(dtype)
    return p


# ----------------------------------------------------------------------------
# Forward pass (2 Pallas calls total: fused recurrent/attention + tiled vocab)
# ----------------------------------------------------------------------------
def decoder_forward(params, input_seq, decoder_hidden, encoder_outputs_bf, src_lens):
    """One decode step.  `encoder_outputs_bf` is batch-first (B, S, H) — the
    time-major->batch-first transpose is hoisted out of the per-token loop."""
    h0, c0 = decoder_hidden                                  # (L, B, H) each
    num_layers, B, H = h0.shape
    _, S, _ = encoder_outputs_bf.shape
    cd = params["wa"].dtype                                  # matmul compute dtype

    # Embedding gather (glue).
    # TODO(synk): for large vocab tables, gather in-kernel via scalar-prefetch +
    #             pl.Element row BlockSpec to overlap the DMA with layer-0 compute.
    emb = jnp.take(params["embedding"], input_seq, axis=0)   # (B, E) f32
    lens2d = src_lens.astype(jnp.int32).reshape(B, 1)

    lstm_flat = []
    for lp in params["lstm"]:
        lstm_flat += [lp["wih"], lp["whh"], lp["b"]]

    n_in = 10 + len(lstm_flat)
    hidden, h_out, c_out, attw = pl.pallas_call(
        _make_recurrent_kernel(num_layers, cd),
        out_shape=(
            jax.ShapeDtypeStruct((B, H), jnp.float32),             # tanh(W_c [ctx,dec])
            jax.ShapeDtypeStruct((num_layers, B, H), jnp.float32),  # h_n
            jax.ShapeDtypeStruct((num_layers, B, H), jnp.float32),  # c_n
            jax.ShapeDtypeStruct((B, S), jnp.float32),              # attention weights
        ),
        in_specs=[_vmem_spec() for _ in range(n_in)],
        out_specs=tuple(_vmem_spec() for _ in range(4)),
    )(emb, h0, c0, encoder_outputs_bf, lens2d,
      params["wa"], params["ba"], params["wc_ctx"], params["wc_dec"], params["bc"],
      *lstm_flat)

    logits = _vocab_projection(hidden, params["ws_t"], params["bs"], cd)
    return logits, (h_out, c_out), attw


# ----------------------------------------------------------------------------
# Pure-JAX reference for verification
# ----------------------------------------------------------------------------
def reference_forward(params, input_seq, decoder_hidden, enc_bf, src_lens):
    h0, c0 = decoder_hidden
    B, S, H = enc_bf.shape
    x = params["embedding"][input_seq]
    hs, cs = [], []
    for l, lp in enumerate(params["lstm"]):
        g = [x @ lp["wih"][k] + h0[l] @ lp["whh"][k] + lp["b"][k] for k in range(4)]
        i = jax.nn.sigmoid(g[0])
        f = jax.nn.sigmoid(g[1])
        gg = jnp.tanh(g[2])
        o = jax.nn.sigmoid(g[3])
        c = f * c0[l] + i * gg
        h = o * jnp.tanh(c)
        hs.append(h)
        cs.append(c)
        x = h
    dec = x
    proj = jnp.einsum("bsi,oi->bso", enc_bf, params["wa"]) + params["ba"][0]
    scores = jnp.einsum("bo,bso->bs", dec, proj)
    mask = jnp.arange(S)[None, :] < src_lens[:, None]
    scores = jnp.where(mask, scores, -jnp.inf)
    attw = jax.nn.softmax(scores, axis=-1)
    ctx = jnp.einsum("bs,bsh->bh", attw, enc_bf)
    hidden = jnp.tanh(ctx @ params["wc_ctx"] + dec @ params["wc_dec"] + params["bc"])
    logits = hidden @ params["ws_t"] + params["bs"]
    return logits, (jnp.stack(hs), jnp.stack(cs)), attw


# ----------------------------------------------------------------------------
if __name__ == "__main__":
    # Small but hardware-friendly shapes: B multiple of 8 (sublane), H / 4H / V
    # multiples of 128 lanes (V also a 256-multiple for the v6e/v7x MXU).
    B, S, H, E, V, L = 8, 16, 128, 64, 256, 2

    key = jax.random.PRNGKey(0)
    k_params, k_bias, k_tok, k_h, k_c, k_enc = jax.random.split(key, 6)

    params = init_params(k_params, V, E, H, L)
    # PyTorch init zeroes the biases; perturb them so the bias paths are exercised.
    kb = jax.random.split(k_bias, L + 3)
    for l in range(L):
        params["lstm"][l]["b"] = 0.1 * jax.random.normal(kb[l], (4, 1, H),
                                                         dtype=jnp.float32)
    params["ba"] = 0.1 * jax.random.normal(kb[L], (1, H), dtype=jnp.float32)
    params["bc"] = 0.1 * jax.random.normal(kb[L + 1], (1, H), dtype=jnp.float32)
    params["bs"] = 0.1 * jax.random.normal(kb[L + 2], (1, V), dtype=jnp.float32)

    input_seq = jax.random.randint(k_tok, (B,), 0, V, dtype=jnp.int32)
    h0 = 0.1 * jax.random.normal(k_h, (L, B, H), dtype=jnp.float32)
    c0 = 0.1 * jax.random.normal(k_c, (L, B, H), dtype=jnp.float32)
    encoder_outputs = jax.random.normal(k_enc, (S, B, H), dtype=jnp.float32)  # time-major
    src_lens = jnp.array([16, 5, 3, 9, 1, 12, 16, 7], dtype=jnp.int32)

    # Hoisted out of the per-token decode loop (done once per sequence).
    enc_bf = jnp.transpose(encoder_outputs, (1, 0, 2))        # (B, S, H)

    fwd = jax.jit(decoder_forward)

    # --- f32 matmul path: strict check against the pure-JAX reference --------
    logits, (h_n, c_n), attw = fwd(params, input_seq, (h0, c0), enc_bf, src_lens)
    jax.block_until_ready((logits, h_n, c_n, attw))

    ref_logits, (ref_h, ref_c), ref_attw = reference_forward(
        params, input_seq, (h0, c0), enc_bf, src_lens)

    np.testing.assert_allclose(np.asarray(logits), np.asarray(ref_logits),
                               rtol=2e-3, atol=2e-3)
    np.testing.assert_allclose(np.asarray(attw), np.asarray(ref_attw),
                               rtol=2e-3, atol=2e-3)
    np.testing.assert_allclose(np.asarray(h_n), np.asarray(ref_h),
                               rtol=2e-3, atol=2e-3)
    np.testing.assert_allclose(np.asarray(c_n), np.asarray(ref_c),
                               rtol=2e-3, atol=2e-3)

    # --- bf16 weight path (production mode): looser sanity check -------------
    params_bf16 = cast_matmul_weights(params, jnp.bfloat16)
    logits16, _, attw16 = fwd(params_bf16, input_seq, (h0, c0), enc_bf, src_lens)
    jax.block_until_ready((logits16, attw16))
    np.testing.assert_allclose(np.asarray(logits16), np.asarray(ref_logits),
                               rtol=5e-2, atol=5e-2)
    np.testing.assert_allclose(np.asarray(attw16), np.asarray(ref_attw),
                               rtol=5e-2, atol=5e-2)

    print("KERNEL_OK")
</pallas_src>

<mosaic_0001>
module attributes {stable_mosaic.version = 11 : i64} {
  func.func @_vocab_proj_kernel(%arg0: i32, %arg1: memref<8x128xf32, #tpu.memory_space<vmem>>, %arg2: memref<128x256xf32, #tpu.memory_space<vmem>>, %arg3: memref<1x256xf32, #tpu.memory_space<vmem>>, %arg4: memref<8x256xf32, #tpu.memory_space<vmem>>) attributes {dimension_semantics = [#tpu.dimension_semantics<parallel>], iteration_bounds = array<i64: 1>, scalar_prefetch = 0 : i64, scratch_operands = 0 : i64, tpu.core_type = #tpu.core_type<tc>, window_params = [{pipeline_mode = #tpu.pipeline_mode<synchronous>, transform_indices = @transform_0, window_bounds = array<i64: 8, 128>}, {transform_indices = @transform_1, window_bounds = array<i64: 128, 256>}, {transform_indices = @transform_2, window_bounds = array<i64: 1, 256>}, {transform_indices = @transform_3, window_bounds = array<i64: 8, 256>}]} {
    %c0 = arith.constant 0 : index
    %c0_0 = arith.constant 0 : index
    %0 = vector.load %arg1[%c0, %c0_0] : memref<8x128xf32, #tpu.memory_space<vmem>>, vector<8x128xf32>
    %c0_1 = arith.constant 0 : index
    %c0_2 = arith.constant 0 : index
    %1 = vector.load %arg2[%c0_1, %c0_2] : memref<128x256xf32, #tpu.memory_space<vmem>>, vector<128x256xf32>
    %cst = arith.constant dense<0.000000e+00> : vector<8x256xf32>
    %2 = tpu.matmul %0, %1, %cst {dimension_numbers = #tpu.dot_dimension_numbers<[1], [0], [0], [1], [0, 0, 1, 1], [], []>} : vector<8x128xf32>, vector<128x256xf32>, vector<8x256xf32> -> vector<8x256xf32>
    %c0_3 = arith.constant 0 : index
    %c0_4 = arith.constant 0 : index
    %3 = vector.load %arg3[%c0_3, %c0_4] : memref<1x256xf32, #tpu.memory_space<vmem>>, vector<1x256xf32>
    %4 = vector.broadcast %3 : vector<1x256xf32> to vector<8x256xf32>
    %5 = arith.addf %2, %4 : vector<8x256xf32>
    %c0_5 = arith.constant 0 : index
    %c0_6 = arith.constant 0 : index
    %6 = vector.load %arg4[%c0_5, %c0_6] : memref<8x256xf32, #tpu.memory_space<vmem>>, vector<8x256xf32>
    tpu.vector_store %arg4[%c0_5, %c0_6], %5 {strides = array<i32>} : memref<8x256xf32, #tpu.memory_space<vmem>>, vector<8x256xf32>,
    return
  }
  func.func @transform_0(%arg0: i32) -> (i32, i32) {
    %c0_i32 = arith.constant 0 : i32
    %c0_i32_0 = arith.constant 0 : i32
    %c0_i32_1 = arith.constant 0 : i32
    return %c0_i32, %c0_i32_0 : i32, i32
  }
  func.func @transform_1(%arg0: i32) -> (i32, i32) {
    %c0_i32 = arith.constant 0 : i32
    %c0_i32_0 = arith.constant 0 : i32
    return %c0_i32, %arg0 : i32, i32
  }
  func.func @transform_2(%arg0: i32) -> (i32, i32) {
    %c0_i32 = arith.constant 0 : i32
    %c0_i32_0 = arith.constant 0 : i32
    return %c0_i32, %arg0 : i32, i32
  }
  func.func @transform_3(%arg0: i32) -> (i32, i32) {
    %c0_i32 = arith.constant 0 : i32
    %c0_i32_0 = arith.constant 0 : i32
    return %c0_i32, %arg0 : i32, i32
  }
}

module attributes {stable_mosaic.version = 11 : i64} {
  func.func @kernel(%arg0: memref<8x64xf32, #tpu.memory_space<vmem>>, %arg1: memref<2x8x128xf32, #tpu.memory_space<vmem>>, %arg2: memref<2x8x128xf32, #tpu.memory_space<vmem>>, %arg3: memref<8x16x128xf32, #tpu.memory_space<vmem>>, %arg4: memref<8x1xi32, #tpu.memory_space<vmem>>, %arg5: memref<128x128xf32, #tpu.memory_space<vmem>>, %arg6: memref<1x128xf32, #tpu.memory_space<vmem>>, %arg7: memref<128x128xf32, #tpu.memory_space<vmem>>, %arg8: memref<128x128xf32, #tpu.memory_space<vmem>>, %arg9: memref<1x128xf32, #tpu.memory_space<vmem>>, %arg10: memref<4x64x128xf32, #tpu.memory_space<vmem>>, %arg11: memref<4x128x128xf32, #tpu.memory_space<vmem>>, %arg12: memref<4x1x128xf32, #tpu.memory_space<vmem>>, %arg13: memref<4x128x128xf32, #tpu.memory_space<vmem>>, %arg14: memref<4x128x128xf32, #tpu.memory_space<vmem>>, %arg15: memref<4x1x128xf32, #tpu.memory_space<vmem>>, %arg16: memref<8x128xf32, #tpu.memory_space<vmem>>, %arg17: memref<2x8x128xf32, #tpu.memory_space<vmem>>, %arg18: memref<2x8x128xf32, #tpu.memory_space<vmem>>, %arg19: memref<8x16xf32, #tpu.memory_space<vmem>>) attributes {dimension_semantics = [], scalar_prefetch = 0 : i64, scratch_operands = 0 : i64, tpu.core_type = #tpu.core_type<tc>} {
    %c0 = arith.constant 0 : index
    %c0_0 = arith.constant 0 : index
    %0 = vector.load %arg0[%c0, %c0_0] : memref<8x64xf32, #tpu.memory_space<vmem>>, vector<8x64xf32>
    %c0_1 = arith.constant 0 : index
    %c0_2 = arith.constant 0 : index
    %c0_3 = arith.constant 0 : index
    %1 = vector.load %arg1[%c0_1, %c0_2, %c0_3] : memref<2x8x128xf32, #tpu.memory_space<vmem>>, vector<1x8x128xf32>
    %2 = vector.shape_cast %1 : vector<1x8x128xf32> to vector<8x128xf32>
    %c0_4 = arith.constant 0 : index
    %c0_5 = arith.constant 0 : index
    %c0_6 = arith.constant 0 : index
    %3 = vector.load %arg2[%c0_4, %c0_5, %c0_6] : memref<2x8x128xf32, #tpu.memory_space<vmem>>, vector<1x8x128xf32>
    %4 = vector.shape_cast %3 : vector<1x8x128xf32> to vector<8x128xf32>
    %c0_7 = arith.constant 0 : index
    %c0_8 = arith.constant 0 : index
    %c0_9 = arith.constant 0 : index
    %5 = vector.load %arg10[%c0_7, %c0_8, %c0_9] : memref<4x64x128xf32, #tpu.memory_space<vmem>>, vector<1x64x128xf32>
    %6 = vector.shape_cast %5 : vector<1x64x128xf32> to vector<64x128xf32>
    %cst = arith.constant dense<0.000000e+00> : vector<8x128xf32>
    %7 = tpu.matmul %0, %6, %cst {dimension_numbers = #tpu.dot_dimension_numbers<[1], [0], [0], [1], [0, 0, 1, 1], [], []>} : vector<8x64xf32>, vector<64x128xf32>, vector<8x128xf32> -> vector<8x128xf32>
    %c0_10 = arith.constant 0 : index
    %c0_11 = arith.constant 0 : index
    %c0_12 = arith.constant 0 : index
    %8 = vector.load %arg11[%c0_10, %c0_11, %c0_12] : memref<4x128x128xf32, #tpu.memory_space<vmem>>, vector<1x128x128xf32>
    %9 = vector.shape_cast %8 : vector<1x128x128xf32> to vector<128x128xf32>
    %cst_13 = arith.constant dense<0.000000e+00> : vector<8x128xf32>
    %10 = tpu.matmul %2, %9, %cst_13 {dimension_numbers = #tpu.dot_dimension_numbers<[1], [0], [0], [1], [0, 0, 1, 1], [], []>} : vector<8x128xf32>, vector<128x128xf32>, vector<8x128xf32> -> vector<8x128xf32>
    %11 = arith.addf %7, %10 : vector<8x128xf32>
    %c0_14 = arith.constant 0 : index
    %c0_15 = arith.constant 0 : index
    %c0_16 = arith.constant 0 : index
    %12 = vector.load %arg12[%c0_14, %c0_15, %c0_16] : memref<4x1x128xf32, #tpu.memory_space<vmem>>, vector<1x1x128xf32>
    %13 = vector.shape_cast %12 : vector<1x1x128xf32> to vector<1x128xf32>
    %14 = vector.broadcast %13 : vector<1x128xf32> to vector<8x128xf32>
    %15 = arith.addf %11, %14 : vector<8x128xf32>
    %c1 = arith.constant 1 : index
    %c0_17 = arith.constant 0 : index
    %c0_18 = arith.constant 0 : index
    %16 = vector.load %arg10[%c1, %c0_17, %c0_18] : memref<4x64x128xf32, #tpu.memory_space<vmem>>, vector<1x64x128xf32>
    %17 = vector.shape_cast %16 : vector<1x64x128xf32> to vector<64x128xf32>
    %cst_19 = arith.constant dense<0.000000e+00> : vector<8x128xf32>
    %18 = tpu.matmul %0, %17, %cst_19 {dimension_numbers = #tpu.dot_dimension_numbers<[1], [0], [0], [1], [0, 0, 1, 1], [], []>} : vector<8x64xf32>, vector<64x128xf32>, vector<8x128xf32> -> vector<8x128xf32>
    %c1_20 = arith.constant 1 : index
    %c0_21 = arith.constant 0 : index
    %c0_22 = arith.constant 0 : index
    %19 = vector.load %arg11[%c1_20, %c0_21, %c0_22] : memref<4x128x128xf32, #tpu.memory_space<vmem>>, vector<1x128x128xf32>
    %20 = vector.shape_cast %19 : vector<1x128x128xf32> to vector<128x128xf32>
    %cst_23 = arith.constant dense<0.000000e+00> : vector<8x128xf32>
    %21 = tpu.matmul %2, %20, %cst_23 {dimension_numbers = #tpu.dot_dimension_numbers<[1], [0], [0], [1], [0, 0, 1, 1], [], []>} : vector<8x128xf32>, vector<128x128xf32>, vector<8x128xf32> -> vector<8x128xf32>
    %22 = arith.addf %18, %21 : vector<8x128xf32>
    %c1_24 = arith.constant 1 : index
    %c0_25 = arith.constant 0 : index
    %c0_26 = arith.constant 0 : index
    %23 = vector.load %arg12[%c1_24, %c0_25, %c0_26] : memref<4x1x128xf32, #tpu.memory_space<vmem>>, vector<1x1x128xf32>
    %24 = vector.shape_cast %23 : vector<1x1x128xf32> to vector<1x128xf32>
    %25 = vector.broadcast %24 : vector<1x128xf32> to vector<8x128xf32>
    %26 = arith.addf %22, %25 : vector<8x128xf32>
    %c2 = arith.constant 2 : index
    %c0_27 = arith.constant 0 : index
    %c0_28 = arith.constant 0 : index
    %27 = vector.load %arg10[%c2, %c0_27, %c0_28] : memref<4x64x128xf32, #tpu.memory_space<vmem>>, vector<1x64x128xf32>
    %28 = vector.shape_cast %27 : vector<1x64x128xf32> to vector<64x128xf32>
    %cst_29 = arith.constant dense<0.000000e+00> : vector<8x128xf32>
    %29 = tpu.matmul %0, %28, %cst_29 {dimension_numbers = #tpu.dot_dimension_numbers<[1], [0], [0], [1], [0, 0, 1, 1], [], []>} : vector<8x64xf32>, vector<64x128xf32>, vector<8x128xf32> -> vector<8x128xf32>
    %c2_30 = arith.constant 2 : index
    %c0_31 = arith.constant 0 : index
    %c0_32 = arith.constant 0 : index
    %30 = vector.load %arg11[%c2_30, %c0_31, %c0_32] : memref<4x128x128xf32, #tpu.memory_space<vmem>>, vector<1x128x128xf32>
    %31 = vector.shape_cast %30 : vector<1x128x128xf32> to vector<128x128xf32>
    %cst_33 = arith.constant dense<0.000000e+00> : vector<8x128xf32>
    %32 = tpu.matmul %2, %31, %cst_33 {dimension_numbers = #tpu.dot_dimension_numbers<[1], [0], [0], [1], [0, 0, 1, 1], [], []>} : vector<8x128xf32>, vector<128x128xf32>, vector<8x128xf32> -> vector<8x128xf32>
    %33 = arith.addf %29, %32 : vector<8x128xf32>
    %c2_34 = arith.constant 2 : index
    %c0_35 = arith.constant 0 : index
    %c0_36 = arith.constant 0 : index
    %34 = vector.load %arg12[%c2_34, %c0_35, %c0_36] : memref<4x1x128xf32, #tpu.memory_space<vmem>>, vector<1x1x128xf32>
    %35 = vector.shape_cast %34 : vector<1x1x128xf32> to vector<1x128xf32>
    %36 = vector.broadcast %35 : vector<1x128xf32> to vector<8x128xf32>
    %37 = arith.addf %33, %36 : vector<8x128xf32>
    %c3 = arith.constant 3 : index
    %c0_37 = arith.constant 0 : index
    %c0_38 = arith.constant 0 : index
    %38 = vector.load %arg10[%c3, %c0_37, %c0_38] : memref<4x64x128xf32, #tpu.memory_space<vmem>>, vector<1x64x128xf32>
    %39 = vector.shape_cast %38 : vector<1x64x128xf32> to vector<64x128xf32>
    %cst_39 = arith.constant dense<0.000000e+00> : vector<8x128xf32>
    %40 = tpu.matmul %0, %39, %cst_39 {dimension_numbers = #tpu.dot_dimension_numbers<[1], [0], [0], [1], [0, 0, 1, 1], [], []>} : vector<8x64xf32>, vector<64x128xf32>, vector<8x128xf32> -> vector<8x128xf32>
    %c3_40 = arith.constant 3 : index
    %c0_41 = arith.constant 0 : index
    %c0_42 = arith.constant 0 : index
    %41 = vector.load %arg11[%c3_40, %c0_41, %c0_42] : memref<4x128x128xf32, #tpu.memory_space<vmem>>, vector<1x128x128xf32>
    %42 = vector.shape_cast %41 : vector<1x128x128xf32> to vector<128x128xf32>
    %cst_43 = arith.constant dense<0.000000e+00> : vector<8x128xf32>
    %43 = tpu.matmul %2, %42, %cst_43 {dimension_numbers = #tpu.dot_dimension_numbers<[1], [0], [0], [1], [0, 0, 1, 1], [], []>} : vector<8x128xf32>, vector<128x128xf32>, vector<8x128xf32> -> vector<8x128xf32>
    %44 = arith.addf %40, %43 : vector<8x128xf32>
    %c3_44 = arith.constant 3 : index
    %c0_45 = arith.constant 0 : index
    %c0_46 = arith.constant 0 : index
    %45 = vector.load %arg12[%c3_44, %c0_45, %c0_46] : memref<4x1x128xf32, #tpu.memory_space<vmem>>, vector<1x1x128xf32>
    %46 = vector.shape_cast %45 : vector<1x1x128xf32> to vector<1x128xf32>
    %47 = vector.broadcast %46 : vector<1x128xf32> to vector<8x128xf32>
    %48 = arith.addf %44, %47 : vector<8x128xf32>
    %49 = arith.negf %15 : vector<8x128xf32>
    %50 = math.exp %49 : vector<8x128xf32>
    %cst_47 = arith.constant 1.000000e+00 : f32
    %51 = vector.broadcast %cst_47 : f32 to vector<8x128xf32>
    %52 = arith.addf %51, %50 : vector<8x128xf32>
    %53 = arith.divf %51, %52 : vector<8x128xf32>
    %54 = arith.negf %26 : vector<8x128xf32>
    %55 = math.exp %54 : vector<8x128xf32>
    %cst_48 = arith.constant 1.000000e+00 : f32
    %56 = vector.broadcast %cst_48 : f32 to vector<8x128xf32>
    %57 = arith.addf %56, %55 : vector<8x128xf32>
    %58 = arith.divf %56, %57 : vector<8x128xf32>
    %59 = math.tanh %37 : vector<8x128xf32>
    %60 = arith.negf %48 : vector<8x128xf32>
    %61 = math.exp %60 : vector<8x128xf32>
    %cst_49 = arith.constant 1.000000e+00 : f32
    %62 = vector.broadcast %cst_49 : f32 to vector<8x128xf32>
    %63 = arith.addf %62, %61 : vector<8x128xf32>
    %64 = arith.divf %62, %63 : vector<8x128xf32>
    %65 = arith.mulf %58, %4 : vector<8x128xf32>
    %66 = arith.mulf %53, %59 : vector<8x128xf32>
    %67 = arith.addf %65, %66 : vector<8x128xf32>
    %68 = math.tanh %67 : vector<8x128xf32>
    %69 = arith.mulf %64, %68 : vector<8x128xf32>
    %c0_50 = arith.constant 0 : index
    %c0_51 = arith.constant 0 : index
    %c0_52 = arith.constant 0 : index
    %70 = vector.load %arg17[%c0_50, %c0_51, %c0_52] : memref<2x8x128xf32, #tpu.memory_space<vmem>>, vector<1x8x128xf32>
    %71 = vector.shape_cast %70 : vector<1x8x128xf32> to vector<8x128xf32>
    %72 = vector.shape_cast %69 : vector<8x128xf32> to vector<1x8x128xf32>
    tpu.vector_store %arg17[%c0_50, %c0_51, %c0_52], %72 {strides = array<i32>} : memref<2x8x128xf32, #tpu.memory_space<vmem>>, vector<1x8x128xf32>,
    %c0_53 = arith.constant 0 : index
    %c0_54 = arith.constant 0 : index
    %c0_55 = arith.constant 0 : index
    %73 = vector.load %arg18[%c0_53, %c0_54, %c0_55] : memref<2x8x128xf32, #tpu.memory_space<vmem>>, vector<1x8x128xf32>
    %74 = vector.shape_cast %73 : vector<1x8x128xf32> to vector<8x128xf32>
    %75 = vector.shape_cast %67 : vector<8x128xf32> to vector<1x8x128xf32>
    tpu.vector_store %arg18[%c0_53, %c0_54, %c0_55], %75 {strides = array<i32>} : memref<2x8x128xf32, #tpu.memory_space<vmem>>, vector<1x8x128xf32>,
    %c1_56 = arith.constant 1 : index
    %c0_57 = arith.constant 0 : index
    %c0_58 = arith.constant 0 : index
    %76 = vector.load %arg1[%c1_56, %c0_57, %c0_58] : memref<2x8x128xf32, #tpu.memory_space<vmem>>, vector<1x8x128xf32>
    %77 = vector.shape_cast %76 : vector<1x8x128xf32> to vector<8x128xf32>
    %c1_59 = arith.constant 1 : index
    %c0_60 = arith.constant 0 : index
    %c0_61 = arith.constant 0 : index
    %78 = vector.load %arg2[%c1_59, %c0_60, %c0_61] : memref<2x8x128xf32, #tpu.memory_space<vmem>>, vector<1x8x128xf32>
    %79 = vector.shape_cast %78 : vector<1x8x128xf32> to vector<8x128xf32>
    %c0_62 = arith.constant 0 : index
    %c0_63 = arith.constant 0 : index
    %c0_64 = arith.constant 0 : index
    %80 = vector.load %arg13[%c0_62, %c0_63, %c0_64] : memref<4x128x128xf32, #tpu.memory_space<vmem>>, vector<1x128x128xf32>
    %81 = vector.shape_cast %80 : vector<1x128x128xf32> to vector<128x128xf32>
    %cst_65 = arith.constant dense<0.000000e+00> : vector<8x128xf32>
    %82 = tpu.matmul %69, %81, %cst_65 {dimension_numbers = #tpu.dot_dimension_numbers<[1], [0], [0], [1], [0, 0, 1, 1], [], []>} : vector<8x128xf32>, vector<128x128xf32>, vector<8x128xf32> -> vector<8x128xf32>
    %c0_66 = arith.constant 0 : index
    %c0_67 = arith.constant 0 : index
    %c0_68 = arith.constant 0 : index
    %83 = vector.load %arg14[%c0_66, %c0_67, %c0_68] : memref<4x128x128xf32, #tpu.memory_space<vmem>>, vector<1x128x128xf32>
    %84 = vector.shape_cast %83 : vector<1x128x128xf32> to vector<128x128xf32>
    %cst_69 = arith.constant dense<0.000000e+00> : vector<8x128xf32>
    %85 = tpu.matmul %77, %84, %cst_69 {dimension_numbers = #tpu.dot_dimension_numbers<[1], [0], [0], [1], [0, 0, 1, 1], [], []>} : vector<8x128xf32>, vector<128x128xf32>, vector<8x128xf32> -> vector<8x128xf32>
    %86 = arith.addf %82, %85 : vector<8x128xf32>
    %c0_70 = arith.constant 0 : index
    %c0_71 = arith.constant 0 : index
    %c0_72 = arith.constant 0 : index
    %87 = vector.load %arg15[%c0_70, %c0_71, %c0_72] : memref<4x1x128xf32, #tpu.memory_space<vmem>>, vector<1x1x128xf32>
    %88 = vector.shape_cast %87 : vector<1x1x128xf32> to vector<1x128xf32>
    %89 = vector.broadcast %88 : vector<1x128xf32> to vector<8x128xf32>
    %90 = arith.addf %86, %89 : vector<8x128xf32>
    %c1_73 = arith.constant 1 : index
    %c0_74 = arith.constant 0 : index
    %c0_75 = arith.constant 0 : index
    %91 = vector.load %arg13[%c1_73, %c0_74, %c0_75] : memref<4x128x128xf32, #tpu.memory_space<vmem>>, vector<1x128x128xf32>
    %92 = vector.shape_cast %91 : vector<1x128x128xf32> to vector<128x128xf32>
    %cst_76 = arith.constant dense<0.000000e+00> : vector<8x128xf32>
    %93 = tpu.matmul %69, %92, %cst_76 {dimension_numbers = #tpu.dot_dimension_numbers<[1], [0], [0], [1], [0, 0, 1, 1], [], []>} : vector<8x128xf32>, vector<128x128xf32>, vector<8x128xf32> -> vector<8x128xf32>
    %c1_77 = arith.constant 1 : index
    %c0_78 = arith.constant 0 : index
    %c0_79 = arith.constant 0 : index
    %94 = vector.load %arg14[%c1_77, %c0_78, %c0_79] : memref<4x128x128xf32, #tpu.memory_space<vmem>>, vector<1x128x128xf32>
    %95 = vector.shape_cast %94 : vector<1x128x128xf32> to vector<128x128xf32>
    %cst_80 = arith.constant dense<0.000000e+00> : vector<8x128xf32>
    %96 = tpu.matmul %77, %95, %cst_80 {dimension_numbers = #tpu.dot_dimension_numbers<[1], [0], [0], [1], [0, 0, 1, 1], [], []>} : vector<8x128xf32>, vector<128x128xf32>, vector<8x128xf32> -> vector<8x128xf32>
    %97 = arith.addf %93, %96 : vector<8x128xf32>
    %c1_81 = arith.constant 1 : index
    %c0_82 = arith.constant 0 : index
    %c0_83 = arith.constant 0 : index
    %98 = vector.load %arg15[%c1_81, %c0_82, %c0_83] : memref<4x1x128xf32, #tpu.memory_space<vmem>>, vector<1x1x128xf32>
    %99 = vector.shape_cast %98 : vector<1x1x128xf32> to vector<1x128xf32>
    %100 = vector.broadcast %99 : vector<1x128xf32> to vector<8x128xf32>
    %101 = arith.addf %97, %100 : vector<8x128xf32>
    %c2_84 = arith.constant 2 : index
    %c0_85 = arith.constant 0 : index
    %c0_86 = arith.constant 0 : index
    %102 = vector.load %arg13[%c2_84, %c0_85, %c0_86] : memref<4x128x128xf32, #tpu.memory_space<vmem>>, vector<1x128x128xf32>
    %103 = vector.shape_cast %102 : vector<1x128x128xf32> to vector<128x128xf32>
    %cst_87 = arith.constant dense<0.000000e+00> : vector<8x128xf32>
    %104 = tpu.matmul %69, %103, %cst_87 {dimension_numbers = #tpu.dot_dimension_numbers<[1], [0], [0], [1], [0, 0, 1, 1], [], []>} : vector<8x128xf32>, vector<128x128xf32>, vector<8x128xf32> -> vector<8x128xf32>
    %c2_88 = arith.constant 2 : index
    %c0_89 = arith.constant 0 : index
    %c0_90 = arith.constant 0 : index
    %105 = vector.load %arg14[%c2_88, %c0_89, %c0_90] : memref<4x128x128xf32, #tpu.memory_space<vmem>>, vector<1x128x128xf32>
    %106 = vector.shape_cast %105 : vector<1x128x128xf32> to vector<128x128xf32>
    %cst_91 = arith.constant dense<0.000000e+00> : vector<8x128xf32>
    %107 = tpu.matmul %77, %106, %cst_91 {dimension_numbers = #tpu.dot_dimension_numbers<[1], [0], [0], [1], [0, 0, 1, 1], [], []>} : vector<8x128xf32>, vector<128x128xf32>, vector<8x128xf32> -> vector<8x128xf32>
    %108 = arith.addf %104, %107 : vector<8x128xf32>
    %c2_92 = arith.constant 2 : index
    %c0_93 = arith.constant 0 : index
    %c0_94 = arith.constant 0 : index
    %109 = vector.load %arg15[%c2_92, %c0_93, %c0_94] : memref<4x1x128xf32, #tpu.memory_space<vmem>>, vector<1x1x128xf32>
    %110 = vector.shape_cast %109 : vector<1x1x128xf32> to vector<1x128xf32>
    %111 = vector.broadcast %110 : vector<1x128xf32> to vector<8x128xf32>
    %112 = arith.addf %108, %111 : vector<8x128xf32>
    %c3_95 = arith.constant 3 : index
    %c0_96 = arith.constant 0 : index
    %c0_97 = arith.constant 0 : index
    %113 = vector.load %arg13[%c3_95, %c0_96, %c0_97] : memref<4x128x128xf32, #tpu.memory_space<vmem>>, vector<1x128x128xf32>
    %114 = vector.shape_cast %113 : vector<1x128x128xf32> to vector<128x128xf32>
    %cst_98 = arith.constant dense<0.000000e+00> : vector<8x128xf32>
    %115 = tpu.matmul %69, %114, %cst_98 {dimension_numbers = #tpu.dot_dimension_numbers<[1], [0], [0], [1], [0, 0, 1, 1], [], []>} : vector<8x128xf32>, vector<128x128xf32>, vector<8x128xf32> -> vector<8x128xf32>
    %c3_99 = arith.constant 3 : index
    %c0_100 = arith.constant 0 : index
    %c0_101 = arith.constant 0 : index
    %116 = vector.load %arg14[%c3_99, %c0_100, %c0_101] : memref<4x128x128xf32, #tpu.memory_space<vmem>>, vector<1x128x128xf32>
    %117 = vector.shape_cast %116 : vector<1x128x128xf32> to vector<128x128xf32>
    %cst_102 = arith.constant dense<0.000000e+00> : vector<8x128xf32>
    %118 = tpu.matmul %77, %117, %cst_102 {dimension_numbers = #tpu.dot_dimension_numbers<[1], [0], [0], [1], [0, 0, 1, 1], [], []>} : vector<8x128xf32>, vector<128x128xf32>, vector<8x128xf32> -> vector<8x128xf32>
    %119 = arith.addf %115, %118 : vector<8x128xf32>
    %c3_103 = arith.constant 3 : index
    %c0_104 = arith.constant 0 : index
    %c0_105 = arith.constant 0 : index
    %120 = vector.load %arg15[%c3_103, %c0_104, %c0_105] : memref<4x1x128xf32, #tpu.memory_space<vmem>>, vector<1x1x128xf32>
    %121 = vector.shape_cast %120 : vector<1x1x128xf32> to vector<1x128xf32>
    %122 = vector.broadcast %121 : vector<1x128xf32> to vector<8x128xf32>
    %123 = arith.addf %119, %122 : vector<8x128xf32>
    %124 = arith.negf %90 : vector<8x128xf32>
    %125 = math.exp %124 : vector<8x128xf32>
    %cst_106 = arith.constant 1.000000e+00 : f32
    %126 = vector.broadcast %cst_106 : f32 to vector<8x128xf32>
    %127 = arith.addf %126, %125 : vector<8x128xf32>
    %128 = arith.divf %126, %127 : vector<8x128xf32>
    %129 = arith.negf %101 : vector<8x128xf32>
    %130 = math.exp %129 : vector<8x128xf32>
    %cst_107 = arith.constant 1.000000e+00 : f32
    %131 = vector.broadcast %cst_107 : f32 to vector<8x128xf32>
    %132 = arith.addf %131, %130 : vector<8x128xf32>
    %133 = arith.divf %131, %132 : vector<8x128xf32>
    %134 = math.tanh %112 : vector<8x128xf32>
    %135 = arith.negf %123 : vector<8x128xf32>
    %136 = math.exp %135 : vector<8x128xf32>
    %cst_108 = arith.constant 1.000000e+00 : f32
    %137 = vector.broadcast %cst_108 : f32 to vector<8x128xf32>
    %138 = arith.addf %137, %136 : vector<8x128xf32>
    %139 = arith.divf %137, %138 : vector<8x128xf32>
    %140 = arith.mulf %133, %79 : vector<8x128xf32>
    %141 = arith.mulf %128, %134 : vector<8x128xf32>
    %142 = arith.addf %140, %141 : vector<8x128xf32>
    %143 = math.tanh %142 : vector<8x128xf32>
    %144 = arith.mulf %139, %143 : vector<8x128xf32>
    %c1_109 = arith.constant 1 : index
    %c0_110 = arith.constant 0 : index
    %c0_111 = arith.constant 0 : index
    %145 = vector.load %arg17[%c1_109, %c0_110, %c0_111] : memref<2x8x128xf32, #tpu.memory_space<vmem>>, vector<1x8x128xf32>
    %146 = vector.shape_cast %145 : vector<1x8x128xf32> to vector<8x128xf32>
    %147 = vector.shape_cast %144 : vector<8x128xf32> to vector<1x8x128xf32>
    tpu.vector_store %arg17[%c1_109, %c0_110, %c0_111], %147 {strides = array<i32>} : memref<2x8x128xf32, #tpu.memory_space<vmem>>, vector<1x8x128xf32>,
    %c1_112 = arith.constant 1 : index
    %c0_113 = arith.constant 0 : index
    %c0_114 = arith.constant 0 : index
    %148 = vector.load %arg18[%c1_112, %c0_113, %c0_114] : memref<2x8x128xf32, #tpu.memory_space<vmem>>, vector<1x8x128xf32>
    %149 = vector.shape_cast %148 : vector<1x8x128xf32> to vector<8x128xf32>
    %150 = vector.shape_cast %142 : vector<8x128xf32> to vector<1x8x128xf32>
    tpu.vector_store %arg18[%c1_112, %c0_113, %c0_114], %150 {strides = array<i32>} : memref<2x8x128xf32, #tpu.memory_space<vmem>>, vector<1x8x128xf32>,
    %c0_115 = arith.constant 0 : index
    %c0_116 = arith.constant 0 : index
    %c0_117 = arith.constant 0 : index
    %151 = vector.load %arg3[%c0_115, %c0_116, %c0_117] : memref<8x16x128xf32, #tpu.memory_space<vmem>>, vector<8x16x128xf32>
    %c0_118 = arith.constant 0 : index
    %c0_119 = arith.constant 0 : index
    %152 = vector.load %arg5[%c0_118, %c0_119] : memref<128x128xf32, #tpu.memory_space<vmem>>, vector<128x128xf32>
    %cst_120 = arith.constant dense<0.000000e+00> : vector<8x128xf32>
    %153 = tpu.matmul %144, %152, %cst_120 {dimension_numbers = #tpu.dot_dimension_numbers<[1], [0], [0], [1], [0, 0, 1, 1], [], []>} : vector<8x128xf32>, vector<128x128xf32>, vector<8x128xf32> -> vector<8x128xf32>
    %154 = vector.shape_cast %153 : vector<8x128xf32> to vector<8x1x128xf32>
    %cst_121 = arith.constant dense<0.000000e+00> : vector<8x1x16xf32>
    %155 = tpu.matmul %154, %151, %cst_121 {dimension_numbers = #tpu.dot_dimension_numbers<[2], [2], [1], [1], [0, 0, 0, 1, 1, 1], [0], [0]>} : vector<8x1x128xf32>, vector<8x16x128xf32>, vector<8x1x16xf32> -> vector<8x1x16xf32>
    %c0_122 = arith.constant 0 : index
    %c0_123 = arith.constant 0 : index
    %156 = vector.load %arg6[%c0_122, %c0_123] : memref<1x128xf32, #tpu.memory_space<vmem>>, vector<1x128xf32>
    %157 = vector.broadcast %156 : vector<1x128xf32> to vector<8x128xf32>
    %158 = arith.mulf %144, %157 : vector<8x128xf32>
    %cst_124 = arith.constant dense<0.000000e+00> : vector<8xf32>
    %159 = vector.multi_reduction <add>, %158, %cst_124 [1] : vector<8x128xf32> to vector<8xf32>
    %160 = vector.shape_cast %159 : vector<8xf32> to vector<8x1xf32>
    %161 = vector.shape_cast %160 : vector<8x1xf32> to vector<8x1x1xf32>
    %162 = vector.broadcast %161 : vector<8x1x1xf32> to vector<8x1x16xf32>
    %163 = arith.addf %155, %162 : vector<8x1x16xf32>
    %164 = tpu.iota {dimensions = array<i32: 2>} : vector<8x1x16xi32>
    %c0_125 = arith.constant 0 : index
    %c0_126 = arith.constant 0 : index
    %165 = vector.load %arg4[%c0_125, %c0_126] : memref<8x1xi32, #tpu.memory_space<vmem>>, vector<8x1xi32>
    %166 = vector.shape_cast %165 : vector<8x1xi32> to vector<8x1x1xi32>
    %167 = vector.broadcast %166 : vector<8x1x1xi32> to vector<8x1x16xi32>
    %168 = arith.cmpi slt, %164, %167 : vector<8x1x16xi32>
    %cst_127 = arith.constant -1.000000e+30 : f32
    %169 = vector.broadcast %cst_127 : f32 to vector<8x1x16xf32>
    %170 = arith.select %168, %163, %169 : vector<8x1x16xi1>, vector<8x1x16xf32>
    %cst_128 = arith.constant dense<0xFF800000> : vector<8x1xf32>
    %171 = vector.multi_reduction <maximumf>, %170, %cst_128 [2] : vector<8x1x16xf32> to vector<8x1xf32>
    %172 = vector.shape_cast %171 : vector<8x1xf32> to vector<8x1x1xf32>
    %173 = vector.broadcast %172 : vector<8x1x1xf32> to vector<8x1x16xf32>
    %174 = arith.subf %170, %173 : vector<8x1x16xf32>
    %175 = math.exp %174 : vector<8x1x16xf32>
    %cst_129 = arith.constant dense<0.000000e+00> : vector<8x1xf32>
    %176 = vector.multi_reduction <add>, %175, %cst_129 [2] : vector<8x1x16xf32> to vector<8x1xf32>
    %177 = vector.shape_cast %176 : vector<8x1xf32> to vector<8x1x1xf32>
    %178 = tpu.reciprocal %177 {approx = true} : vector<8x1x1xf32> -> vector<8x1x1xf32>
    %179 = vector.broadcast %178 : vector<8x1x1xf32> to vector<8x1x16xf32>
    %180 = arith.mulf %175, %179 : vector<8x1x16xf32>
    %181 = vector.shape_cast %180 : vector<8x1x16xf32> to vector<8x16xf32>
    %c0_130 = arith.constant 0 : index
    %c0_131 = arith.constant 0 : index
    %182 = vector.load %arg19[%c0_130, %c0_131] : memref<8x16xf32, #tpu.memory_space<vmem>>, vector<8x16xf32>
    tpu.vector_store %arg19[%c0_130, %c0_131], %181 {strides = array<i32>} : memref<8x16xf32, #tpu.memory_space<vmem>>, vector<8x16xf32>,
    %cst_132 = arith.constant dense<0.000000e+00> : vector<8x1x128xf32>
    %183 = tpu.matmul %180, %151, %cst_132 {dimension_numbers = #tpu.dot_dimension_numbers<[2], [1], [1], [2], [0, 0, 0, 1, 1, 2], [0], [0]>} : vector<8x1x16xf32>, vector<8x16x128xf32>, vector<8x1x128xf32> -> vector<8x1x128xf32>
    %184 = vector.shape_cast %183 : vector<8x1x128xf32> to vector<8x128xf32>
    %c0_133 = arith.constant 0 : index
    %c0_134 = arith.constant 0 : index
    %185 = vector.load %arg7[%c0_133, %c0_134] : memref<128x128xf32, #tpu.memory_space<vmem>>, vector<128x128xf32>
    %cst_135 = arith.constant dense<0.000000e+00> : vector<8x128xf32>
    %186 = tpu.matmul %184, %185, %cst_135 {dimension_numbers = #tpu.dot_dimension_numbers<[1], [0], [0], [1], [0, 0, 1, 1], [], []>} : vector<8x128xf32>, vector<128x128xf32>, vector<8x128xf32> -> vector<8x128xf32>
    %c0_136 = arith.constant 0 : index
    %c0_137 = arith.constant 0 : index
    %187 = vector.load %arg8[%c0_136, %c0_137] : memref<128x128xf32, #tpu.memory_space<vmem>>, vector<128x128xf32>
    %cst_138 = arith.constant dense<0.000000e+00> : vector<8x128xf32>
    %188 = tpu.matmul %144, %187, %cst_138 {dimension_numbers = #tpu.dot_dimension_numbers<[1], [0], [0], [1], [0, 0, 1, 1], [], []>} : vector<8x128xf32>, vector<128x128xf32>, vector<8x128xf32> -> vector<8x128xf32>
    %189 = arith.addf %186, %188 : vector<8x128xf32>
    %c0_139 = arith.constant 0 : index
    %c0_140 = arith.constant 0 : index
    %190 = vector.load %arg9[%c0_139, %c0_140] : memref<1x128xf32, #tpu.memory_space<vmem>>, vector<1x128xf32>
    %191 = vector.broadcast %190 : vector<1x128xf32> to vector<8x128xf32>
    %192 = arith.addf %189, %191 : vector<8x128xf32>
    %193 = math.tanh %192 : vector<8x128xf32>
    %c0_141 = arith.constant 0 : index
    %c0_142 = arith.constant 0 : index
    %194 = vector.load %arg16[%c0_141, %c0_142] : memref<8x128xf32, #tpu.memory_space<vmem>>, vector<8x128xf32>
    tpu.vector_store %arg16[%c0_141, %c0_142], %193 {strides = array<i32>} : memref<8x128xf32, #tpu.memory_space<vmem>>, vector<8x128xf32>,
    return
  }
}

</mosaic_0001>

<llo_original>
// kernel: decoder_forward.3
$region0: #{decoder_forward.3}
  #allocation0 [shape = 'u32[]', space=smem, size = 0x4, offset = 0x4, fixed_abs, tag = 'smem constant byte address 0x4 - core index']
  #allocation1 [shape = 'u32[144,128]{1,0:T(1,128)}', space=vmem, size = 0x12000, scoped, tag = 'internal scratch']
  %s0 = inlined_call_operand.vmem [shape: f32[8,128], index: 0, kind: input, shape index: {}]
  %s1 = inlined_call_operand.vmem [shape: f32[128,256], index: 1, kind: input, shape index: {}]
  %s2 = inlined_call_operand.vmem [shape: f32[1,256], index: 2, kind: input, shape index: {}]
  %s3 = inlined_call_operand.hbm [shape: f32[8,256], index: 3, kind: output, shape index: {}]
  %s4 = sld [smem:[#allocation0]]
  $region22: #{decoder_forward.3} parent=0
    _
  %s6 = ssub.s32 1, %s4
  %s7 = scalar_select 0, %s6, %s4
  $region1: #{decoder_forward.3} parent=0
    #allocation2 [shape = 'u8[8192]{0}', space=vmem, size = 0x2000, scoped, tag = 'output window, operand 0, single buffered']
    #allocation3 [shape = 's32[1]{0}', space=sflag, size = 0x4, scoped, tag = 'scoped memory for decoder_forward.3']
    %8 = vsyncpa [#allocation3], 0
    // Predicated region
    $region2: #{decoder_forward.3} parent=1 // pred_check
      _
    $region3: #{decoder_forward.3} parent=1 // pred_check_branch
      %10 = sbr.rel (0) target = $region5
    $region4: #{decoder_forward.3} parent=1 // pred_region
      _
    $region5: #{decoder_forward.3} parent=1 // pred_fallthru
      _
    // Predicated region
    $region6: #{decoder_forward.3} parent=1 // pred_check
      _
    $region7: #{decoder_forward.3} parent=1 // pred_check_branch
      %12 = sbr.rel (0) target = $region9
    $region8: #{decoder_forward.3} parent=1 // pred_region
      _
    $region9: #{decoder_forward.3} parent=1 // pred_fallthru
      _
    // Predicated region
    $region10: #{decoder_forward.3} parent=1 // pred_check
      _
    $region11: #{decoder_forward.3} parent=1 // pred_check_branch
      %14 = sbr.rel (0) target = $region13
    $region12: #{decoder_forward.3} parent=1 // pred_region
      _
    $region13: #{decoder_forward.3} parent=1 // pred_fallthru
      _
    %v15 = vld [vmem:[%s0] sm:$0xff]
    %v16 = vld [vmem:[%s1] sm:$0xff]
    %v17 = vld [vmem:[%s1 + $0x8] sm:$0xff]
    %v18 = vld [vmem:[%s1 + $0x10] sm:$0xff]
    %v19 = vld [vmem:[%s1 + $0x18] sm:$0xff]
    %v20 = vld [vmem:[%s1 + $0x20] sm:$0xff]
    %v21 = vld [vmem:[%s1 + $0x28] sm:$0xff]
    %v22 = vld [vmem:[%s1 + $0x30] sm:$0xff]
    %v23 = vld [vmem:[%s1 + $0x38] sm:$0xff]
    %v24 = vld [vmem:[%s1 + $0x40] sm:$0xff]
    %v25 = vld [vmem:[%s1 + $0x48] sm:$0xff]
    %v26 = vld [vmem:[%s1 + $0x50] sm:$0xff]
    %v27 = vld [vmem:[%s1 + $0x58] sm:$0xff]
    %v28 = vld [vmem:[%s1 + $0x60] sm:$0xff]
    %v29 = vld [vmem:[%s1 + $0x68] sm:$0xff]
    %v30 = vld [vmem:[%s1 + $0x70] sm:$0xff]
    %v31 = vld [vmem:[%s1 + $0x78] sm:$0xff]
    %v32 = vld [vmem:[%s1 + $0x80] sm:$0xff]
    %v33 = vld [vmem:[%s1 + $0x88] sm:$0xff]
    %v34 = vld [vmem:[%s1 + $0x90] sm:$0xff]
    %v35 = vld [vmem:[%s1 + $0x98] sm:$0xff]
    %v36 = vld [vmem:[%s1 + $0xa0] sm:$0xff]
    %v37 = vld [vmem:[%s1 + $0xa8] sm:$0xff]
    %v38 = vld [vmem:[%s1 + $0xb0] sm:$0xff]
    %v39 = vld [vmem:[%s1 + $0xb8] sm:$0xff]
    %v40 = vld [vmem:[%s1 + $0xc0] sm:$0xff]
    %v41 = vld [vmem:[%s1 + $0xc8] sm:$0xff]
    %v42 = vld [vmem:[%s1 + $0xd0] sm:$0xff]
    %v43 = vld [vmem:[%s1 + $0xd8] sm:$0xff]
    %v44 = vld [vmem:[%s1 + $0xe0] sm:$0xff]
    %v45 = vld [vmem:[%s1 + $0xe8] sm:$0xff]
    %v46 = vld [vmem:[%s1 + $0xf0] sm:$0xff]
    %v47 = vld [vmem:[%s1 + $0xf8] sm:$0xff]
    %v48 = vld [vmem:[%s2] sm:$0x3]
    %v50 = vlaneseq
    %v51 = vshrl.u32 %v50, 7
    %v52 = vsub.s32 0, %v51
    %v53 = vrot.slane %v48, %v52
    %v54 = vlaneseq
    %v55 = vshrl.u32 %v54, 7
    %v56 = vsub.s32 1, %v55
    %v57 = vrot.slane %v48, %v56
    %60 = vmatprep.subr.mxu0 %v17
    %61 = vmatpush1.msra.mxu0 %v16
    %62 = vmatprep.subr.mxu0 %v19
    %63 = vmatpush1.msra.mxu0 %v18
    %64 = vmatprep.subr.mxu0 %v21
    %65 = vmatpush1.msra.mxu0 %v20
    %66 = vmatprep.subr.mxu0 %v23
    %67 = vmatpush1.msra.mxu0 %v22
    %68 = vmatprep.subr.mxu0 %v25
    %69 = vmatpush1.msra.mxu0 %v24
    %70 = vmatprep.subr.mxu0 %v27
    %71 = vmatpush1.msra.mxu0 %v26
    %72 = vmatprep.subr.mxu0 %v29
    %73 = vmatpush1.msra.mxu0 %v28
    %74 = vmatprep.subr.mxu0 %v31
    %75 = vmatpush1.msra.mxu0 %v30
    %76 = vmatprep.subr.mxu0 %v33
    %77 = vmatpush1.msra.mxu0 %v32
    %78 = vmatprep.subr.mxu0 %v35
    %79 = vmatpush1.msra.mxu0 %v34
    %80 = vmatprep.subr.mxu0 %v37
    %81 = vmatpush1.msra.mxu0 %v36
    %82 = vmatprep.subr.mxu0 %v39
    %83 = vmatpush1.msra.mxu0 %v38
    %84 = vmatprep.subr.mxu0 %v41
    %85 = vmatpush1.msra.mxu0 %v40
    %86 = vmatprep.subr.mxu0 %v43
    %87 = vmatpush1.msra.mxu0 %v42
    %88 = vmatprep.subr.mxu0 %v45
    %89 = vmatpush1.msra.mxu0 %v44
    %90 = vmatprep.subr.mxu0 %v47
    %91 = vmatpush1.msra.mxu0 %v46
    %92 = vmatprep.subr.mxu0 0.0
    %93 = vmatpush1.msra.mxu0 0.0
    %94 = vmatprep.subr.mxu0 0.0
    %95 = vmatpush1.msra.mxu0 0.0
    %96 = vmatprep.subr.mxu0 0.0
    %97 = vmatpush1.msra.mxu0 0.0
    %98 = vmatprep.subr.mxu0 0.0
    %99 = vmatpush1.msra.mxu0 0.0
    %100 = vmatprep.subr.mxu0 0.0
    %101 = vmatpush1.msra.mxu0 0.0
    %102 = vmatprep.subr.mxu0 0.0
    %103 = vmatpush1.msra.mxu0 0.0
    %104 = vmatprep.subr.mxu0 0.0
    %105 = vmatpush1.msra.mxu0 0.0
    %106 = vmatprep.subr.mxu0 0.0
    %107 = vmatpush1.msra.mxu0 0.0
    %108 = vmatprep.subr.mxu0 0.0
    %109 = vmatpush1.msra.mxu0 0.0
    %110 = vmatprep.subr.mxu0 0.0
    %111 = vmatpush1.msra.mxu0 0.0
    %112 = vmatprep.subr.mxu0 0.0
    %113 = vmatpush1.msra.mxu0 0.0
    %114 = vmatprep.subr.mxu0 0.0
    %115 = vmatpush1.msra.mxu0 0.0
    %116 = vmatprep.subr.mxu0 0.0
    %117 = vmatpush1.msra.mxu0 0.0
    %118 = vmatprep.subr.mxu0 0.0
    %119 = vmatpush1.msra.mxu0 0.0
    %120 = vmatprep.subr.mxu0 0.0
    %121 = vmatpush1.msra.mxu0 0.0
    %122 = vmatprep.subr.mxu0 0.0
    %123 = vmatpush1.msra.mxu0 0.0
    %124 = vmatprep.mubr.f32.mxu0 0.0
    %125 = vmatmul.mubr.f32.gmra.mrb[0].mxu0 %v15
    %v126 = vpop.f32.mrb[0].mxu0
    %v127 = vadd.f32 %v53, %v126
    %v128 = vpop.f32.mrb[0].mxu0
    %v129 = vadd.f32 %v57, %v128
    %130 = vdwg.mxu0
    %131 = vst [vmem:[#allocation2] sm:$0xff] %v127
    %132 = vst [vmem:[#allocation2 + $0x8] sm:$0xff] %v129
    // Predicated region
    $region14: #{decoder_forward.3} parent=1 // pred_check
      _
    $region15: #{decoder_forward.3} parent=1 // pred_check_branch
      %134 = sbr.rel (0) target = $region17
    $region16: #{decoder_forward.3} parent=1 // pred_region
      %s136 = ssub.s32 256, 256
      %137 = vsyncadd [#allocation3], %s136
      %s139 = sshll.u32 [#allocation2], 4
      %s140 = int_to_ptr.vmem [resolvable:$true] %s139
      %142 = dma.vmem_to_hbm [thread:$0]  %s140, 256, %s3, [#allocation3]
    $region17: #{decoder_forward.3} parent=1 // pred_fallthru
      _
    // Predicated region
    $region18: #{decoder_forward.3} parent=1 // pred_check
      _
    $region19: #{decoder_forward.3} parent=1 // pred_check_branch
      %144 = sbr.rel (0) target = $region21
    $region20: #{decoder_forward.3} parent=1 // pred_region
      %145 = dma.done [#allocation3], 256
    $region21: #{decoder_forward.3} parent=1 // pred_fallthru
      _
    %146 = vsyncpa [#allocation3], 1

// kernel: decoder_forward.2
$region0: #{decoder_forward.2}
  #allocation0 [shape = 'u32[]', space=smem, size = 0x4, offset = 0x4, fixed_abs, tag = 'smem constant byte address 0x4 - core index']
  #allocation1 [shape = 'u32[144,128]{1,0:T(1,128)}', space=vmem, size = 0x12000, scoped, tag = 'internal scratch']
  %s0 = inlined_call_operand.vmem [shape: f32[8,64], index: 0, kind: input, shape index: {}]
  %s1 = inlined_call_operand.vmem [shape: f32[2,8,128], index: 1, kind: input, shape index: {}]
  %s2 = inlined_call_operand.vmem [shape: f32[2,8,128], index: 2, kind: input, shape index: {}]
  %s3 = inlined_call_operand.hbm [shape: f32[8,16,128], index: 3, kind: input, shape index: {}]
  %s4 = inlined_call_operand.vmem [shape: s32[8,1], index: 4, kind: input, shape index: {}]
  %s5 = inlined_call_operand.hbm [shape: f32[128,128], index: 5, kind: input, shape index: {}]
  %s6 = inlined_call_operand.hbm [shape: f32[1,128], index: 6, kind: input, shape index: {}]
  %s7 = inlined_call_operand.hbm [shape: f32[128,128], index: 7, kind: input, shape index: {}]
  %s8 = inlined_call_operand.hbm [shape: f32[128,128], index: 8, kind: input, shape index: {}]
  %s9 = inlined_call_operand.hbm [shape: f32[1,128], index: 9, kind: input, shape index: {}]
  %s10 = inlined_call_operand.hbm [shape: f32[4,64,128], index: 10, kind: input, shape index: {}]
  %s11 = inlined_call_operand.vmem [shape: f32[4,128,128], index: 11, kind: input, shape index: {}]
  %s12 = inlined_call_operand.vmem [shape: f32[4,1,128], index: 12, kind: input, shape index: {}]
  %s13 = inlined_call_operand.hbm [shape: f32[4,128,128], index: 13, kind: input, shape index: {}]
  %s14 = inlined_call_operand.hbm [shape: f32[4,128,128], index: 14, kind: input, shape index: {}]
  %s15 = inlined_call_operand.hbm [shape: f32[4,1,128], index: 15, kind: input, shape index: {}]
  %s16 = inlined_call_operand.vmem [shape: f32[8,128], index: 16, kind: output, shape index: {0}]
  %s17 = inlined_call_operand.hbm [shape: f32[2,8,128], index: 17, kind: output, shape index: {1}]
  %s18 = inlined_call_operand.hbm [shape: f32[2,8,128], index: 18, kind: output, shape index: {2}]
  %s19 = inlined_call_operand.hbm [shape: f32[8,16], index: 19, kind: output, shape index: {3}]
  %20 = xla_tuple %s16, %s17, %s18, %s19
  %s21 = sld [smem:[#allocation0]]
  $region138: #{decoder_forward.2} parent=0
    _
  %s23 = ssub.s32 1, %s21
  %s24 = scalar_select 0, %s23, %s21
  $region1: #{decoder_forward.2} parent=0
    #allocation2 [shape = 'u8[65536]{0}', space=vmem, size = 0x10000, scoped, tag = 'input window, operand 3, single buffered']
    #allocation3 [shape = 's32[1]{0}', space=sflag, size = 0x4, scoped, tag = 'scoped memory for decoder_forward.2']
    #allocation4 [shape = 's32[1]{0}', space=sflag, size = 0x4, scoped, tag = 'scoped memory for decoder_forward.2']
    #allocation5 [shape = 'u8[65536]{0}', space=vmem, size = 0x10000, scoped, tag = 'input window, operand 5, single buffered']
    #allocation6 [shape = 's32[1]{0}', space=sflag, size = 0x4, scoped, tag = 'scoped memory for decoder_forward.2']
    #allocation7 [shape = 'u8[512]{0}', space=vmem, size = 0x400, scoped, tag = 'input window, operand 6, single buffered']
    #allocation8 [shape = 'u8[65536]{0}', space=vmem, size = 0x10000, scoped, tag = 'input window, operand 7, single buffered']
    #allocation9 [shape = 's32[1]{0}', space=sflag, size = 0x4, scoped, tag = 'scoped memory for decoder_forward.2']
    #allocation10 [shape = 'u8[65536]{0}', space=vmem, size = 0x10000, scoped, tag = 'input window, operand 8, single buffered']
    #allocation11 [shape = 'u8[512]{0}', space=vmem, size = 0x400, scoped, tag = 'input window, operand 9, single buffered']
    #allocation12 [shape = 's32[1]{0}', space=sflag, size = 0x4, scoped, tag = 'scoped memory for decoder_forward.2']
    #allocation13 [shape = 'u8[131072]{0}', space=vmem, size = 0x20000, scoped, tag = 'input window, operand 10, single buffered']
    #allocation14 [shape = 'u8[262144]{0}', space=vmem, size = 0x40000, scoped, tag = 'input window, operand 13, single buffered']
    #allocation15 [shape = 's32[1]{0}', space=sflag, size = 0x4, scoped, tag = 'scoped memory for decoder_forward.2']
    #allocation16 [shape = 'u8[262144]{0}', space=vmem, size = 0x40000, scoped, tag = 'input window, operand 14, single buffered']
    #allocation17 [shape = 'u8[2048]{0}', space=vmem, size = 0x800, scoped, tag = 'input window, operand 15, single buffered']
    #allocation18 [shape = 's32[1]{0}', space=sflag, size = 0x4, scoped, tag = 'scoped memory for decoder_forward.2']
    #allocation19 [shape = 'u8[8192]{0}', space=vmem, size = 0x2000, scoped, tag = 'output window, operand 1, single buffered']
    #allocation20 [shape = 'u8[8192]{0}', space=vmem, size = 0x2000, scoped, tag = 'output window, operand 2, single buffered']
    #allocation21 [shape = 's32[1]{0}', space=sflag, size = 0x4, scoped, tag = 'scoped memory for decoder_forward.2']
    #allocation22 [shape = 'u8[4096]{0}', space=vmem, size = 0x1000, scoped, tag = 'output window, operand 3, single buffered']
    %25 = vsyncpa [#allocation3], 0
    %26 = vsyncpa [#allocation6], 0
    %27 = vsyncpa [#allocation9], 0
    %28 = vsyncpa [#allocation12], 0
    %29 = vsyncpa [#allocation15], 0
    %30 = vsyncpa [#allocation18], 0
    %31 = vsyncpa [#allocation4], 0
    %32 = vsyncpa [#allocation21], 0
    // Predicated region
    $region2: #{decoder_forward.2} parent=1 // pred_check
      _
    $region3: #{decoder_forward.2} parent=1 // pred_check_branch
      %34 = sbr.rel (0) target = $region5
    $region4: #{decoder_forward.2} parent=1 // pred_region
      _
    $region5: #{decoder_forward.2} parent=1 // pred_fallthru
      _
    // Predicated region
    $region6: #{decoder_forward.2} parent=1 // pred_check
      _
    $region7: #{decoder_forward.2} parent=1 // pred_check_branch
      %36 = sbr.rel (0) target = $region9
    $region8: #{decoder_forward.2} parent=1 // pred_region
      _
    $region9: #{decoder_forward.2} parent=1 // pred_fallthru
      _
    // Predicated region
    $region10: #{decoder_forward.2} parent=1 // pred_check
      _
    $region11: #{decoder_forward.2} parent=1 // pred_check_branch
      %38 = sbr.rel (0) target = $region13
    $region12: #{decoder_forward.2} parent=1 // pred_region
      _
    $region13: #{decoder_forward.2} parent=1 // pred_fallthru
      _
    // Predicated region
    $region14: #{decoder_forward.2} parent=1 // pred_check
      _
    $region15: #{decoder_forward.2} parent=1 // pred_check_branch
      %40 = sbr.rel (0) target = $region17
    $region16: #{decoder_forward.2} parent=1 // pred_region
      %s42 = ssub.s32 2048, 2048
      %43 = vsyncadd [#allocation3], %s42
      %s44 = sshll.u32 [#allocation2], 4
      %s45 = int_to_ptr.vmem [resolvable:$true] %s44
      %50 = dma.hbm_to_vmem [thread:$0]  %s3, 2048, %s45, [#allocation3], 128, 128, 8
    $region17: #{decoder_forward.2} parent=1 // pred_fallthru
      _
    // Predicated region
    $region18: #{decoder_forward.2} parent=1 // pred_check
      _
    $region19: #{decoder_forward.2} parent=1 // pred_check_branch
      %52 = sbr.rel (0) target = $region21
    $region20: #{decoder_forward.2} parent=1 // pred_region
      _
    $region21: #{decoder_forward.2} parent=1 // pred_fallthru
      _
    // Predicated region
    $region22: #{decoder_forward.2} parent=1 // pred_check
      _
    $region23: #{decoder_forward.2} parent=1 // pred_check_branch
      %54 = sbr.rel (0) target = $region25
    $region24: #{decoder_forward.2} parent=1 // pred_region
      %s56 = ssub.s32 2048, 2048
      %57 = vsyncadd [#allocation6], %s56
      %s58 = sshll.u32 [#allocation5], 4
      %s59 = int_to_ptr.vmem [resolvable:$true] %s58
      %64 = dma.hbm_to_vmem [thread:$0]  %s5, 2048, %s59, [#allocation6], 128, 128, 8
    $region25: #{decoder_forward.2} parent=1 // pred_fallthru
      _
    // Predicated region
    $region26: #{decoder_forward.2} parent=1 // pred_check
      _
    $region27: #{decoder_forward.2} parent=1 // pred_check_branch
      %66 = sbr.rel (0) target = $region29
    $region28: #{decoder_forward.2} parent=1 // pred_region
      %s68 = ssub.s32 16, 16
      %69 = vsyncadd [#allocation6], %s68
      %s71 = sshll.u32 [#allocation7], 4
      %s72 = int_to_ptr.vmem [resolvable:$true] %s71
      %74 = dma.hbm_to_vmem [thread:$0]  %s6, 16, %s72, [#allocation6]
    $region29: #{decoder_forward.2} parent=1 // pred_fallthru
      _
    // Predicated region
    $region30: #{decoder_forward.2} parent=1 // pred_check
      _
    $region31: #{decoder_forward.2} parent=1 // pred_check_branch
      %76 = sbr.rel (0) target = $region33
    $region32: #{decoder_forward.2} parent=1 // pred_region
      %s78 = ssub.s32 2048, 2048
      %79 = vsyncadd [#allocation9], %s78
      %s80 = sshll.u32 [#allocation8], 4
      %s81 = int_to_ptr.vmem [resolvable:$true] %s80
      %86 = dma.hbm_to_vmem [thread:$0]  %s7, 2048, %s81, [#allocation9], 128, 128, 8
    $region33: #{decoder_forward.2} parent=1 // pred_fallthru
      _
    // Predicated region
    $region34: #{decoder_forward.2} parent=1 // pred_check
      _
    $region35: #{decoder_forward.2} parent=1 // pred_check_branch
      %88 = sbr.rel (0) target = $region37
    $region36: #{decoder_forward.2} parent=1 // pred_region
      %s90 = ssub.s32 2048, 2048
      %91 = vsyncadd [#allocation9], %s90
      %s92 = sshll.u32 [#allocation10], 4
      %s93 = int_to_ptr.vmem [resolvable:$true] %s92
      %98 = dma.hbm_to_vmem [thread:$0]  %s8, 2048, %s93, [#allocation9], 128, 128, 8
    $region37: #{decoder_forward.2} parent=1 // pred_fallthru
      _
    // Predicated region
    $region38: #{decoder_forward.2} parent=1 // pred_check
      _
    $region39: #{decoder_forward.2} parent=1 // pred_check_branch
      %100 = sbr.rel (0) target = $region41
    $region40: #{decoder_forward.2} parent=1 // pred_region
      %s102 = ssub.s32 16, 16
      %103 = vsyncadd [#allocation12], %s102
      %s105 = sshll.u32 [#allocation11], 4
      %s106 = int_to_ptr.vmem [resolvable:$true] %s105
      %108 = dma.hbm_to_vmem [thread:$0]  %s9, 16, %s106, [#allocation12]
    $region41: #{decoder_forward.2} parent=1 // pred_fallthru
      _
    // Predicated region
    $region42: #{decoder_forward.2} parent=1 // pred_check
      _
    $region43: #{decoder_forward.2} parent=1 // pred_check_branch
      %110 = sbr.rel (0) target = $region45
    $region44: #{decoder_forward.2} parent=1 // pred_region
      %s112 = ssub.s32 4096, 4096
      %113 = vsyncadd [#allocation12], %s112
      %s114 = sshll.u32 [#allocation13], 4
      %s115 = int_to_ptr.vmem [resolvable:$true] %s114
      %120 = dma.hbm_to_vmem [thread:$0]  %s10, 4096, %s115, [#allocation12], 128, 128, 8
    $region45: #{decoder_forward.2} parent=1 // pred_fallthru
      _
    // Predicated region
    $region46: #{decoder_forward.2} parent=1 // pred_check
      _
    $region47: #{decoder_forward.2} parent=1 // pred_check_branch
      %122 = sbr.rel (0) target = $region49
    $region48: #{decoder_forward.2} parent=1 // pred_region
      _
    $region49: #{decoder_forward.2} parent=1 // pred_fallthru
      _
    // Predicated region
    $region50: #{decoder_forward.2} parent=1 // pred_check
      _
    $region51: #{decoder_forward.2} parent=1 // pred_check_branch
      %124 = sbr.rel (0) target = $region53
    $region52: #{decoder_forward.2} parent=1 // pred_region
      _
    $region53: #{decoder_forward.2} parent=1 // pred_fallthru
      _
    // Predicated region
    $region54: #{decoder_forward.2} parent=1 // pred_check
      _
    $region55: #{decoder_forward.2} parent=1 // pred_check_branch
      %126 = sbr.rel (0) target = $region57
    $region56: #{decoder_forward.2} parent=1 // pred_region
      %s128 = ssub.s32 8192, 8192
      %129 = vsyncadd [#allocation15], %s128
      %s130 = sshll.u32 [#allocation14], 4
      %s131 = int_to_ptr.vmem [resolvable:$true] %s130
      %136 = dma.hbm_to_vmem [thread:$0]  %s13, 8192, %s131, [#allocation15], 128, 128, 8
    $region57: #{decoder_forward.2} parent=1 // pred_fallthru
      _
    // Predicated region
    $region58: #{decoder_forward.2} parent=1 // pred_check
      _
    $region59: #{decoder_forward.2} parent=1 // pred_check_branch
      %138 = sbr.rel (0) target = $region61
    $region60: #{decoder_forward.2} parent=1 // pred_region
      %s140 = ssub.s32 8192, 8192
      %141 = vsyncadd [#allocation15], %s140
      %s142 = sshll.u32 [#allocation16], 4
      %s143 = int_to_ptr.vmem [resolvable:$true] %s142
      %148 = dma.hbm_to_vmem [thread:$0]  %s14, 8192, %s143, [#allocation15], 128, 128, 8
    $region61: #{decoder_forward.2} parent=1 // pred_fallthru
      _
    // Predicated region
    $region62: #{decoder_forward.2} parent=1 // pred_check
      _
    $region63: #{decoder_forward.2} parent=1 // pred_check_branch
      %150 = sbr.rel (0) target = $region65
    $region64: #{decoder_forward.2} parent=1 // pred_region
      %s152 = ssub.s32 64, 64
      %153 = vsyncadd [#allocation18], %s152
      %s154 = sshll.u32 [#allocation17], 4
      %s155 = int_to_ptr.vmem [resolvable:$true] %s154
      %160 = dma.hbm_to_vmem [thread:$0]  %s15, 64, %s155, [#allocation18], 16, 16, 1
    $region65: #{decoder_forward.2} parent=1 // pred_fallthru
      _
    // Predicated region
    $region66: #{decoder_forward.2} parent=1 // pred_check
      _
    $region67: #{decoder_forward.2} parent=1 // pred_check_branch
      %162 = sbr.rel (0) target = $region69
    $region68: #{decoder_forward.2} parent=1 // pred_region
      %163 = dma.done [#allocation3], 2048
    $region69: #{decoder_forward.2} parent=1 // pred_fallthru
      _
    // Predicated region
    $region70: #{decoder_forward.2} parent=1 // pred_check
      _
    $region71: #{decoder_forward.2} parent=1 // pred_check_branch
      %165 = sbr.rel (0) target = $region73
    $region72: #{decoder_forward.2} parent=1 // pred_region
      %166 = dma.done [#allocation6], 2048
    $region73: #{decoder_forward.2} parent=1 // pred_fallthru
      _
    // Predicated region
    $region74: #{decoder_forward.2} parent=1 // pred_check
      _
    $region75: #{decoder_forward.2} parent=1 // pred_check_branch
      %168 = sbr.rel (0) target = $region77
    $region76: #{decoder_forward.2} parent=1 // pred_region
      %169 = dma.done [#allocation6], 16
    $region77: #{decoder_forward.2} parent=1 // pred_fallthru
      _
    // Predicated region
    $region78: #{decoder_forward.2} parent=1 // pred_check
      _
    $region79: #{decoder_forward.2} parent=1 // pred_check_branch
      %171 = sbr.rel (0) target = $region81
    $region80: #{decoder_forward.2} parent=1 // pred_region
      %172 = dma.done [#allocation9], 2048
    $region81: #{decoder_forward.2} parent=1 // pred_fallthru
      _
    // Predicated region
    $region82: #{decoder_forward.2} parent=1 // pred_check
      _
    $region83: #{decoder_forward.2} parent=1 // pred_check_branch
      %174 = sbr.rel (0) target = $region85
    $region84: #{decoder_forward.2} parent=1 // pred_region
      %175 = dma.done [#allocation9], 2048
    $region85: #{decoder_forward.2} parent=1 // pred_fallthru
      _
    // Predicated region
    $region86: #{decoder_forward.2} parent=1 // pred_check
      _
    $region87: #{decoder_forward.2} parent=1 // pred_check_branch
      %177 = sbr.rel (0) target = $region89
    $region88: #{decoder_forward.2} parent=1 // pred_region
      %178 = dma.done [#allocation12], 16
    $region89: #{decoder_forward.2} parent=1 // pred_fallthru
      _
    // Predicated region
    $region90: #{decoder_forward.2} parent=1 // pred_check
      _
    $region91: #{decoder_forward.2} parent=1 // pred_check_branch
      %180 = sbr.rel (0) target = $region93
    $region92: #{decoder_forward.2} parent=1 // pred_region
      %181 = dma.done [#allocation12], 4096
    $region93: #{decoder_forward.2} parent=1 // pred_fallthru
      _
    // Predicated region
    $region94: #{decoder_forward.2} parent=1 // pred_check
      _
    $region95: #{decoder_forward.2} parent=1 // pred_check_branch
      %183 = sbr.rel (0) target = $region97
    $region96: #{decoder_forward.2} parent=1 // pred_region
      %184 = dma.done [#allocation15], 8192
    $region97: #{decoder_forward.2} parent=1 // pred_fallthru
      _
    // Predicated region
    $region98: #{decoder_forward.2} parent=1 // pred_check
      _
    $region99: #{decoder_forward.2} parent=1 // pred_check_branch
      %186 = sbr.rel (0) target = $region101
    $region100: #{decoder_forward.2} parent=1 // pred_region
      %187 = dma.done [#allocation15], 8192
    $region101: #{decoder_forward.2} parent=1 // pred_fallthru
      _
    // Predicated region
    $region102: #{decoder_forward.2} parent=1 // pred_check
      _
    $region103: #{decoder_forward.2} parent=1 // pred_check_branch
      %189 = sbr.rel (0) target = $region105
    $region104: #{decoder_forward.2} parent=1 // pred_region
      %190 = dma.done [#allocation18], 64
    $region105: #{decoder_forward.2} parent=1 // pred_fallthru
      _
    %v191 = vld [vmem:[%s0] sm:$0xff]
    %v192 = vld [vmem:[%s1] sm:$0xff]
    %v193 = vld [vmem:[%s2] sm:$0xff]
    %v194 = vld [vmem:[#allocation13] sm:$0xff]
    %v195 = vld [vmem:[#allocation13 + $0x8] sm:$0xff]
    %v196 = vld [vmem:[#allocation13 + $0x10] sm:$0xff]
    %v197 = vld [vmem:[#allocation13 + $0x18] sm:$0xff]
    %v198 = vld [vmem:[#allocation13 + $0x20] sm:$0xff]
    %v199 = vld [vmem:[#allocation13 + $0x28] sm:$0xff]
    %v200 = vld [vmem:[#allocation13 + $0x30] sm:$0xff]
    %v201 = vld [vmem:[#allocation13 + $0x38] sm:$0xff]
    %v202 = vld [vmem:[%s11] sm:$0xff]
    %v203 = vld [vmem:[%s11 + $0x8] sm:$0xff]
    %v204 = vld [vmem:[%s11 + $0x10] sm:$0xff]
    %v205 = vld [vmem:[%s11 + $0x18] sm:$0xff]
    %v206 = vld [vmem:[%s11 + $0x20] sm:$0xff]
    %v207 = vld [vmem:[%s11 + $0x28] sm:$0xff]
    %v208 = vld [vmem:[%s11 + $0x30] sm:$0xff]
    %v209 = vld [vmem:[%s11 + $0x38] sm:$0xff]
    %v210 = vld [vmem:[%s11 + $0x40] sm:$0xff]
    %v211 = vld [vmem:[%s11 + $0x48] sm:$0xff]
    %v212 = vld [vmem:[%s11 + $0x50] sm:$0xff]
    %v213 = vld [vmem:[%s11 + $0x58] sm:$0xff]
    %v214 = vld [vmem:[%s11 + $0x60] sm:$0xff]
    %v215 = vld [vmem:[%s11 + $0x68] sm:$0xff]
    %v216 = vld [vmem:[%s11 + $0x70] sm:$0xff]
    %v217 = vld [vmem:[%s11 + $0x78] sm:$0xff]
    %218 = vmatprep.subr.mxu0 0.0
    %219 = vmatpush1.msra.mxu0 %v202
    %220 = vmatprep.subr.mxu0 0.0
    %221 = vmatpush1.msra.mxu0 %v203
    %222 = vmatprep.subr.mxu0 0.0
    %223 = vmatpush1.msra.mxu0 %v204
    %224 = vmatprep.subr.mxu0 0.0
    %225 = vmatpush1.msra.mxu0 %v205
    %226 = vmatprep.subr.mxu0 0.0
    %227 = vmatpush1.msra.mxu0 %v206
    %228 = vmatprep.subr.mxu0 0.0
    %229 = vmatpush1.msra.mxu0 %v207
    %230 = vmatprep.subr.mxu0 0.0
    %231 = vmatpush1.msra.mxu0 %v208
    %232 = vmatprep.subr.mxu0 0.0
    %233 = vmatpush1.msra.mxu0 %v209
    %234 = vmatprep.subr.mxu0 0.0
    %235 = vmatpush1.msra.mxu0 %v210
    %236 = vmatprep.subr.mxu0 0.0
    %237 = vmatpush1.msra.mxu0 %v211
    %238 = vmatprep.subr.mxu0 0.0
    %239 = vmatpush1.msra.mxu0 %v212
    %240 = vmatprep.subr.mxu0 0.0
    %241 = vmatpush1.msra.mxu0 %v213
    %242 = vmatprep.subr.mxu0 0.0
    %243 = vmatpush1.msra.mxu0 %v214
    %244 = vmatprep.subr.mxu0 0.0
    %245 = vmatpush1.msra.mxu0 %v215
    %246 = vmatprep.subr.mxu0 0.0
    %247 = vmatpush1.msra.mxu0 %v216
    %248 = vmatprep.subr.mxu0 0.0
    %249 = vmatpush1.msra.mxu0 %v217
    %250 = vmatprep.subr.mxu0 0.0
    %251 = vmatpush1.msra.mxu0 0.0
    %252 = vmatprep.subr.mxu0 0.0
    %253 = vmatpush1.msra.mxu0 0.0
    %254 = vmatprep.subr.mxu0 0.0
    %255 = vmatpush1.msra.mxu0 0.0
    %256 = vmatprep.subr.mxu0 0.0
    %257 = vmatpush1.msra.mxu0 0.0
    %258 = vmatprep.subr.mxu0 0.0
    %259 = vmatpush1.msra.mxu0 0.0
    %260 = vmatprep.subr.mxu0 0.0
    %261 = vmatpush1.msra.mxu0 0.0
    %262 = vmatprep.subr.mxu0 0.0
    %263 = vmatpush1.msra.mxu0 0.0
    %264 = vmatprep.subr.mxu0 0.0
    %265 = vmatpush1.msra.mxu0 0.0
    %266 = vmatprep.subr.mxu0 0.0
    %267 = vmatpush1.msra.mxu0 0.0
    %268 = vmatprep.subr.mxu0 0.0
    %269 = vmatpush1.msra.mxu0 0.0
    %270 = vmatprep.subr.mxu0 0.0
    %271 = vmatpush1.msra.mxu0 0.0
    %272 = vmatprep.subr.mxu0 0.0
    %273 = vmatpush1.msra.mxu0 0.0
    %274 = vmatprep.subr.mxu0 0.0
    %275 = vmatpush1.msra.mxu0 0.0
    %276 = vmatprep.subr.mxu0 0.0
    %277 = vmatpush1.msra.mxu0 0.0
    %278 = vmatprep.subr.mxu0 0.0
    %279 = vmatpush1.msra.mxu0 0.0
    %280 = vmatprep.subr.mxu0 0.0
    %281 = vmatpush1.msra.mxu0 0.0
    %282 = vmatprep.mubr.f32.mxu0 0.0
    %283 = vmatmul.mubr.f32.gmra.mrb[0].mxu0 %v192
    %v284 = vpop.f32.mrb[0].mxu0
    %v285 = vadd.f32 0.0, %v284
    %v286 = vpop.f32.mrb[0].mxu0
    %287 = vdwg.mxu0
    %vm288 = vcmask 523264
    %v290 = vsel %vm288, %v191, 0
    %292 = vmatprep.subr.mxu0 0.0
    %293 = vmatpush1.msra.mxu0 %v194
    %294 = vmatprep.subr.mxu0 0.0
    %295 = vmatpush1.msra.mxu0 %v195
    %296 = vmatprep.subr.mxu0 0.0
    %297 = vmatpush1.msra.mxu0 %v196
    %298 = vmatprep.subr.mxu0 0.0
    %299 = vmatpush1.msra.mxu0 %v197
    %300 = vmatprep.subr.mxu0 0.0
    %301 = vmatpush1.msra.mxu0 %v198
    %302 = vmatprep.subr.mxu0 0.0
    %303 = vmatpush1.msra.mxu0 %v199
    %304 = vmatprep.subr.mxu0 0.0
    %305 = vmatpush1.msra.mxu0 %v200
    %306 = vmatprep.subr.mxu0 0.0
    %307 = vmatpush1.msra.mxu0 %v201
    %308 = vmatprep.subr.mxu0 0.0
    %309 = vmatpush1.msra.mxu0 0.0
    %310 = vmatprep.subr.mxu0 0.0
    %311 = vmatpush1.msra.mxu0 0.0
    %312 = vmatprep.subr.mxu0 0.0
    %313 = vmatpush1.msra.mxu0 0.0
    %314 = vmatprep.subr.mxu0 0.0
    %315 = vmatpush1.msra.mxu0 0.0
    %316 = vmatprep.subr.mxu0 0.0
    %317 = vmatpush1.msra.mxu0 0.0
    %318 = vmatprep.subr.mxu0 0.0
    %319 = vmatpush1.msra.mxu0 0.0
    %320 = vmatprep.subr.mxu0 0.0
    %321 = vmatpush1.msra.mxu0 0.0
    %322 = vmatprep.subr.mxu0 0.0
    %323 = vmatpush1.msra.mxu0 0.0
    %324 = vmatprep.subr.mxu0 0.0
    %325 = vmatpush1.msra.mxu0 0.0
    %326 = vmatprep.subr.mxu0 0.0
    %327 = vmatpush1.msra.mxu0 0.0
    %328 = vmatprep.subr.mxu0 0.0
    %329 = vmatpush1.msra.mxu0 0.0
    %330 = vmatprep.subr.mxu0 0.0
    %331 = vmatpush1.msra.mxu0 0.0
    %332 = vmatprep.subr.mxu0 0.0
    %333 = vmatpush1.msra.mxu0 0.0
    %334 = vmatprep.subr.mxu0 0.0
    %335 = vmatpush1.msra.mxu0 0.0
    %336 = vmatprep.subr.mxu0 0.0
    %337 = vmatpush1.msra.mxu0 0.0
    %338 = vmatprep.subr.mxu0 0.0
    %339 = vmatpush1.msra.mxu0 0.0
    %340 = vmatprep.subr.mxu0 0.0
    %341 = vmatpush1.msra.mxu0 0.0
    %342 = vmatprep.subr.mxu0 0.0
    %343 = vmatpush1.msra.mxu0 0.0
    %344 = vmatprep.subr.mxu0 0.0
    %345 = vmatpush1.msra.mxu0 0.0
    %346 = vmatprep.subr.mxu0 0.0
    %347 = vmatpush1.msra.mxu0 0.0
    %348 = vmatprep.subr.mxu0 0.0
    %349 = vmatpush1.msra.mxu0 0.0
    %350 = vmatprep.subr.mxu0 0.0
    %351 = vmatpush1.msra.mxu0 0.0
    %352 = vmatprep.subr.mxu0 0.0
    %353 = vmatpush1.msra.mxu0 0.0
    %354 = vmatprep.subr.mxu0 0.0
    %355 = vmatpush1.msra.mxu0 0.0
    %356 = vmatprep.mubr.f32.mxu0 0.0
    %357 = vmatmul.mubr.f32.gmra.mrb[0].mxu0 %v290
    %v358 = vpop.f32.mrb[0].mxu0
    %v359 = vadd.f32 %v285, %v358
    %v360 = vpop.f32.mrb[0].mxu0
    %361 = vdwg.mxu0
    %v362 = vld [vmem:[%s12] sm:$0x1]
    %v364 = vlaneseq
    %v365 = vshrl.u32 %v364, 7
    %v366 = vsub.s32 0, %v365
    %v367 = vrot.slane %v362, %v366
    %v369 = vadd.f32 %v359, %v367
    %s370 = scalar_lea.vmem [#allocation13], 64
    %v371 = vld [vmem:[%s370] sm:$0xff]
    %v372 = vld [vmem:[%s370 + $0x8] sm:$0xff]
    %v373 = vld [vmem:[%s370 + $0x10] sm:$0xff]
    %v374 = vld [vmem:[%s370 + $0x18] sm:$0xff]
    %v375 = vld [vmem:[%s370 + $0x20] sm:$0xff]
    %v376 = vld [vmem:[%s370 + $0x28] sm:$0xff]
    %v377 = vld [vmem:[%s370 + $0x30] sm:$0xff]
    %v378 = vld [vmem:[%s370 + $0x38] sm:$0xff]
    %s379 = scalar_lea.vmem %s11, 128
    %v380 = vld [vmem:[%s379] sm:$0xff]
    %v381 = vld [vmem:[%s379 + $0x8] sm:$0xff]
    %v382 = vld [vmem:[%s379 + $0x10] sm:$0xff]
    %v383 = vld [vmem:[%s379 + $0x18] sm:$0xff]
    %v384 = vld [vmem:[%s379 + $0x20] sm:$0xff]
    %v385 = vld [vmem:[%s379 + $0x28] sm:$0xff]
    %v386 = vld [vmem:[%s379 + $0x30] sm:$0xff]
    %v387 = vld [vmem:[%s379 + $0x38] sm:$0xff]
    %v388 = vld [vmem:[%s379 + $0x40] sm:$0xff]
    %v389 = vld [vmem:[%s379 + $0x48] sm:$0xff]
    %v390 = vld [vmem:[%s379 + $0x50] sm:$0xff]
    %v391 = vld [vmem:[%s379 + $0x58] sm:$0xff]
    %v392 = vld [vmem:[%s379 + $0x60] sm:$0xff]
    %v393 = vld [vmem:[%s379 + $0x68] sm:$0xff]
    %v394 = vld [vmem:[%s379 + $0x70] sm:$0xff]
    %v395 = vld [vmem:[%s379 + $0x78] sm:$0xff]
    %396 = vmatprep.subr.mxu0 0.0
    %397 = vmatpush1.msra.mxu0 %v380
    %398 = vmatprep.subr.mxu0 0.0
    %399 = vmatpush1.msra.mxu0 %v381
    %400 = vmatprep.subr.mxu0 0.0
    %401 = vmatpush1.msra.mxu0 %v382
    %402 = vmatprep.subr.mxu0 0.0
    %403 = vmatpush1.msra.mxu0 %v383
    %404 = vmatprep.subr.mxu0 0.0
    %405 = vmatpush1.msra.mxu0 %v384
    %406 = vmatprep.subr.mxu0 0.0
    %407 = vmatpush1.msra.mxu0 %v385
    %408 = vmatprep.subr.mxu0 0.0
    %409 = vmatpush1.msra.mxu0 %v386
    %410 = vmatprep.subr.mxu0 0.0
    %411 = vmatpush1.msra.mxu0 %v387
    %412 = vmatprep.subr.mxu0 0.0
    %413 = vmatpush1.msra.mxu0 %v388
    %414 = vmatprep.subr.mxu0 0.0
    %415 = vmatpush1.msra.mxu0 %v389
    %416 = vmatprep.subr.mxu0 0.0
    %417 = vmatpush1.msra.mxu0 %v390
    %418 = vmatprep.subr.mxu0 0.0
    %419 = vmatpush1.msra.mxu0 %v391
    %420 = vmatprep.subr.mxu0 0.0
    %421 = vmatpush1.msra.mxu0 %v392
    %422 = vmatprep.subr.mxu0 0.0
    %423 = vmatpush1.msra.mxu0 %v393
    %424 = vmatprep.subr.mxu0 0.0
    %425 = vmatpush1.msra.mxu0 %v394
    %426 = vmatprep.subr.mxu0 0.0
    %427 = vmatpush1.msra.mxu0 %v395
    %428 = vmatprep.subr.mxu0 0.0
    %429 = vmatpush1.msra.mxu0 0.0
    %430 = vmatprep.subr.mxu0 0.0
    %431 = vmatpush1.msra.mxu0 0.0
    %432 = vmatprep.subr.mxu0 0.0
    %433 = vmatpush1.msra.mxu0 0.0
    %434 = vmatprep.subr.mxu0 0.0
    %435 = vmatpush1.msra.mxu0 0.0
    %436 = vmatprep.subr.mxu0 0.0
    %437 = vmatpush1.msra.mxu0 0.0
    %438 = vmatprep.subr.mxu0 0.0
    %439 = vmatpush1.msra.mxu0 0.0
    %440 = vmatprep.subr.mxu0 0.0
    %441 = vmatpush1.msra.mxu0 0.0
    %442 = vmatprep.subr.mxu0 0.0
    %443 = vmatpush1.msra.mxu0 0.0
    %444 = vmatprep.subr.mxu0 0.0
    %445 = vmatpush1.msra.mxu0 0.0
    %446 = vmatprep.subr.mxu0 0.0
    %447 = vmatpush1.msra.mxu0 0.0
    %448 = vmatprep.subr.mxu0 0.0
    %449 = vmatpush1.msra.mxu0 0.0
    %450 = vmatprep.subr.mxu0 0.0
    %451 = vmatpush1.msra.mxu0 0.0
    %452 = vmatprep.subr.mxu0 0.0
    %453 = vmatpush1.msra.mxu0 0.0
    %454 = vmatprep.subr.mxu0 0.0
    %455 = vmatpush1.msra.mxu0 0.0
    %456 = vmatprep.subr.mxu0 0.0
    %457 = vmatpush1.msra.mxu0 0.0
    %458 = vmatprep.subr.mxu0 0.0
    %459 = vmatpush1.msra.mxu0 0.0
    %460 = vmatprep.mubr.f32.mxu0 0.0
    %461 = vmatmul.mubr.f32.gmra.mrb[0].mxu0 %v192
    %v462 = vpop.f32.mrb[0].mxu0
    %v463 = vadd.f32 0.0, %v462
    %v464 = vpop.f32.mrb[0].mxu0
    %465 = vdwg.mxu0
    %466 = vmatprep.subr.mxu0 0.0
    %467 = vmatpush1.msra.mxu0 %v371
    %468 = vmatprep.subr.mxu0 0.0
    %469 = vmatpush1.msra.mxu0 %v372
    %470 = vmatprep.subr.mxu0 0.0
    %471 = vmatpush1.msra.mxu0 %v373
    %472 = vmatprep.subr.mxu0 0.0
    %473 = vmatpush1.msra.mxu0 %v374
    %474 = vmatprep.subr.mxu0 0.0
    %475 = vmatpush1.msra.mxu0 %v375
    %476 = vmatprep.subr.mxu0 0.0
    %477 = vmatpush1.msra.mxu0 %v376
    %478 = vmatprep.subr.mxu0 0.0
    %479 = vmatpush1.msra.mxu0 %v377
    %480 = vmatprep.subr.mxu0 0.0
    %481 = vmatpush1.msra.mxu0 %v378
    %482 = vmatprep.subr.mxu0 0.0
    %483 = vmatpush1.msra.mxu0 0.0
    %484 = vmatprep.subr.mxu0 0.0
    %485 = vmatpush1.msra.mxu0 0.0
    %486 = vmatprep.subr.mxu0 0.0
    %487 = vmatpush1.msra.mxu0 0.0
    %488 = vmatprep.subr.mxu0 0.0
    %489 = vmatpush1.msra.mxu0 0.0
    %490 = vmatprep.subr.mxu0 0.0
    %491 = vmatpush1.msra.mxu0 0.0
    %492 = vmatprep.subr.mxu0 0.0
    %493 = vmatpush1.msra.mxu0 0.0
    %494 = vmatprep.subr.mxu0 0.0
    %495 = vmatpush1.msra.mxu0 0.0
    %496 = vmatprep.subr.mxu0 0.0
    %497 = vmatpush1.msra.mxu0 0.0
    %498 = vmatprep.subr.mxu0 0.0
    %499 = vmatpush1.msra.mxu0 0.0
    %500 = vmatprep.subr.mxu0 0.0
    %501 = vmatpush1.msra.mxu0 0.0
    %502 = vmatprep.subr.mxu0 0.0
    %503 = vmatpush1.msra.mxu0 0.0
    %504 = vmatprep.subr.mxu0 0.0
    %505 = vmatpush1.msra.mxu0 0.0
    %506 = vmatprep.subr.mxu0 0.0
    %507 = vmatpush1.msra.mxu0 0.0
    %508 = vmatprep.subr.mxu0 0.0
    %509 = vmatpush1.msra.mxu0 0.0
    %510 = vmatprep.subr.mxu0 0.0
    %511 = vmatpush1.msra.mxu0 0.0
    %512 = vmatprep.subr.mxu0 0.0
    %513 = vmatpush1.msra.mxu0 0.0
    %514 = vmatprep.subr.mxu0 0.0
    %515 = vmatpush1.msra.mxu0 0.0
    %516 = vmatprep.subr.mxu0 0.0
    %517 = vmatpush1.msra.mxu0 0.0
    %518 = vmatprep.subr.mxu0 0.0
    %519 = vmatpush1.msra.mxu0 0.0
    %520 = vmatprep.subr.mxu0 0.0
    %521 = vmatpush1.msra.mxu0 0.0
    %522 = vmatprep.subr.mxu0 0.0
    %523 = vmatpush1.msra.mxu0 0.0
    %524 = vmatprep.subr.mxu0 0.0
    %525 = vmatpush1.msra.mxu0 0.0
    %526 = vmatprep.subr.mxu0 0.0
    %527 = vmatpush1.msra.mxu0 0.0
    %528 = vmatprep.subr.mxu0 0.0
    %529 = vmatpush1.msra.mxu0 0.0
    %530 = vmatprep.mubr.f32.mxu0 0.0
    %531 = vmatmul.mubr.f32.gmra.mrb[0].mxu0 %v290
    %v532 = vpop.f32.mrb[0].mxu0
    %v533 = vadd.f32 %v463, %v532
    %v534 = vpop.f32.mrb[0].mxu0
    %535 = vdwg.mxu0
    %s536 = scalar_lea.vmem %s12, 1
    %v537 = vld [vmem:[%s536] sm:$0x1]
    %v539 = vlaneseq
    %v540 = vshrl.u32 %v539, 7
    %v541 = vsub.s32 0, %v540
    %v542 = vrot.slane %v537, %v541
    %v544 = vadd.f32 %v533, %v542
    %s545 = scalar_lea.vmem [#allocation13], 128
    %v546 = vld [vmem:[%s545] sm:$0xff]
    %v547 = vld [vmem:[%s545 + $0x8] sm:$0xff]
    %v548 = vld [vmem:[%s545 + $0x10] sm:$0xff]
    %v549 = vld [vmem:[%s545 + $0x18] sm:$0xff]
    %v550 = vld [vmem:[%s545 + $0x20] sm:$0xff]
    %v551 = vld [vmem:[%s545 + $0x28] sm:$0xff]
    %v552 = vld [vmem:[%s545 + $0x30] sm:$0xff]
    %v553 = vld [vmem:[%s545 + $0x38] sm:$0xff]
    %s554 = scalar_lea.vmem %s11, 256
    %v555 = vld [vmem:[%s554] sm:$0xff]
    %v556 = vld [vmem:[%s554 + $0x8] sm:$0xff]
    %v557 = vld [vmem:[%s554 + $0x10] sm:$0xff]
    %v558 = vld [vmem:[%s554 + $0x18] sm:$0xff]
    %v559 = vld [vmem:[%s554 + $0x20] sm:$0xff]
    %v560 = vld [vmem:[%s554 + $0x28] sm:$0xff]
    %v561 = vld [vmem:[%s554 + $0x30] sm:$0xff]
    %v562 = vld [vmem:[%s554 + $0x38] sm:$0xff]
    %v563 = vld [vmem:[%s554 + $0x40] sm:$0xff]
    %v564 = vld [vmem:[%s554 + $0x48] sm:$0xff]
    %v565 = vld [vmem:[%s554 + $0x50] sm:$0xff]
    %v566 = vld [vmem:[%s554 + $0x58] sm:$0xff]
    %v567 = vld [vmem:[%s554 + $0x60] sm:$0xff]
    %v568 = vld [vmem:[%s554 + $0x68] sm:$0xff]
    %v569 = vld [vmem:[%s554 + $0x70] sm:$0xff]
    %v570 = vld [vmem:[%s554 + $0x78] sm:$0xff]
    %571 = vmatprep.subr.mxu0 0.0
    %572 = vmatpush1.msra.mxu0 %v555
    %573 = vmatprep.subr.mxu0 0.0
    %574 = vmatpush1.msra.mxu0 %v556
    %575 = vmatprep.subr.mxu0 0.0
    %576 = vmatpush1.msra.mxu0 %v557
    %577 = vmatprep.subr.mxu0 0.0
    %578 = vmatpush1.msra.mxu0 %v558
    %579 = vmatprep.subr.mxu0 0.0
    %580 = vmatpush1.msra.mxu0 %v559
    %581 = vmatprep.subr.mxu0 0.0
    %582 = vmatpush1.msra.mxu0 %v560
    %583 = vmatprep.subr.mxu0 0.0
    %584 = vmatpush1.msra.mxu0 %v561
    %585 = vmatprep.subr.mxu0 0.0
    %586 = vmatpush1.msra.mxu0 %v562
    %587 = vmatprep.subr.mxu0 0.0
    %588 = vmatpush1.msra.mxu0 %v563
    %589 = vmatprep.subr.mxu0 0.0
    %590 = vmatpush1.msra.mxu0 %v564
    %591 = vmatprep.subr.mxu0 0.0
    %592 = vmatpush1.msra.mxu0 %v565
    %593 = vmatprep.subr.mxu0 0.0
    %594 = vmatpush1.msra.mxu0 %v566
    %595 = vmatprep.subr.mxu0 0.0
    %596 = vmatpush1.msra.mxu0 %v567
    %597 = vmatprep.subr.mxu0 0.0
    %598 = vmatpush1.msra.mxu0 %v568
    %599 = vmatprep.subr.mxu0 0.0
    %600 = vmatpush1.msra.mxu0 %v569
    %601 = vmatprep.subr.mxu0 0.0
    %602 = vmatpush1.msra.mxu0 %v570
    %603 = vmatprep.subr.mxu0 0.0
    %604 = vmatpush1.msra.mxu0 0.0
    %605 = vmatprep.subr.mxu0 0.0
    %606 = vmatpush1.msra.mxu0 0.0
    %607 = vmatprep.subr.mxu0 0.0
    %608 = vmatpush1.msra.mxu0 0.0
    %609 = vmatprep.subr.mxu0 0.0
    %610 = vmatpush1.msra.mxu0 0.0
    %611 = vmatprep.subr.mxu0 0.0
    %612 = vmatpush1.msra.mxu0 0.0
    %613 = vmatprep.subr.mxu0 0.0
    %614 = vmatpush1.msra.mxu0 0.0
    %615 = vmatprep.subr.mxu0 0.0
    %616 = vmatpush1.msra.mxu0 0.0
    %617 = vmatprep.subr.mxu0 0.0
    %618 = vmatpush1.msra.mxu0 0.0
    %619 = vmatprep.subr.mxu0 0.0
    %620 = vmatpush1.msra.mxu0 0.0
    %621 = vmatprep.subr.mxu0 0.0
    %622 = vmatpush1.msra.mxu0 0.0
    %623 = vmatprep.subr.mxu0 0.0
    %624 = vmatpush1.msra.mxu0 0.0
    %625 = vmatprep.subr.mxu0 0.0
    %626 = vmatpush1.msra.mxu0 0.0
    %627 = vmatprep.subr.mxu0 0.0
    %628 = vmatpush1.msra.mxu0 0.0
    %629 = vmatprep.subr.mxu0 0.0
    %630 = vmatpush1.msra.mxu0 0.0
    %631 = vmatprep.subr.mxu0 0.0
    %632 = vmatpush1.msra.mxu0 0.0
    %633 = vmatprep.subr.mxu0 0.0
    %634 = vmatpush1.msra.mxu0 0.0
    %635 = vmatprep.mubr.f32.mxu0 0.0
    %636 = vmatmul.mubr.f32.gmra.mrb[0].mxu0 %v192
    %v637 = vpop.f32.mrb[0].mxu0
    %v638 = vadd.f32 0.0, %v637
    %v639 = vpop.f32.mrb[0].mxu0
    %640 = vdwg.mxu0
    %641 = vmatprep.subr.mxu0 0.0
    %642 = vmatpush1.msra.mxu0 %v546
    %643 = vmatprep.subr.mxu0 0.0
    %644 = vmatpush1.msra.mxu0 %v547
    %645 = vmatprep.subr.mxu0 0.0
    %646 = vmatpush1.msra.mxu0 %v548
    %647 = vmatprep.subr.mxu0 0.0
    %648 = vmatpush1.msra.mxu0 %v549
    %649 = vmatprep.subr.mxu0 0.0
    %650 = vmatpush1.msra.mxu0 %v550
    %651 = vmatprep.subr.mxu0 0.0
    %652 = vmatpush1.msra.mxu0 %v551
    %653 = vmatprep.subr.mxu0 0.0
    %654 = vmatpush1.msra.mxu0 %v552
    %655 = vmatprep.subr.mxu0 0.0
    %656 = vmatpush1.msra.mxu0 %v553
    %657 = vmatprep.subr.mxu0 0.0
    %658 = vmatpush1.msra.mxu0 0.0
    %659 = vmatprep.subr.mxu0 0.0
    %660 = vmatpush1.msra.mxu0 0.0
    %661 = vmatprep.subr.mxu0 0.0
    %662 = vmatpush1.msra.mxu0 0.0
    %663 = vmatprep.subr.mxu0 0.0
    %664 = vmatpush1.msra.mxu0 0.0
    %665 = vmatprep.subr.mxu0 0.0
    %666 = vmatpush1.msra.mxu0 0.0
    %667 = vmatprep.subr.mxu0 0.0
    %668 = vmatpush1.msra.mxu0 0.0
    %669 = vmatprep.subr.mxu0 0.0
    %670 = vmatpush1.msra.mxu0 0.0
    %671 = vmatprep.subr.mxu0 0.0
    %672 = vmatpush1.msra.mxu0 0.0
    %673 = vmatprep.subr.mxu0 0.0
    %674 = vmatpush1.msra.mxu0 0.0
    %675 = vmatprep.subr.mxu0 0.0
    %676 = vmatpush1.msra.mxu0 0.0
    %677 = vmatprep.subr.mxu0 0.0
    %678 = vmatpush1.msra.mxu0 0.0
    %679 = vmatprep.subr.mxu0 0.0
    %680 = vmatpush1.msra.mxu0 0.0
    %681 = vmatprep.subr.mxu0 0.0
    %682 = vmatpush1.msra.mxu0 0.0
    %683 = vmatprep.subr.mxu0 0.0
    %684 = vmatpush1.msra.mxu0 0.0
    %685 = vmatprep.subr.mxu0 0.0
    %686 = vmatpush1.msra.mxu0 0.0
    %687 = vmatprep.subr.mxu0 0.0
    %688 = vmatpush1.msra.mxu0 0.0
    %689 = vmatprep.subr.mxu0 0.0
    %690 = vmatpush1.msra.mxu0 0.0
    %691 = vmatprep.subr.mxu0 0.0
    %692 = vmatpush1.msra.mxu0 0.0
    %693 = vmatprep.subr.mxu0 0.0
    %694 = vmatpush1.msra.mxu0 0.0
    %695 = vmatprep.subr.mxu0 0.0
    %696 = vmatpush1.msra.mxu0 0.0
    %697 = vmatprep.subr.mxu0 0.0
    %698 = vmatpush1.msra.mxu0 0.0
    %699 = vmatprep.subr.mxu0 0.0
    %700 = vmatpush1.msra.mxu0 0.0
    %701 = vmatprep.subr.mxu0 0.0
    %702 = vmatpush1.msra.mxu0 0.0
    %703 = vmatprep.subr.mxu0 0.0
    %704 = vmatpush1.msra.mxu0 0.0
    %705 = vmatprep.mubr.f32.mxu0 0.0
    %706 = vmatmul.mubr.f32.gmra.mrb[0].mxu0 %v290
    %v707 = vpop.f32.mrb[0].mxu0
    %v708 = vadd.f32 %v638, %v707
    %v709 = vpop.f32.mrb[0].mxu0
    %710 = vdwg.mxu0
    %s711 = scalar_lea.vmem %s12, 2
    %v712 = vld [vmem:[%s711] sm:$0x1]
    %v714 = vlaneseq
    %v715 = vshrl.u32 %v714, 7
    %v716 = vsub.s32 0, %v715
    %v717 = vrot.slane %v712, %v716
    %v719 = vadd.f32 %v708, %v717
    %s720 = scalar_lea.vmem [#allocation13], 192
    %v721 = vld [vmem:[%s720] sm:$0xff]
    %v722 = vld [vmem:[%s720 + $0x8] sm:$0xff]
    %v723 = vld [vmem:[%s720 + $0x10] sm:$0xff]
    %v724 = vld [vmem:[%s720 + $0x18] sm:$0xff]
    %v725 = vld [vmem:[%s720 + $0x20] sm:$0xff]
    %v726 = vld [vmem:[%s720 + $0x28] sm:$0xff]
    %v727 = vld [vmem:[%s720 + $0x30] sm:$0xff]
    %v728 = vld [vmem:[%s720 + $0x38] sm:$0xff]
    %s729 = scalar_lea.vmem %s11, 384
    %v730 = vld [vmem:[%s729] sm:$0xff]
    %v731 = vld [vmem:[%s729 + $0x8] sm:$0xff]
    %v732 = vld [vmem:[%s729 + $0x10] sm:$0xff]
    %v733 = vld [vmem:[%s729 + $0x18] sm:$0xff]
    %v734 = vld [vmem:[%s729 + $0x20] sm:$0xff]
    %v735 = vld [vmem:[%s729 + $0x28] sm:$0xff]
    %v736 = vld [vmem:[%s729 + $0x30] sm:$0xff]
    %v737 = vld [vmem:[%s729 + $0x38] sm:$0xff]
    %v738 = vld [vmem:[%s729 + $0x40] sm:$0xff]
    %v739 = vld [vmem:[%s729 + $0x48] sm:$0xff]
    %v740 = vld [vmem:[%s729 + $0x50] sm:$0xff]
    %v741 = vld [vmem:[%s729 + $0x58] sm:$0xff]
    %v742 = vld [vmem:[%s729 + $0x60] sm:$0xff]
    %v743 = vld [vmem:[%s729 + $0x68] sm:$0xff]
    %v744 = vld [vmem:[%s729 + $0x70] sm:$0xff]
    %v745 = vld [vmem:[%s729 + $0x78] sm:$0xff]
    %746 = vmatprep.subr.mxu0 0.0
    %747 = vmatpush1.msra.mxu0 %v730
    %748 = vmatprep.subr.mxu0 0.0
    %749 = vmatpush1.msra.mxu0 %v731
    %750 = vmatprep.subr.mxu0 0.0
    %751 = vmatpush1.msra.mxu0 %v732
    %752 = vmatprep.subr.mxu0 0.0
    %753 = vmatpush1.msra.mxu0 %v733
    %754 = vmatprep.subr.mxu0 0.0
    %755 = vmatpush1.msra.mxu0 %v734
    %756 = vmatprep.subr.mxu0 0.0
    %757 = vmatpush1.msra.mxu0 %v735
    %758 = vmatprep.subr.mxu0 0.0
    %759 = vmatpush1.msra.mxu0 %v736
    %760 = vmatprep.subr.mxu0 0.0
    %761 = vmatpush1.msra.mxu0 %v737
    %762 = vmatprep.subr.mxu0 0.0
    %763 = vmatpush1.msra.mxu0 %v738
    %764 = vmatprep.subr.mxu0 0.0
    %765 = vmatpush1.msra.mxu0 %v739
    %766 = vmatprep.subr.mxu0 0.0
    %767 = vmatpush1.msra.mxu0 %v740
    %768 = vmatprep.subr.mxu0 0.0
    %769 = vmatpush1.msra.mxu0 %v741
    %770 = vmatprep.subr.mxu0 0.0
    %771 = vmatpush1.msra.mxu0 %v742
    %772 = vmatprep.subr.mxu0 0.0
    %773 = vmatpush1.msra.mxu0 %v743
    %774 = vmatprep.subr.mxu0 0.0
    %775 = vmatpush1.msra.mxu0 %v744
    %776 = vmatprep.subr.mxu0 0.0
    %777 = vmatpush1.msra.mxu0 %v745
    %778 = vmatprep.subr.mxu0 0.0
    %779 = vmatpush1.msra.mxu0 0.0
    %780 = vmatprep.subr.mxu0 0.0
    %781 = vmatpush1.msra.mxu0 0.0
    %782 = vmatprep.subr.mxu0 0.0
    %783 = vmatpush1.msra.mxu0 0.0
    %784 = vmatprep.subr.mxu0 0.0
    %785 = vmatpush1.msra.mxu0 0.0
    %786 = vmatprep.subr.mxu0 0.0
    %787 = vmatpush1.msra.mxu0 0.0
    %788 = vmatprep.subr.mxu0 0.0
    %789 = vmatpush1.msra.mxu0 0.0
    %790 = vmatprep.subr.mxu0 0.0
    %791 = vmatpush1.msra.mxu0 0.0
    %792 = vmatprep.subr.mxu0 0.0
    %793 = vmatpush1.msra.mxu0 0.0
    %794 = vmatprep.subr.mxu0 0.0
    %795 = vmatpush1.msra.mxu0 0.0
    %796 = vmatprep.subr.mxu0 0.0
    %797 = vmatpush1.msra.mxu0 0.0
    %798 = vmatprep.subr.mxu0 0.0
    %799 = vmatpush1.msra.mxu0 0.0
    %800 = vmatprep.subr.mxu0 0.0
    %801 = vmatpush1.msra.mxu0 0.0
    %802 = vmatprep.subr.mxu0 0.0
    %803 = vmatpush1.msra.mxu0 0.0
    %804 = vmatprep.subr.mxu0 0.0
    %805 = vmatpush1.msra.mxu0 0.0
    %806 = vmatprep.subr.mxu0 0.0
    %807 = vmatpush1.msra.mxu0 0.0
    %808 = vmatprep.subr.mxu0 0.0
    %809 = vmatpush1.msra.mxu0 0.0
    %810 = vmatprep.mubr.f32.mxu0 0.0
    %811 = vmatmul.mubr.f32.gmra.mrb[0].mxu0 %v192
    %v812 = vpop.f32.mrb[0].mxu0
    %v813 = vadd.f32 0.0, %v812
    %v814 = vpop.f32.mrb[0].mxu0
    %815 = vdwg.mxu0
    %816 = vmatprep.subr.mxu0 0.0
    %817 = vmatpush1.msra.mxu0 %v721
    %818 = vmatprep.subr.mxu0 0.0
    %819 = vmatpush1.msra.mxu0 %v722
    %820 = vmatprep.subr.mxu0 0.0
    %821 = vmatpush1.msra.mxu0 %v723
    %822 = vmatprep.subr.mxu0 0.0
    %823 = vmatpush1.msra.mxu0 %v724
    %824 = vmatprep.subr.mxu0 0.0
    %825 = vmatpush1.msra.mxu0 %v725
    %826 = vmatprep.subr.mxu0 0.0
    %827 = vmatpush1.msra.mxu0 %v726
    %828 = vmatprep.subr.mxu0 0.0
    %829 = vmatpush1.msra.mxu0 %v727
    %830 = vmatprep.subr.mxu0 0.0
    %831 = vmatpush1.msra.mxu0 %v728
    %832 = vmatprep.subr.mxu0 0.0
    %833 = vmatpush1.msra.mxu0 0.0
    %834 = vmatprep.subr.mxu0 0.0
    %835 = vmatpush1.msra.mxu0 0.0
    %836 = vmatprep.subr.mxu0 0.0
    %837 = vmatpush1.msra.mxu0 0.0
    %838 = vmatprep.subr.mxu0 0.0
    %839 = vmatpush1.msra.mxu0 0.0
    %840 = vmatprep.subr.mxu0 0.0
    %841 = vmatpush1.msra.mxu0 0.0
    %842 = vmatprep.subr.mxu0 0.0
    %843 = vmatpush1.msra.mxu0 0.0
    %844 = vmatprep.subr.mxu0 0.0
    %845 = vmatpush1.msra.mxu0 0.0
    %846 = vmatprep.subr.mxu0 0.0
    %847 = vmatpush1.msra.mxu0 0.0
    %848 = vmatprep.subr.mxu0 0.0
    %849 = vmatpush1.msra.mxu0 0.0
    %850 = vmatprep.subr.mxu0 0.0
    %851 = vmatpush1.msra.mxu0 0.0
    %852 = vmatprep.subr.mxu0 0.0
    %853 = vmatpush1.msra.mxu0 0.0
    %854 = vmatprep.subr.mxu0 0.0
    %855 = vmatpush1.msra.mxu0 0.0
    %856 = vmatprep.subr.mxu0 0.0
    %857 = vmatpush1.msra.mxu0 0.0
    %858 = vmatprep.subr.mxu0 0.0
    %859 = vmatpush1.msra.mxu0 0.0
    %860 = vmatprep.subr.mxu0 0.0
    %861 = vmatpush1.msra.mxu0 0.0
    %862 = vmatprep.subr.mxu0 0.0
    %863 = vmatpush1.msra.mxu0 0.0
    %864 = vmatprep.subr.mxu0 0.0
    %865 = vmatpush1.msra.mxu0 0.0
    %866 = vmatprep.subr.mxu0 0.0
    %867 = vmatpush1.msra.mxu0 0.0
    %868 = vmatprep.subr.mxu0 0.0
    %869 = vmatpush1.msra.mxu0 0.0
    %870 = vmatprep.subr.mxu0 0.0
    %871 = vmatpush1.msra.mxu0 0.0
    %872 = vmatprep.subr.mxu0 0.0
    %873 = vmatpush1.msra.mxu0 0.0
    %874 = vmatprep.subr.mxu0 0.0
    %875 = vmatpush1.msra.mxu0 0.0
    %876 = vmatprep.subr.mxu0 0.0
    %877 = vmatpush1.msra.mxu0 0.0
    %878 = vmatprep.subr.mxu0 0.0
    %879 = vmatpush1.msra.mxu0 0.0
    %880 = vmatprep.mubr.f32.mxu0 0.0
    %881 = vmatmul.mubr.f32.gmra.mrb[0].mxu0 %v290
    %v882 = vpop.f32.mrb[0].mxu0
    %v883 = vadd.f32 %v813, %v882
    %v884 = vpop.f32.mrb[0].mxu0
    %885 = vdwg.mxu0
    %s886 = scalar_lea.vmem %s12, 3
    %v887 = vld [vmem:[%s886] sm:$0x1]
    %v889 = vlaneseq
    %v890 = vshrl.u32 %v889, 7
    %v891 = vsub.s32 0, %v890
    %v892 = vrot.slane %v887, %v891
    %v894 = vadd.f32 %v883, %v892
    %v895 = vxor.u32 %v369, 2147483648
    %v896 = vmul.f32 %v895, 1.442695
    %v897 = vpow.pop %v896
    %v898 = vadd.f32 %v897, 1.0
    %v899 = vrcp.pop %v898
    %v900 = vmul.f32 1.0, %v899
    %v901 = vxor.u32 %v544, 2147483648
    %v902 = vmul.f32 %v901, 1.442695
    %v903 = vpow.pop %v902
    %v904 = vadd.f32 %v903, 1.0
    %v905 = vrcp.pop %v904
    %v906 = vmul.f32 1.0, %v905
    %v907 = vtanh.pop %v719
    %v908 = vxor.u32 %v894, 2147483648
    %v909 = vmul.f32 %v908, 1.442695
    %v910 = vpow.pop %v909
    %v911 = vadd.f32 %v910, 1.0
    %v912 = vrcp.pop %v911
    %v913 = vmul.f32 1.0, %v912
    %v914 = vmul.f32 %v906, %v193
    %v915 = vmul.f32 %v900, %v907
    %v916 = vadd.f32 %v914, %v915
    %v917 = vtanh.pop %v916
    %v918 = vmul.f32 %v913, %v917
    %919 = vst [vmem:[#allocation19] sm:$0xff] %v918
    %920 = vst [vmem:[#allocation20] sm:$0xff] %v916
    %s921 = scalar_lea.vmem %s1, 8
    %v922 = vld [vmem:[%s921] sm:$0xff]
    %s923 = scalar_lea.vmem %s2, 8
    %v924 = vld [vmem:[%s923] sm:$0xff]
    %v925 = vld [vmem:[#allocation14] sm:$0xff]
    %v926 = vld [vmem:[#allocation14 + $0x8] sm:$0xff]
    %v927 = vld [vmem:[#allocation14 + $0x10] sm:$0xff]
    %v928 = vld [vmem:[#allocation14 + $0x18] sm:$0xff]
    %v929 = vld [vmem:[#allocation14 + $0x20] sm:$0xff]
    %v930 = vld [vmem:[#allocation14 + $0x28] sm:$0xff]
    %v931 = vld [vmem:[#allocation14 + $0x30] sm:$0xff]
    %v932 = vld [vmem:[#allocation14 + $0x38] sm:$0xff]
    %v933 = vld [vmem:[#allocation14 + $0x40] sm:$0xff]
    %v934 = vld [vmem:[#allocation14 + $0x48] sm:$0xff]
    %v935 = vld [vmem:[#allocation14 + $0x50] sm:$0xff]
    %v936 = vld [vmem:[#allocation14 + $0x58] sm:$0xff]
    %v937 = vld [vmem:[#allocation14 + $0x60] sm:$0xff]
    %v938 = vld [vmem:[#allocation14 + $0x68] sm:$0xff]
    %v939 = vld [vmem:[#allocation14 + $0x70] sm:$0xff]
    %v940 = vld [vmem:[#allocation14 + $0x78] sm:$0xff]
    %v941 = vld [vmem:[#allocation16] sm:$0xff]
    %v942 = vld [vmem:[#allocation16 + $0x8] sm:$0xff]
    %v943 = vld [vmem:[#allocation16 + $0x10] sm:$0xff]
    %v944 = vld [vmem:[#allocation16 + $0x18] sm:$0xff]
    %v945 = vld [vmem:[#allocation16 + $0x20] sm:$0xff]
    %v946 = vld [vmem:[#allocation16 + $0x28] sm:$0xff]
    %v947 = vld [vmem:[#allocation16 + $0x30] sm:$0xff]
    %v948 = vld [vmem:[#allocation16 + $0x38] sm:$0xff]
    %v949 = vld [vmem:[#allocation16 + $0x40] sm:$0xff]
    %v950 = vld [vmem:[#allocation16 + $0x48] sm:$0xff]
    %v951 = vld [vmem:[#allocation16 + $0x50] sm:$0xff]
    %v952 = vld [vmem:[#allocation16 + $0x58] sm:$0xff]
    %v953 = vld [vmem:[#allocation16 + $0x60] sm:$0xff]
    %v954 = vld [vmem:[#allocation16 + $0x68] sm:$0xff]
    %v955 = vld [vmem:[#allocation16 + $0x70] sm:$0xff]
    %v956 = vld [vmem:[#allocation16 + $0x78] sm:$0xff]
    %957 = vmatprep.subr.mxu0 0.0
    %958 = vmatpush1.msra.mxu0 %v941
    %959 = vmatprep.subr.mxu0 0.0
    %960 = vmatpush1.msra.mxu0 %v942
    %961 = vmatprep.subr.mxu0 0.0
    %962 = vmatpush1.msra.mxu0 %v943
    %963 = vmatprep.subr.mxu0 0.0
    %964 = vmatpush1.msra.mxu0 %v944
    %965 = vmatprep.subr.mxu0 0.0
    %966 = vmatpush1.msra.mxu0 %v945
    %967 = vmatprep.subr.mxu0 0.0
    %968 = vmatpush1.msra.mxu0 %v946
    %969 = vmatprep.subr.mxu0 0.0
    %970 = vmatpush1.msra.mxu0 %v947
    %971 = vmatprep.subr.mxu0 0.0
    %972 = vmatpush1.msra.mxu0 %v948
    %973 = vmatprep.subr.mxu0 0.0
    %974 = vmatpush1.msra.mxu0 %v949
    %975 = vmatprep.subr.mxu0 0.0
    %976 = vmatpush1.msra.mxu0 %v950
    %977 = vmatprep.subr.mxu0 0.0
    %978 = vmatpush1.msra.mxu0 %v951
    %979 = vmatprep.subr.mxu0 0.0
    %980 = vmatpush1.msra.mxu0 %v952
    %981 = vmatprep.subr.mxu0 0.0
    %982 = vmatpush1.msra.mxu0 %v953
    %983 = vmatprep.subr.mxu0 0.0
    %984 = vmatpush1.msra.mxu0 %v954
    %985 = vmatprep.subr.mxu0 0.0
    %986 = vmatpush1.msra.mxu0 %v955
    %987 = vmatprep.subr.mxu0 0.0
    %988 = vmatpush1.msra.mxu0 %v956
    %989 = vmatprep.subr.mxu0 0.0
    %990 = vmatpush1.msra.mxu0 0.0
    %991 = vmatprep.subr.mxu0 0.0
    %992 = vmatpush1.msra.mxu0 0.0
    %993 = vmatprep.subr.mxu0 0.0
    %994 = vmatpush1.msra.mxu0 0.0
    %995 = vmatprep.subr.mxu0 0.0
    %996 = vmatpush1.msra.mxu0 0.0
    %997 = vmatprep.subr.mxu0 0.0
    %998 = vmatpush1.msra.mxu0 0.0
    %999 = vmatprep.subr.mxu0 0.0
    %1000 = vmatpush1.msra.mxu0 0.0
    %1001 = vmatprep.subr.mxu0 0.0
    %1002 = vmatpush1.msra.mxu0 0.0
    %1003 = vmatprep.subr.mxu0 0.0
    %1004 = vmatpush1.msra.mxu0 0.0
    %1005 = vmatprep.subr.mxu0 0.0
    %1006 = vmatpush1.msra.mxu0 0.0
    %1007 = vmatprep.subr.mxu0 0.0
    %1008 = vmatpush1.msra.mxu0 0.0
    %1009 = vmatprep.subr.mxu0 0.0
    %1010 = vmatpush1.msra.mxu0 0.0
    %1011 = vmatprep.subr.mxu0 0.0
    %1012 = vmatpush1.msra.mxu0 0.0
    %1013 = vmatprep.subr.mxu0 0.0
    %1014 = vmatpush1.msra.mxu0 0.0
    %1015 = vmatprep.subr.mxu0 0.0
    %1016 = vmatpush1.msra.mxu0 0.0
    %1017 = vmatprep.subr.mxu0 0.0
    %1018 = vmatpush1.msra.mxu0 0.0
    %1019 = vmatprep.subr.mxu0 0.0
    %1020 = vmatpush1.msra.mxu0 0.0
    %1021 = vmatprep.mubr.f32.mxu0 0.0
    %1022 = vmatmul.mubr.f32.gmra.mrb[0].mxu0 %v922
    %v1023 = vpop.f32.mrb[0].mxu0
    %v1024 = vadd.f32 0.0, %v1023
    %v1025 = vpop.f32.mrb[0].mxu0
    %1026 = vdwg.mxu0
    %1027 = vmatprep.subr.mxu0 0.0
    %1028 = vmatpush1.msra.mxu0 %v925
    %1029 = vmatprep.subr.mxu0 0.0
    %1030 = vmatpush1.msra.mxu0 %v926
    %1031 = vmatprep.subr.mxu0 0.0
    %1032 = vmatpush1.msra.mxu0 %v927
    %1033 = vmatprep.subr.mxu0 0.0
    %1034 = vmatpush1.msra.mxu0 %v928
    %1035 = vmatprep.subr.mxu0 0.0
    %1036 = vmatpush1.msra.mxu0 %v929
    %1037 = vmatprep.subr.mxu0 0.0
    %1038 = vmatpush1.msra.mxu0 %v930
    %1039 = vmatprep.subr.mxu0 0.0
    %1040 = vmatpush1.msra.mxu0 %v931
    %1041 = vmatprep.subr.mxu0 0.0
    %1042 = vmatpush1.msra.mxu0 %v932
    %1043 = vmatprep.subr.mxu0 0.0
    %1044 = vmatpush1.msra.mxu0 %v933
    %1045 = vmatprep.subr.mxu0 0.0
    %1046 = vmatpush1.msra.mxu0 %v934
    %1047 = vmatprep.subr.mxu0 0.0
    %1048 = vmatpush1.msra.mxu0 %v935
    %1049 = vmatprep.subr.mxu0 0.0
    %1050 = vmatpush1.msra.mxu0 %v936
    %1051 = vmatprep.subr.mxu0 0.0
    %1052 = vmatpush1.msra.mxu0 %v937
    %1053 = vmatprep.subr.mxu0 0.0
    %1054 = vmatpush1.msra.mxu0 %v938
    %1055 = vmatprep.subr.mxu0 0.0
    %1056 = vmatpush1.msra.mxu0 %v939
    %1057 = vmatprep.subr.mxu0 0.0
    %1058 = vmatpush1.msra.mxu0 %v940
    %1059 = vmatprep.subr.mxu0 0.0
    %1060 = vmatpush1.msra.mxu0 0.0
    %1061 = vmatprep.subr.mxu0 0.0
    %1062 = vmatpush1.msra.mxu0 0.0
    %1063 = vmatprep.subr.mxu0 0.0
    %1064 = vmatpush1.msra.mxu0 0.0
    %1065 = vmatprep.subr.mxu0 0.0
    %1066 = vmatpush1.msra.mxu0 0.0
    %1067 = vmatprep.subr.mxu0 0.0
    %1068 = vmatpush1.msra.mxu0 0.0
    %1069 = vmatprep.subr.mxu0 0.0
    %1070 = vmatpush1.msra.mxu0 0.0
    %1071 = vmatprep.subr.mxu0 0.0
    %1072 = vmatpush1.msra.mxu0 0.0
    %1073 = vmatprep.subr.mxu0 0.0
    %1074 = vmatpush1.msra.mxu0 0.0
    %1075 = vmatprep.subr.mxu0 0.0
    %1076 = vmatpush1.msra.mxu0 0.0
    %1077 = vmatprep.subr.mxu0 0.0
    %1078 = vmatpush1.msra.mxu0 0.0
    %1079 = vmatprep.subr.mxu0 0.0
    %1080 = vmatpush1.msra.mxu0 0.0
    %1081 = vmatprep.subr.mxu0 0.0
    %1082 = vmatpush1.msra.mxu0 0.0
    %1083 = vmatprep.subr.mxu0 0.0
    %1084 = vmatpush1.msra.mxu0 0.0
    %1085 = vmatprep.subr.mxu0 0.0
    %1086 = vmatpush1.msra.mxu0 0.0
    %1087 = vmatprep.subr.mxu0 0.0
    %1088 = vmatpush1.msra.mxu0 0.0
    %1089 = vmatprep.subr.mxu0 0.0
    %1090 = vmatpush1.msra.mxu0 0.0
    %1091 = vmatprep.mubr.f32.mxu0 0.0
    %1092 = vmatmul.mubr.f32.gmra.mrb[0].mxu0 %v918
    %v1093 = vpop.f32.mrb[0].mxu0
    %v1094 = vadd.f32 %v1024, %v1093
    %v1095 = vpop.f32.mrb[0].mxu0
    %1096 = vdwg.mxu0
    %v1097 = vld [vmem:[#allocation17] sm:$0x1]
    %v1099 = vlaneseq
    %v1100 = vshrl.u32 %v1099, 7
    %v1101 = vsub.s32 0, %v1100
    %v1102 = vrot.slane %v1097, %v1101
    %v1104 = vadd.f32 %v1094, %v1102
    %s1105 = scalar_lea.vmem [#allocation14], 128
    %v1106 = vld [vmem:[%s1105] sm:$0xff]
    %v1107 = vld [vmem:[%s1105 + $0x8] sm:$0xff]
    %v1108 = vld [vmem:[%s1105 + $0x10] sm:$0xff]
    %v1109 = vld [vmem:[%s1105 + $0x18] sm:$0xff]
    %v1110 = vld [vmem:[%s1105 + $0x20] sm:$0xff]
    %v1111 = vld [vmem:[%s1105 + $0x28] sm:$0xff]
    %v1112 = vld [vmem:[%s1105 + $0x30] sm:$0xff]
    %v1113 = vld [vmem:[%s1105 + $0x38] sm:$0xff]
    %v1114 = vld [vmem:[%s1105 + $0x40] sm:$0xff]
    %v1115 = vld [vmem:[%s1105 + $0x48] sm:$0xff]
    %v1116 = vld [vmem:[%s1105 + $0x50] sm:$0xff]
    %v1117 = vld [vmem:[%s1105 + $0x58] sm:$0xff]
    %v1118 = vld [vmem:[%s1105 + $0x60] sm:$0xff]
    %v1119 = vld [vmem:[%s1105 + $0x68] sm:$0xff]
    %v1120 = vld [vmem:[%s1105 + $0x70] sm:$0xff]
    %v1121 = vld [vmem:[%s1105 + $0x78] sm:$0xff]
    %s1122 = scalar_lea.vmem [#allocation16], 128
    %v1123 = vld [vmem:[%s1122] sm:$0xff]
    %v1124 = vld [vmem:[%s1122 + $0x8] sm:$0xff]
    %v1125 = vld [vmem:[%s1122 + $0x10] sm:$0xff]
    %v1126 = vld [vmem:[%s1122 + $0x18] sm:$0xff]
    %v1127 = vld [vmem:[%s1122 + $0x20] sm:$0xff]
    %v1128 = vld [vmem:[%s1122 + $0x28] sm:$0xff]
    %v1129 = vld [vmem:[%s1122 + $0x30] sm:$0xff]
    %v1130 = vld [vmem:[%s1122 + $0x38] sm:$0xff]
    %v1131 = vld [vmem:[%s1122 + $0x40] sm:$0xff]
    %v1132 = vld [vmem:[%s1122 + $0x48] sm:$0xff]
    %v1133 = vld [vmem:[%s1122 + $0x50] sm:$0xff]
    %v1134 = vld [vmem:[%s1122 + $0x58] sm:$0xff]
    %v1135 = vld [vmem:[%s1122 + $0x60] sm:$0xff]
    %v1136 = vld [vmem:[%s1122 + $0x68] sm:$0xff]
    %v1137 = vld [vmem:[%s1122 + $0x70] sm:$0xff]
    %v1138 = vld [vmem:[%s1122 + $0x78] sm:$0xff]
    %1139 = vmatprep.subr.mxu0 0.0
    %1140 = vmatpush1.msra.mxu0 %v1123
    %1141 = vmatprep.subr.mxu0 0.0
    %1142 = vmatpush1.msra.mxu0 %v1124
    %1143 = vmatprep.subr.mxu0 0.0
    %1144 = vmatpush1.msra.mxu0 %v1125
    %1145 = vmatprep.subr.mxu0 0.0
    %1146 = vmatpush1.msra.mxu0 %v1126
    %1147 = vmatprep.subr.mxu0 0.0
    %1148 = vmatpush1.msra.mxu0 %v1127
    %1149 = vmatprep.subr.mxu0 0.0
    %1150 = vmatpush1.msra.mxu0 %v1128
    %1151 = vmatprep.subr.mxu0 0.0
    %1152 = vmatpush1.msra.mxu0 %v1129
    %1153 = vmatprep.subr.mxu0 0.0
    %1154 = vmatpush1.msra.mxu0 %v1130
    %1155 = vmatprep.subr.mxu0 0.0
    %1156 = vmatpush1.msra.mxu0 %v1131
    %1157 = vmatprep.subr.mxu0 0.0
    %1158 = vmatpush1.msra.mxu0 %v1132
    %1159 = vmatprep.subr.mxu0 0.0
    %1160 = vmatpush1.msra.mxu0 %v1133
    %1161 = vmatprep.subr.mxu0 0.0
    %1162 = vmatpush1.msra.mxu0 %v1134
    %1163 = vmatprep.subr.mxu0 0.0
    %1164 = vmatpush1.msra.mxu0 %v1135
    %1165 = vmatprep.subr.mxu0 0.0
    %1166 = vmatpush1.msra.mxu0 %v1136
    %1167 = vmatprep.subr.mxu0 0.0
    %1168 = vmatpush1.msra.mxu0 %v1137
    %1169 = vmatprep.subr.mxu0 0.0
    %1170 = vmatpush1.msra.mxu0 %v1138
    %1171 = vmatprep.subr.mxu0 0.0
    %1172 = vmatpush1.msra.mxu0 0.0
    %1173 = vmatprep.subr.mxu0 0.0
    %1174 = vmatpush1.msra.mxu0 0.0
    %1175 = vmatprep.subr.mxu0 0.0
    %1176 = vmatpush1.msra.mxu0 0.0
    %1177 = vmatprep.subr.mxu0 0.0
    %1178 = vmatpush1.msra.mxu0 0.0
    %1179 = vmatprep.subr.mxu0 0.0
    %1180 = vmatpush1.msra.mxu0 0.0
    %1181 = vmatprep.subr.mxu0 0.0
    %1182 = vmatpush1.msra.mxu0 0.0
    %1183 = vmatprep.subr.mxu0 0.0
    %1184 = vmatpush1.msra.mxu0 0.0
    %1185 = vmatprep.subr.mxu0 0.0
    %1186 = vmatpush1.msra.mxu0 0.0
    %1187 = vmatprep.subr.mxu0 0.0
    %1188 = vmatpush1.msra.mxu0 0.0
    %1189 = vmatprep.subr.mxu0 0.0
    %1190 = vmatpush1.msra.mxu0 0.0
    %1191 = vmatprep.subr.mxu0 0.0
    %1192 = vmatpush1.msra.mxu0 0.0
    %1193 = vmatprep.subr.mxu0 0.0
    %1194 = vmatpush1.msra.mxu0 0.0
    %1195 = vmatprep.subr.mxu0 0.0
    %1196 = vmatpush1.msra.mxu0 0.0
    %1197 = vmatprep.subr.mxu0 0.0
    %1198 = vmatpush1.msra.mxu0 0.0
    %1199 = vmatprep.subr.mxu0 0.0
    %1200 = vmatpush1.msra.mxu0 0.0
    %1201 = vmatprep.subr.mxu0 0.0
    %1202 = vmatpush1.msra.mxu0 0.0
    %1203 = vmatprep.mubr.f32.mxu0 0.0
    %1204 = vmatmul.mubr.f32.gmra.mrb[0].mxu0 %v922
    %v1205 = vpop.f32.mrb[0].mxu0
    %v1206 = vadd.f32 0.0, %v1205
    %v1207 = vpop.f32.mrb[0].mxu0
    %1208 = vdwg.mxu0
    %1209 = vmatprep.subr.mxu0 0.0
    %1210 = vmatpush1.msra.mxu0 %v1106
    %1211 = vmatprep.subr.mxu0 0.0
    %1212 = vmatpush1.msra.mxu0 %v1107
    %1213 = vmatprep.subr.mxu0 0.0
    %1214 = vmatpush1.msra.mxu0 %v1108
    %1215 = vmatprep.subr.mxu0 0.0
    %1216 = vmatpush1.msra.mxu0 %v1109
    %1217 = vmatprep.subr.mxu0 0.0
    %1218 = vmatpush1.msra.mxu0 %v1110
    %1219 = vmatprep.subr.mxu0 0.0
    %1220 = vmatpush1.msra.mxu0 %v1111
    %1221 = vmatprep.subr.mxu0 0.0
    %1222 = vmatpush1.msra.mxu0 %v1112
    %1223 = vmatprep.subr.mxu0 0.0
    %1224 = vmatpush1.msra.mxu0 %v1113
    %1225 = vmatprep.subr.mxu0 0.0
    %1226 = vmatpush1.msra.mxu0 %v1114
    %1227 = vmatprep.subr.mxu0 0.0
    %1228 = vmatpush1.msra.mxu0 %v1115
    %1229 = vmatprep.subr.mxu0 0.0
    %1230 = vmatpush1.msra.mxu0 %v1116
    %1231 = vmatprep.subr.mxu0 0.0
    %1232 = vmatpush1.msra.mxu0 %v1117
    %1233 = vmatprep.subr.mxu0 0.0
    %1234 = vmatpush1.msra.mxu0 %v1118
    %1235 = vmatprep.subr.mxu0 0.0
    %1236 = vmatpush1.msra.mxu0 %v1119
    %1237 = vmatprep.subr.mxu0 0.0
    %1238 = vmatpush1.msra.mxu0 %v1120
    %1239 = vmatprep.subr.mxu0 0.0
    %1240 = vmatpush1.msra.mxu0 %v1121
    %1241 = vmatprep.subr.mxu0 0.0
    %1242 = vmatpush1.msra.mxu0 0.0
    %1243 = vmatprep.subr.mxu0 0.0
    %1244 = vmatpush1.msra.mxu0 0.0
    %1245 = vmatprep.subr.mxu0 0.0
    %1246 = vmatpush1.msra.mxu0 0.0
    %1247 = vmatprep.subr.mxu0 0.0
    %1248 = vmatpush1.msra.mxu0 0.0
    %1249 = vmatprep.subr.mxu0 0.0
    %1250 = vmatpush1.msra.mxu0 0.0
    %1251 = vmatprep.subr.mxu0 0.0
    %1252 = vmatpush1.msra.mxu0 0.0
    %1253 = vmatprep.subr.mxu0 0.0
    %1254 = vmatpush1.msra.mxu0 0.0
    %1255 = vmatprep.subr.mxu0 0.0
    %1256 = vmatpush1.msra.mxu0 0.0
    %1257 = vmatprep.subr.mxu0 0.0
    %1258 = vmatpush1.msra.mxu0 0.0
    %1259 = vmatprep.subr.mxu0 0.0
    %1260 = vmatpush1.msra.mxu0 0.0
    %1261 = vmatprep.subr.mxu0 0.0
    %1262 = vmatpush1.msra.mxu0 0.0
    %1263 = vmatprep.subr.mxu0 0.0
    %1264 = vmatpush1.msra.mxu0 0.0
    %1265 = vmatprep.subr.mxu0 0.0
    %1266 = vmatpush1.msra.mxu0 0.0
    %1267 = vmatprep.subr.mxu0 0.0
    %1268 = vmatpush1.msra.mxu0 0.0
    %1269 = vmatprep.subr.mxu0 0.0
    %1270 = vmatpush1.msra.mxu0 0.0
    %1271 = vmatprep.subr.mxu0 0.0
    %1272 = vmatpush1.msra.mxu0 0.0
    %1273 = vmatprep.mubr.f32.mxu0 0.0
    %1274 = vmatmul.mubr.f32.gmra.mrb[0].mxu0 %v918
    %v1275 = vpop.f32.mrb[0].mxu0
    %v1276 = vadd.f32 %v1206, %v1275
    %v1277 = vpop.f32.mrb[0].mxu0
    %1278 = vdwg.mxu0
    %s1279 = scalar_lea.vmem [#allocation17], 1
    %v1280 = vld [vmem:[%s1279] sm:$0x1]
    %v1282 = vlaneseq
    %v1283 = vshrl.u32 %v1282, 7
    %v1284 = vsub.s32 0, %v1283
    %v1285 = vrot.slane %v1280, %v1284
    %v1287 = vadd.f32 %v1276, %v1285
    %s1288 = scalar_lea.vmem [#allocation14], 256
    %v1289 = vld [vmem:[%s1288] sm:$0xff]
    %v1290 = vld [vmem:[%s1288 + $0x8] sm:$0xff]
    %v1291 = vld [vmem:[%s1288 + $0x10] sm:$0xff]
    %v1292 = vld [vmem:[%s1288 + $0x18] sm:$0xff]
    %v1293 = vld [vmem:[%s1288 + $0x20] sm:$0xff]
    %v1294 = vld [vmem:[%s1288 + $0x28] sm:$0xff]
    %v1295 = vld [vmem:[%s1288 + $0x30] sm:$0xff]
    %v1296 = vld [vmem:[%s1288 + $0x38] sm:$0xff]
    %v1297 = vld [vmem:[%s1288 + $0x40] sm:$0xff]
    %v1298 = vld [vmem:[%s1288 + $0x48] sm:$0xff]
    %v1299 = vld [vmem:[%s1288 + $0x50] sm:$0xff]
    %v1300 = vld [vmem:[%s1288 + $0x58] sm:$0xff]
    %v1301 = vld [vmem:[%s1288 + $0x60] sm:$0xff]
    %v1302 = vld [vmem:[%s1288 + $0x68] sm:$0xff]
    %v1303 = vld [vmem:[%s1288 + $0x70] sm:$0xff]
    %v1304 = vld [vmem:[%s1288 + $0x78] sm:$0xff]
    %s1305 = scalar_lea.vmem [#allocation16], 256
    %v1306 = vld [vmem:[%s1305] sm:$0xff]
    %v1307 = vld [vmem:[%s1305 + $0x8] sm:$0xff]
    %v1308 = vld [vmem:[%s1305 + $0x10] sm:$0xff]
    %v1309 = vld [vmem:[%s1305 + $0x18] sm:$0xff]
    %v1310 = vld [vmem:[%s1305 + $0x20] sm:$0xff]
    %v1311 = vld [vmem:[%s1305 + $0x28] sm:$0xff]
    %v1312 = vld [vmem:[%s1305 + $0x30] sm:$0xff]
    %v1313 = vld [vmem:[%s1305 + $0x38] sm:$0xff]
    %v1314 = vld [vmem:[%s1305 + $0x40] sm:$0xff]
    %v1315 = vld [vmem:[%s1305 + $0x48] sm:$0xff]
    %v1316 = vld [vmem:[%s1305 + $0x50] sm:$0xff]
    %v1317 = vld [vmem:[%s1305 + $0x58] sm:$0xff]
    %v1318 = vld [vmem:[%s1305 + $0x60] sm:$0xff]
    %v1319 = vld [vmem:[%s1305 + $0x68] sm:$0xff]
    %v1320 = vld [vmem:[%s1305 + $0x70] sm:$0xff]
    %v1321 = vld [vmem:[%s1305 + $0x78] sm:$0xff]
    %1322 = vmatprep.subr.mxu0 0.0
    %1323 = vmatpush1.msra.mxu0 %v1306
    %1324 = vmatprep.subr.mxu0 0.0
    %1325 = vmatpush1.msra.mxu0 %v1307
    %1326 = vmatprep.subr.mxu0 0.0
    %1327 = vmatpush1.msra.mxu0 %v1308
    %1328 = vmatprep.subr.mxu0 0.0
    %1329 = vmatpush1.msra.mxu0 %v1309
    %1330 = vmatprep.subr.mxu0 0.0
    %1331 = vmatpush1.msra.mxu0 %v1310
    %1332 = vmatprep.subr.mxu0 0.0
    %1333 = vmatpush1.msra.mxu0 %v1311
    %1334 = vmatprep.subr.mxu0 0.0
    %1335 = vmatpush1.msra.mxu0 %v1312
    %1336 = vmatprep.subr.mxu0 0.0
    %1337 = vmatpush1.msra.mxu0 %v1313
    %1338 = vmatprep.subr.mxu0 0.0
    %1339 = vmatpush1.msra.mxu0 %v1314
    %1340 = vmatprep.subr.mxu0 0.0
    %1341 = vmatpush1.msra.mxu0 %v1315
    %1342 = vmatprep.subr.mxu0 0.0
    %1343 = vmatpush1.msra.mxu0 %v1316
    %1344 = vmatprep.subr.mxu0 0.0
    %1345 = vmatpush1.msra.mxu0 %v1317
    %1346 = vmatprep.subr.mxu0 0.0
    %1347 = vmatpush1.msra.mxu0 %v1318
    %1348 = vmatprep.subr.mxu0 0.0
    %1349 = vmatpush1.msra.mxu0 %v1319
    %1350 = vmatprep.subr.mxu0 0.0
    %1351 = vmatpush1.msra.mxu0 %v1320
    %1352 = vmatprep.subr.mxu0 0.0
    %1353 = vmatpush1.msra.mxu0 %v1321
    %1354 = vmatprep.subr.mxu0 0.0
    %1355 = vmatpush1.msra.mxu0 0.0
    %1356 = vmatprep.subr.mxu0 0.0
    %1357 = vmatpush1.msra.mxu0 0.0
    %1358 = vmatprep.subr.mxu0 0.0
    %1359 = vmatpush1.msra.mxu0 0.0
    %1360 = vmatprep.subr.mxu0 0.0
    %1361 = vmatpush1.msra.mxu0 0.0
    %1362 = vmatprep.subr.mxu0 0.0
    %1363 = vmatpush1.msra.mxu0 0.0
    %1364 = vmatprep.subr.mxu0 0.0
    %1365 = vmatpush1.msra.mxu0 0.0
    %1366 = vmatprep.subr.mxu0 0.0
    %1367 = vmatpush1.msra.mxu0 0.0
    %1368 = vmatprep.subr.mxu0 0.0
    %1369 = vmatpush1.msra.mxu0 0.0
    %1370 = vmatprep.subr.mxu0 0.0
    %1371 = vmatpush1.msra.mxu0 0.0
    %1372 = vmatprep.subr.mxu0 0.0
    %1373 = vmatpush1.msra.mxu0 0.0
    %1374 = vmatprep.subr.mxu0 0.0
    %1375 = vmatpush1.msra.mxu0 0.0
    %1376 = vmatprep.subr.mxu0 0.0
    %1377 = vmatpush1.msra.mxu0 0.0
    %1378 = vmatprep.subr.mxu0 0.0
    %1379 = vmatpush1.msra.mxu0 0.0
    %1380 = vmatprep.subr.mxu0 0.0
    %1381 = vmatpush1.msra.mxu0 0.0
    %1382 = vmatprep.subr.mxu0 0.0
    %1383 = vmatpush1.msra.mxu0 0.0
    %1384 = vmatprep.subr.mxu0 0.0
    %1385 = vmatpush1.msra.mxu0 0.0
    %1386 = vmatprep.mubr.f32.mxu0 0.0
    %1387 = vmatmul.mubr.f32.gmra.mrb[0].mxu0 %v922
    %v1388 = vpop.f32.mrb[0].mxu0
    %v1389 = vadd.f32 0.0, %v1388
    %v1390 = vpop.f32.mrb[0].mxu0
    %1391 = vdwg.mxu0
    %1392 = vmatprep.subr.mxu0 0.0
    %1393 = vmatpush1.msra.mxu0 %v1289
    %1394 = vmatprep.subr.mxu0 0.0
    %1395 = vmatpush1.msra.mxu0 %v1290
    %1396 = vmatprep.subr.mxu0 0.0
    %1397 = vmatpush1.msra.mxu0 %v1291
    %1398 = vmatprep.subr.mxu0 0.0
    %1399 = vmatpush1.msra.mxu0 %v1292
    %1400 = vmatprep.subr.mxu0 0.0
    %1401 = vmatpush1.msra.mxu0 %v1293
    %1402 = vmatprep.subr.mxu0 0.0
    %1403 = vmatpush1.msra.mxu0 %v1294
    %1404 = vmatprep.subr.mxu0 0.0
    %1405 = vmatpush1.msra.mxu0 %v1295
    %1406 = vmatprep.subr.mxu0 0.0
    %1407 = vmatpush1.msra.mxu0 %v1296
    %1408 = vmatprep.subr.mxu0 0.0
    %1409 = vmatpush1.msra.mxu0 %v1297
    %1410 = vmatprep.subr.mxu0 0.0
    %1411 = vmatpush1.msra.mxu0 %v1298
    %1412 = vmatprep.subr.mxu0 0.0
    %1413 = vmatpush1.msra.mxu0 %v1299
    %1414 = vmatprep.subr.mxu0 0.0
    %1415 = vmatpush1.msra.mxu0 %v1300
    %1416 = vmatprep.subr.mxu0 0.0
    %1417 = vmatpush1.msra.mxu0 %v1301
    %1418 = vmatprep.subr.mxu0 0.0
    %1419 = vmatpush1.msra.mxu0 %v1302
    %1420 = vmatprep.subr.mxu0 0.0
    %1421 = vmatpush1.msra.mxu0 %v1303
    %1422 = vmatprep.subr.mxu0 0.0
    %1423 = vmatpush1.msra.mxu0 %v1304
    %1424 = vmatprep.subr.mxu0 0.0
    %1425 = vmatpush1.msra.mxu0 0.0
    %1426 = vmatprep.subr.mxu0 0.0
    %1427 = vmatpush1.msra.mxu0 0.0
    %1428 = vmatprep.subr.mxu0 0.0
    %1429 = vmatpush1.msra.mxu0 0.0
    %1430 = vmatprep.subr.mxu0 0.0
    %1431 = vmatpush1.msra.mxu0 0.0
    %1432 = vmatprep.subr.mxu0 0.0
    %1433 = vmatpush1.msra.mxu0 0.0
    %1434 = vmatprep.subr.mxu0 0.0
    %1435 = vmatpush1.msra.mxu0 0.0
    %1436 = vmatprep.subr.mxu0 0.0
    %1437 = vmatpush1.msra.mxu0 0.0
    %1438 = vmatprep.subr.mxu0 0.0
    %1439 = vmatpush1.msra.mxu0 0.0
    %1440 = vmatprep.subr.mxu0 0.0
    %1441 = vmatpush1.msra.mxu0 0.0
    %1442 = vmatprep.subr.mxu0 0.0
    %1443 = vmatpush1.msra.mxu0 0.0
    %1444 = vmatprep.subr.mxu0 0.0
    %1445 = vmatpush1.msra.mxu0 0.0
    %1446 = vmatprep.subr.mxu0 0.0
    %1447 = vmatpush1.msra.mxu0 0.0
    %1448 = vmatprep.subr.mxu0 0.0
    %1449 = vmatpush1.msra.mxu0 0.0
    %1450 = vmatprep.subr.mxu0 0.0
    %1451 = vmatpush1.msra.mxu0 0.0
    %1452 = vmatprep.subr.mxu0 0.0
    %1453 = vmatpush1.msra.mxu0 0.0
    %1454 = vmatprep.subr.mxu0 0.0
    %1455 = vmatpush1.msra.mxu0 0.0
    %1456 = vmatprep.mubr.f32.mxu0 0.0
    %1457 = vmatmul.mubr.f32.gmra.mrb[0].mxu0 %v918
    %v1458 = vpop.f32.mrb[0].mxu0
    %v1459 = vadd.f32 %v1389, %v1458
    %v1460 = vpop.f32.mrb[0].mxu0
    %1461 = vdwg.mxu0
    %s1462 = scalar_lea.vmem [#allocation17], 2
    %v1463 = vld [vmem:[%s1462] sm:$0x1]
    %v1465 = vlaneseq
    %v1466 = vshrl.u32 %v1465, 7
    %v1467 = vsub.s32 0, %v1466
    %v1468 = vrot.slane %v1463, %v1467
    %v1470 = vadd.f32 %v1459, %v1468
    %s1471 = scalar_lea.vmem [#allocation14], 384
    %v1472 = vld [vmem:[%s1471] sm:$0xff]
    %v1473 = vld [vmem:[%s1471 + $0x8] sm:$0xff]
    %v1474 = vld [vmem:[%s1471 + $0x10] sm:$0xff]
    %v1475 = vld [vmem:[%s1471 + $0x18] sm:$0xff]
    %v1476 = vld [vmem:[%s1471 + $0x20] sm:$0xff]
    %v1477 = vld [vmem:[%s1471 + $0x28] sm:$0xff]
    %v1478 = vld [vmem:[%s1471 + $0x30] sm:$0xff]
    %v1479 = vld [vmem:[%s1471 + $0x38] sm:$0xff]
    %v1480 = vld [vmem:[%s1471 + $0x40] sm:$0xff]
    %v1481 = vld [vmem:[%s1471 + $0x48] sm:$0xff]
    %v1482 = vld [vmem:[%s1471 + $0x50] sm:$0xff]
    %v1483 = vld [vmem:[%s1471 + $0x58] sm:$0xff]
    %v1484 = vld [vmem:[%s1471 + $0x60] sm:$0xff]
    %v1485 = vld [vmem:[%s1471 + $0x68] sm:$0xff]
    %v1486 = vld [vmem:[%s1471 + $0x70] sm:$0xff]
    %v1487 = vld [vmem:[%s1471 + $0x78] sm:$0xff]
    %s1488 = scalar_lea.vmem [#allocation16], 384
    %v1489 = vld [vmem:[%s1488] sm:$0xff]
    %v1490 = vld [vmem:[%s1488 + $0x8] sm:$0xff]
    %v1491 = vld [vmem:[%s1488 + $0x10] sm:$0xff]
    %v1492 = vld [vmem:[%s1488 + $0x18] sm:$0xff]
    %v1493 = vld [vmem:[%s1488 + $0x20] sm:$0xff]
    %v1494 = vld [vmem:[%s1488 + $0x28] sm:$0xff]
    %v1495 = vld [vmem:[%s1488 + $0x30] sm:$0xff]
    %v1496 = vld [vmem:[%s1488 + $0x38] sm:$0xff]
    %v1497 = vld [vmem:[%s1488 + $0x40] sm:$0xff]
    %v1498 = vld [vmem:[%s1488 + $0x48] sm:$0xff]
    %v1499 = vld [vmem:[%s1488 + $0x50] sm:$0xff]
    %v1500 = vld [vmem:[%s1488 + $0x58] sm:$0xff]
    %v1501 = vld [vmem:[%s1488 + $0x60] sm:$0xff]
    %v1502 = vld [vmem:[%s1488 + $0x68] sm:$0xff]
    %v1503 = vld [vmem:[%s1488 + $0x70] sm:$0xff]
    %v1504 = vld [vmem:[%s1488 + $0x78] sm:$0xff]
    %1505 = vmatprep.subr.mxu0 0.0
    %1506 = vmatpush1.msra.mxu0 %v1489
    %1507 = vmatprep.subr.mxu0 0.0
    %1508 = vmatpush1.msra.mxu0 %v1490
    %1509 = vmatprep.subr.mxu0 0.0
    %1510 = vmatpush1.msra.mxu0 %v1491
    %1511 = vmatprep.subr.mxu0 0.0
    %1512 = vmatpush1.msra.mxu0 %v1492
    %1513 = vmatprep.subr.mxu0 0.0
    %1514 = vmatpush1.msra.mxu0 %v1493
    %1515 = vmatprep.subr.mxu0 0.0
    %1516 = vmatpush1.msra.mxu0 %v1494
    %1517 = vmatprep.subr.mxu0 0.0
    %1518 = vmatpush1.msra.mxu0 %v1495
    %1519 = vmatprep.subr.mxu0 0.0
    %1520 = vmatpush1.msra.mxu0 %v1496
    %1521 = vmatprep.subr.mxu0 0.0
    %1522 = vmatpush1.msra.mxu0 %v1497
    %1523 = vmatprep.subr.mxu0 0.0
    %1524 = vmatpush1.msra.mxu0 %v1498
    %1525 = vmatprep.subr.mxu0 0.0
    %1526 = vmatpush1.msra.mxu0 %v1499
    %1527 = vmatprep.subr.mxu0 0.0
    %1528 = vmatpush1.msra.mxu0 %v1500
    %1529 = vmatprep.subr.mxu0 0.0
    %1530 = vmatpush1.msra.mxu0 %v1501
    %1531 = vmatprep.subr.mxu0 0.0
    %1532 = vmatpush1.msra.mxu0 %v1502
    %1533 = vmatprep.subr.mxu0 0.0
    %1534 = vmatpush1.msra.mxu0 %v1503
    %1535 = vmatprep.subr.mxu0 0.0
    %1536 = vmatpush1.msra.mxu0 %v1504
    %1537 = vmatprep.subr.mxu0 0.0
    %1538 = vmatpush1.msra.mxu0 0.0
    %1539 = vmatprep.subr.mxu0 0.0
    %1540 = vmatpush1.msra.mxu0 0.0
    %1541 = vmatprep.subr.mxu0 0.0
    %1542 = vmatpush1.msra.mxu0 0.0
    %1543 = vmatprep.subr.mxu0 0.0
    %1544 = vmatpush1.msra.mxu0 0.0
    %1545 = vmatprep.subr.mxu0 0.0
    %1546 = vmatpush1.msra.mxu0 0.0
    %1547 = vmatprep.subr.mxu0 0.0
    %1548 = vmatpush1.msra.mxu0 0.0
    %1549 = vmatprep.subr.mxu0 0.0
    %1550 = vmatpush1.msra.mxu0 0.0
    %1551 = vmatprep.subr.mxu0 0.0
    %1552 = vmatpush1.msra.mxu0 0.0
    %1553 = vmatprep.subr.mxu0 0.0
    %1554 = vmatpush1.msra.mxu0 0.0
    %1555 = vmatprep.subr.mxu0 0.0
    %1556 = vmatpush1.msra.mxu0 0.0
    %1557 = vmatprep.subr.mxu0 0.0
    %1558 = vmatpush1.msra.mxu0 0.0
    %1559 = vmatprep.subr.mxu0 0.0
    %1560 = vmatpush1.msra.mxu0 0.0
    %1561 = vmatprep.subr.mxu0 0.0
    %1562 = vmatpush1.msra.mxu0 0.0
    %1563 = vmatprep.subr.mxu0 0.0
    %1564 = vmatpush1.msra.mxu0 0.0
    %1565 = vmatprep.subr.mxu0 0.0
    %1566 = vmatpush1.msra.mxu0 0.0
    %1567 = vmatprep.subr.mxu0 0.0
    %1568 = vmatpush1.msra.mxu0 0.0
    %1569 = vmatprep.mubr.f32.mxu0 0.0
    %1570 = vmatmul.mubr.f32.gmra.mrb[0].mxu0 %v922
    %v1571 = vpop.f32.mrb[0].mxu0
    %v1572 = vadd.f32 0.0, %v1571
    %v1573 = vpop.f32.mrb[0].mxu0
    %1574 = vdwg.mxu0
    %1575 = vmatprep.subr.mxu0 0.0
    %1576 = vmatpush1.msra.mxu0 %v1472
    %1577 = vmatprep.subr.mxu0 0.0
    %1578 = vmatpush1.msra.mxu0 %v1473
    %1579 = vmatprep.subr.mxu0 0.0
    %1580 = vmatpush1.msra.mxu0 %v1474
    %1581 = vmatprep.subr.mxu0 0.0
    %1582 = vmatpush1.msra.mxu0 %v1475
    %1583 = vmatprep.subr.mxu0 0.0
    %1584 = vmatpush1.msra.mxu0 %v1476
    %1585 = vmatprep.subr.mxu0 0.0
    %1586 = vmatpush1.msra.mxu0 %v1477
    %1587 = vmatprep.subr.mxu0 0.0
    %1588 = vmatpush1.msra.mxu0 %v1478
    %1589 = vmatprep.subr.mxu0 0.0
    %1590 = vmatpush1.msra.mxu0 %v1479
    %1591 = vmatprep.subr.mxu0 0.0
    %1592 = vmatpush1.msra.mxu0 %v1480
    %1593 = vmatprep.subr.mxu0 0.0
    %1594 = vmatpush1.msra.mxu0 %v1481
    %1595 = vmatprep.subr.mxu0 0.0
    %1596 = vmatpush1.msra.mxu0 %v1482
    %1597 = vmatprep.subr.mxu0 0.0
    %1598 = vmatpush1.msra.mxu0 %v1483
    %1599 = vmatprep.subr.mxu0 0.0
    %1600 = vmatpush1.msra.mxu0 %v1484
    %1601 = vmatprep.subr.mxu0 0.0
    %1602 = vmatpush1.msra.mxu0 %v1485
    %1603 = vmatprep.subr.mxu0 0.0
    %1604 = vmatpush1.msra.mxu0 %v1486
    %1605 = vmatprep.subr.mxu0 0.0
    %1606 = vmatpush1.msra.mxu0 %v1487
    %1607 = vmatprep.subr.mxu0 0.0
    %1608 = vmatpush1.msra.mxu0 0.0
    %1609 = vmatprep.subr.mxu0 0.0
    %1610 = vmatpush1.msra.mxu0 0.0
    %1611 = vmatprep.subr.mxu0 0.0
    %1612 = vmatpush1.msra.mxu0 0.0
    %1613 = vmatprep.subr.mxu0 0.0
    %1614 = vmatpush1.msra.mxu0 0.0
    %1615 = vmatprep.subr.mxu0 0.0
    %1616 = vmatpush1.msra.mxu0 0.0
    %1617 = vmatprep.subr.mxu0 0.0
    %1618 = vmatpush1.msra.mxu0 0.0
    %1619 = vmatprep.subr.mxu0 0.0
    %1620 = vmatpush1.msra.mxu0 0.0
    %1621 = vmatprep.subr.mxu0 0.0
    %1622 = vmatpush1.msra.mxu0 0.0
    %1623 = vmatprep.subr.mxu0 0.0
    %1624 = vmatpush1.msra.mxu0 0.0
    %1625 = vmatprep.subr.mxu0 0.0
    %1626 = vmatpush1.msra.mxu0 0.0
    %1627 = vmatprep.subr.mxu0 0.0
    %1628 = vmatpush1.msra.mxu0 0.0
    %1629 = vmatprep.subr.mxu0 0.0
    %1630 = vmatpush1.msra.mxu0 0.0
    %1631 = vmatprep.subr.mxu0 0.0
    %1632 = vmatpush1.msra.mxu0 0.0
    %1633 = vmatprep.subr.mxu0 0.0
    %1634 = vmatpush1.msra.mxu0 0.0
    %1635 = vmatprep.subr.mxu0 0.0
    %1636 = vmatpush1.msra.mxu0 0.0
    %1637 = vmatprep.subr.mxu0 0.0
    %1638 = vmatpush1.msra.mxu0 0.0
    %1639 = vmatprep.mubr.f32.mxu0 0.0
    %1640 = vmatmul.mubr.f32.gmra.mrb[0].mxu0 %v918
    %v1641 = vpop.f32.mrb[0].mxu0
    %v1642 = vadd.f32 %v1572, %v1641
    %v1643 = vpop.f32.mrb[0].mxu0
    %1644 = vdwg.mxu0
    %s1645 = scalar_lea.vmem [#allocation17], 3
    %v1646 = vld [vmem:[%s1645] sm:$0x1]
    %v1648 = vlaneseq
    %v1649 = vshrl.u32 %v1648, 7
    %v1650 = vsub.s32 0, %v1649
    %v1651 = vrot.slane %v1646, %v1650
    %v1653 = vadd.f32 %v1642, %v1651
    %v1654 = vxor.u32 %v1104, 2147483648
    %v1655 = vmul.f32 %v1654, 1.442695
    %v1656 = vpow.pop %v1655
    %v1657 = vadd.f32 %v1656, 1.0
    %v1658 = vrcp.pop %v1657
    %v1659 = vmul.f32 1.0, %v1658
    %v1660 = vxor.u32 %v1287, 2147483648
    %v1661 = vmul.f32 %v1660, 1.442695
    %v1662 = vpow.pop %v1661
    %v1663 = vadd.f32 %v1662, 1.0
    %v1664 = vrcp.pop %v1663
    %v1665 = vmul.f32 1.0, %v1664
    %v1666 = vtanh.pop %v1470
    %v1667 = vxor.u32 %v1653, 2147483648
    %v1668 = vmul.f32 %v1667, 1.442695
    %v1669 = vpow.pop %v1668
    %v1670 = vadd.f32 %v1669, 1.0
    %v1671 = vrcp.pop %v1670
    %v1672 = vmul.f32 1.0, %v1671
    %v1673 = vmul.f32 %v1665, %v924
    %v1674 = vmul.f32 %v1659, %v1666
    %v1675 = vadd.f32 %v1673, %v1674
    %v1676 = vtanh.pop %v1675
    %v1677 = vmul.f32 %v1672, %v1676
    %s1678 = scalar_lea.vmem [#allocation19], 8
    %1679 = vst [vmem:[%s1678] sm:$0xff] %v1677
    %s1680 = scalar_lea.vmem [#allocation20], 8
    %1681 = vst [vmem:[%s1680] sm:$0xff] %v1675
    %v1682 = vld [vmem:[#allocation2] sm:$0xff]
    %v1683 = vld [vmem:[#allocation2 + $0x8] sm:$0xff]
    %v1684 = vld [vmem:[#allocation2 + $0x10] sm:$0xff]
    %v1685 = vld [vmem:[#allocation2 + $0x18] sm:$0xff]
    %v1686 = vld [vmem:[#allocation2 + $0x20] sm:$0xff]
    %v1687 = vld [vmem:[#allocation2 + $0x28] sm:$0xff]
    %v1688 = vld [vmem:[#allocation2 + $0x30] sm:$0xff]
    %v1689 = vld [vmem:[#allocation2 + $0x38] sm:$0xff]
    %v1690 = vld [vmem:[#allocation2 + $0x40] sm:$0xff]
    %v1691 = vld [vmem:[#allocation2 + $0x48] sm:$0xff]
    %v1692 = vld [vmem:[#allocation2 + $0x50] sm:$0xff]
    %v1693 = vld [vmem:[#allocation2 + $0x58] sm:$0xff]
    %v1694 = vld [vmem:[#allocation2 + $0x60] sm:$0xff]
    %v1695 = vld [vmem:[#allocation2 + $0x68] sm:$0xff]
    %v1696 = vld [vmem:[#allocation2 + $0x70] sm:$0xff]
    %v1697 = vld [vmem:[#allocation2 + $0x78] sm:$0xff]
    %v1698 = vld [vmem:[#allocation5] sm:$0xff]
    %v1699 = vld [vmem:[#allocation5 + $0x8] sm:$0xff]
    %v1700 = vld [vmem:[#allocation5 + $0x10] sm:$0xff]
    %v1701 = vld [vmem:[#allocation5 + $0x18] sm:$0xff]
    %v1702 = vld [vmem:[#allocation5 + $0x20] sm:$0xff]
    %v1703 = vld [vmem:[#allocation5 + $0x28] sm:$0xff]
    %v1704 = vld [vmem:[#allocation5 + $0x30] sm:$0xff]
    %v1705 = vld [vmem:[#allocation5 + $0x38] sm:$0xff]
    %v1706 = vld [vmem:[#allocation5 + $0x40] sm:$0xff]
    %v1707 = vld [vmem:[#allocation5 + $0x48] sm:$0xff]
    %v1708 = vld [vmem:[#allocation5 + $0x50] sm:$0xff]
    %v1709 = vld [vmem:[#allocation5 + $0x58] sm:$0xff]
    %v1710 = vld [vmem:[#allocation5 + $0x60] sm:$0xff]
    %v1711 = vld [vmem:[#allocation5 + $0x68] sm:$0xff]
    %v1712 = vld [vmem:[#allocation5 + $0x70] sm:$0xff]
    %v1713 = vld [vmem:[#allocation5 + $0x78] sm:$0xff]
    %1714 = vmatprep.subr.mxu0 0.0
    %1715 = vmatpush1.msra.mxu0 %v1698
    %1716 = vmatprep.subr.mxu0 0.0
    %1717 = vmatpush1.msra.mxu0 %v1699
    %1718 = vmatprep.subr.mxu0 0.0
    %1719 = vmatpush1.msra.mxu0 %v1700
    %1720 = vmatprep.subr.mxu0 0.0
    %1721 = vmatpush1.msra.mxu0 %v1701
    %1722 = vmatprep.subr.mxu0 0.0
    %1723 = vmatpush1.msra.mxu0 %v1702
    %1724 = vmatprep.subr.mxu0 0.0
    %1725 = vmatpush1.msra.mxu0 %v1703
    %1726 = vmatprep.subr.mxu0 0.0
    %1727 = vmatpush1.msra.mxu0 %v1704
    %1728 = vmatprep.subr.mxu0 0.0
    %1729 = vmatpush1.msra.mxu0 %v1705
    %1730 = vmatprep.subr.mxu0 0.0
    %1731 = vmatpush1.msra.mxu0 %v1706
    %1732 = vmatprep.subr.mxu0 0.0
    %1733 = vmatpush1.msra.mxu0 %v1707
    %1734 = vmatprep.subr.mxu0 0.0
    %1735 = vmatpush1.msra.mxu0 %v1708
    %1736 = vmatprep.subr.mxu0 0.0
    %1737 = vmatpush1.msra.mxu0 %v1709
    %1738 = vmatprep.subr.mxu0 0.0
    %1739 = vmatpush1.msra.mxu0 %v1710
    %1740 = vmatprep.subr.mxu0 0.0
    %1741 = vmatpush1.msra.mxu0 %v1711
    %1742 = vmatprep.subr.mxu0 0.0
    %1743 = vmatpush1.msra.mxu0 %v1712
    %1744 = vmatprep.subr.mxu0 0.0
    %1745 = vmatpush1.msra.mxu0 %v1713
    %1746 = vmatprep.subr.mxu0 0.0
    %1747 = vmatpush1.msra.mxu0 0.0
    %1748 = vmatprep.subr.mxu0 0.0
    %1749 = vmatpush1.msra.mxu0 0.0
    %1750 = vmatprep.subr.mxu0 0.0
    %1751 = vmatpush1.msra.mxu0 0.0
    %1752 = vmatprep.subr.mxu0 0.0
    %1753 = vmatpush1.msra.mxu0 0.0
    %1754 = vmatprep.subr.mxu0 0.0
    %1755 = vmatpush1.msra.mxu0 0.0
    %1756 = vmatprep.subr.mxu0 0.0
    %1757 = vmatpush1.msra.mxu0 0.0
    %1758 = vmatprep.subr.mxu0 0.0
    %1759 = vmatpush1.msra.mxu0 0.0
    %1760 = vmatprep.subr.mxu0 0.0
    %1761 = vmatpush1.msra.mxu0 0.0
    %1762 = vmatprep.subr.mxu0 0.0
    %1763 = vmatpush1.msra.mxu0 0.0
    %1764 = vmatprep.subr.mxu0 0.0
    %1765 = vmatpush1.msra.mxu0 0.0
    %1766 = vmatprep.subr.mxu0 0.0
    %1767 = vmatpush1.msra.mxu0 0.0
    %1768 = vmatprep.subr.mxu0 0.0
    %1769 = vmatpush1.msra.mxu0 0.0
    %1770 = vmatprep.subr.mxu0 0.0
    %1771 = vmatpush1.msra.mxu0 0.0
    %1772 = vmatprep.subr.mxu0 0.0
    %1773 = vmatpush1.msra.mxu0 0.0
    %1774 = vmatprep.subr.mxu0 0.0
    %1775 = vmatpush1.msra.mxu0 0.0
    %1776 = vmatprep.subr.mxu0 0.0
    %1777 = vmatpush1.msra.mxu0 0.0
    %1778 = vmatprep.mubr.f32.mxu0 0.0
    %1779 = vmatmul.mubr.f32.gmra.mrb[0].mxu0 %v1677
    %v1780 = vpop.f32.mrb[0].mxu0
    %v1781 = vadd.f32 0.0, %v1780
    %v1782 = vpop.f32.mrb[0].mxu0
    %1783 = vdwg.mxu0
    %v1785 = vcombine.high %v1781, %v1781
    %v1787 = vunpack.c.l.s4 1966171168
    %v1788 = vunpack.c.0.s8 %v1787
    %v1789 = vlaneseq
    %v1790 = vshrl.u32 %v1789, 7
    %v1791 = vsub.s32 %v1788, %v1790
    %v1792 = vrot.slane %v1781, %v1791
    %v1794 = vunpack.c.l.s4 1966171168
    %v1795 = vunpack.c.0.s8 %v1794
    %v1796 = vlaneseq
    %v1797 = vshrl.u32 %v1796, 7
    %v1798 = vsub.s32 %v1795, %v1797
    %v1799 = vrot.slane %v1785, %v1798
    %v1800 = vcombine.high %v1792, %v1792
    %v1801 = vcombine.high %v1799, %v1799
    %v1803 = vunpack.c.l.s4 1966171168
    %v1804 = vunpack.c.0.s8 %v1803
    %v1805 = vlaneseq
    %v1806 = vshrl.u32 %v1805, 7
    %v1807 = vsub.s32 %v1804, %v1806
    %v1808 = vrot.slane %v1792, %v1807
    %v1810 = vunpack.c.l.s4 1966171168
    %v1811 = vunpack.c.0.s8 %v1810
    %v1812 = vlaneseq
    %v1813 = vshrl.u32 %v1812, 7
    %v1814 = vsub.s32 %v1811, %v1813
    %v1815 = vrot.slane %v1799, %v1814
    %v1817 = vunpack.c.l.s4 1966171168
    %v1818 = vunpack.c.0.s8 %v1817
    %v1819 = vlaneseq
    %v1820 = vshrl.u32 %v1819, 7
    %v1821 = vsub.s32 %v1818, %v1820
    %v1822 = vrot.slane %v1800, %v1821
    %v1824 = vunpack.c.l.s4 1966171168
    %v1825 = vunpack.c.0.s8 %v1824
    %v1826 = vlaneseq
    %v1827 = vshrl.u32 %v1826, 7
    %v1828 = vsub.s32 %v1825, %v1827
    %v1829 = vrot.slane %v1801, %v1828
    %v1830 = vcombine.high %v1808, %v1808
    %v1831 = vcombine.high %v1815, %v1815
    %v1832 = vcombine.high %v1822, %v1822
    %v1833 = vcombine.high %v1829, %v1829
    %v1842 = vld [vmem:[#allocation7] sm:$0x1]
    %v1844 = vlaneseq
    %v1845 = vshrl.u32 %v1844, 7
    %v1846 = vsub.s32 0, %v1845
    %v1847 = vrot.slane %v1842, %v1846
    %v1849 = vmul.f32 %v1677, %v1847
    %1850 = vadd.xlane.f32.xlu0 %v1849
    %v1851 = vpop.xlane.xlu0 %1850
    %v1853 = vlaneseq
    %v1854 = vshrl.u32 %v1853, 7
    %v1855 = vsub.s32 0, %v1854
    %v1856 = vrot.slane %v1851, %v1855
    %v1857 = vlaneseq
    %v1858 = vshrl.u32 %v1857, 7
    %v1859 = vsub.s32 1, %v1858
    %v1860 = vrot.slane %v1851, %v1859
    %v1861 = vlaneseq
    %v1862 = vshrl.u32 %v1861, 7
    %v1863 = vsub.s32 2, %v1862
    %v1864 = vrot.slane %v1851, %v1863
    %v1865 = vlaneseq
    %v1866 = vshrl.u32 %v1865, 7
    %v1867 = vsub.s32 3, %v1866
    %v1868 = vrot.slane %v1851, %v1867
    %v1869 = vlaneseq
    %v1870 = vshrl.u32 %v1869, 7
    %v1871 = vsub.s32 4, %v1870
    %v1872 = vrot.slane %v1851, %v1871
    %v1873 = vlaneseq
    %v1874 = vshrl.u32 %v1873, 7
    %v1875 = vsub.s32 5, %v1874
    %v1876 = vrot.slane %v1851, %v1875
    %v1877 = vlaneseq
    %v1878 = vshrl.u32 %v1877, 7
    %v1879 = vsub.s32 6, %v1878
    %v1880 = vrot.slane %v1851, %v1879
    %v1881 = vlaneseq
    %v1882 = vshrl.u32 %v1881, 7
    %v1883 = vsub.s32 7, %v1882
    %v1884 = vrot.slane %v1851, %v1883
    %1893 = vmatprep.subr.mxu0 0.0
    %1894 = vmatpush1.xpose.msra.mxu0 %v1682
    %1895 = vmatprep.subr.mxu0 0.0
    %1896 = vmatpush1.xpose.msra.mxu0 %v1683
    %1897 = vmatprep.subr.mxu0 0.0
    %1898 = vmatpush1.xpose.msra.mxu0 0.0
    %1899 = vmatprep.subr.mxu0 0.0
    %1900 = vmatpush1.xpose.msra.mxu0 0.0
    %1901 = vmatprep.subr.mxu0 0.0
    %1902 = vmatpush1.xpose.msra.mxu0 0.0
    %1903 = vmatprep.subr.mxu0 0.0
    %1904 = vmatpush1.xpose.msra.mxu0 0.0
    %1905 = vmatprep.subr.mxu0 0.0
    %1906 = vmatpush1.xpose.msra.mxu0 0.0
    %1907 = vmatprep.subr.mxu0 0.0
    %1908 = vmatpush1.xpose.msra.mxu0 0.0
    %1909 = vmatprep.subr.mxu0 0.0
    %1910 = vmatpush1.xpose.msra.mxu0 0.0
    %1911 = vmatprep.subr.mxu0 0.0
    %1912 = vmatpush1.xpose.msra.mxu0 0.0
    %1913 = vmatprep.subr.mxu0 0.0
    %1914 = vmatpush1.xpose.msra.mxu0 0.0
    %1915 = vmatprep.subr.mxu0 0.0
    %1916 = vmatpush1.xpose.msra.mxu0 0.0
    %1917 = vmatprep.subr.mxu0 0.0
    %1918 = vmatpush1.xpose.msra.mxu0 0.0
    %1919 = vmatprep.subr.mxu0 0.0
    %1920 = vmatpush1.xpose.msra.mxu0 0.0
    %1921 = vmatprep.subr.mxu0 0.0
    %1922 = vmatpush1.xpose.msra.mxu0 0.0
    %1923 = vmatprep.subr.mxu0 0.0
    %1924 = vmatpush1.xpose.msra.mxu0 0.0
    %1925 = vmatprep.subr.mxu0 0.0
    %1926 = vmatpush1.xpose.msra.mxu0 0.0
    %1927 = vmatprep.subr.mxu0 0.0
    %1928 = vmatpush1.xpose.msra.mxu0 0.0
    %1929 = vmatprep.subr.mxu0 0.0
    %1930 = vmatpush1.xpose.msra.mxu0 0.0
    %1931 = vmatprep.subr.mxu0 0.0
    %1932 = vmatpush1.xpose.msra.mxu0 0.0
    %1933 = vmatprep.subr.mxu0 0.0
    %1934 = vmatpush1.xpose.msra.mxu0 0.0
    %1935 = vmatprep.subr.mxu0 0.0
    %1936 = vmatpush1.xpose.msra.mxu0 0.0
    %1937 = vmatprep.subr.mxu0 0.0
    %1938 = vmatpush1.xpose.msra.mxu0 0.0
    %1939 = vmatprep.subr.mxu0 0.0
    %1940 = vmatpush1.xpose.msra.mxu0 0.0
    %1941 = vmatprep.subr.mxu0 0.0
    %1942 = vmatpush1.xpose.msra.mxu0 0.0
    %1943 = vmatprep.subr.mxu0 0.0
    %1944 = vmatpush1.xpose.msra.mxu0 0.0
    %1945 = vmatprep.subr.mxu0 0.0
    %1946 = vmatpush1.xpose.msra.mxu0 0.0
    %1947 = vmatprep.subr.mxu0 0.0
    %1948 = vmatpush1.xpose.msra.mxu0 0.0
    %1949 = vmatprep.subr.mxu0 0.0
    %1950 = vmatpush1.xpose.msra.mxu0 0.0
    %1951 = vmatprep.subr.mxu0 0.0
    %1952 = vmatpush1.xpose.msra.mxu0 0.0
    %1953 = vmatprep.subr.mxu0 0.0
    %1954 = vmatpush1.xpose.msra.mxu0 0.0
    %1955 = vmatprep.subr.mxu0 0.0
    %1956 = vmatpush1.xpose.msra.mxu0 0.0
    %1957 = vmatprep.mubr.f32.mxu0 0.0
    %1958 = vmatmul.mubr.f32.gmra.mrb[0].mxu0 %v1808
    %v1959 = vpop.f32.mrb[0].mxu0
    %v1960 = vadd.f32 %v1856, %v1959
    %v1961 = vpop.f32.mrb[0].mxu0
    %1962 = vdwg.mxu0
    %1963 = vmatprep.subr.mxu0 0.0
    %1964 = vmatpush1.xpose.msra.mxu0 %v1684
    %1965 = vmatprep.subr.mxu0 0.0
    %1966 = vmatpush1.xpose.msra.mxu0 %v1685
    %1967 = vmatprep.subr.mxu0 0.0
    %1968 = vmatpush1.xpose.msra.mxu0 0.0
    %1969 = vmatprep.subr.mxu0 0.0
    %1970 = vmatpush1.xpose.msra.mxu0 0.0
    %1971 = vmatprep.subr.mxu0 0.0
    %1972 = vmatpush1.xpose.msra.mxu0 0.0
    %1973 = vmatprep.subr.mxu0 0.0
    %1974 = vmatpush1.xpose.msra.mxu0 0.0
    %1975 = vmatprep.subr.mxu0 0.0
    %1976 = vmatpush1.xpose.msra.mxu0 0.0
    %1977 = vmatprep.subr.mxu0 0.0
    %1978 = vmatpush1.xpose.msra.mxu0 0.0
    %1979 = vmatprep.subr.mxu0 0.0
    %1980 = vmatpush1.xpose.msra.mxu0 0.0
    %1981 = vmatprep.subr.mxu0 0.0
    %1982 = vmatpush1.xpose.msra.mxu0 0.0
    %1983 = vmatprep.subr.mxu0 0.0
    %1984 = vmatpush1.xpose.msra.mxu0 0.0
    %1985 = vmatprep.subr.mxu0 0.0
    %1986 = vmatpush1.xpose.msra.mxu0 0.0
    %1987 = vmatprep.subr.mxu0 0.0
    %1988 = vmatpush1.xpose.msra.mxu0 0.0
    %1989 = vmatprep.subr.mxu0 0.0
    %1990 = vmatpush1.xpose.msra.mxu0 0.0
    %1991 = vmatprep.subr.mxu0 0.0
    %1992 = vmatpush1.xpose.msra.mxu0 0.0
    %1993 = vmatprep.subr.mxu0 0.0
    %1994 = vmatpush1.xpose.msra.mxu0 0.0
    %1995 = vmatprep.subr.mxu0 0.0
    %1996 = vmatpush1.xpose.msra.mxu0 0.0
    %1997 = vmatprep.subr.mxu0 0.0
    %1998 = vmatpush1.xpose.msra.mxu0 0.0
    %1999 = vmatprep.subr.mxu0 0.0
    %2000 = vmatpush1.xpose.msra.mxu0 0.0
    %2001 = vmatprep.subr.mxu0 0.0
    %2002 = vmatpush1.xpose.msra.mxu0 0.0
    %2003 = vmatprep.subr.mxu0 0.0
    %2004 = vmatpush1.xpose.msra.mxu0 0.0
    %2005 = vmatprep.subr.mxu0 0.0
    %2006 = vmatpush1.xpose.msra.mxu0 0.0
    %2007 = vmatprep.subr.mxu0 0.0
    %2008 = vmatpush1.xpose.msra.mxu0 0.0
    %2009 = vmatprep.subr.mxu0 0.0
    %2010 = vmatpush1.xpose.msra.mxu0 0.0
    %2011 = vmatprep.subr.mxu0 0.0
    %2012 = vmatpush1.xpose.msra.mxu0 0.0
    %2013 = vmatprep.subr.mxu0 0.0
    %2014 = vmatpush1.xpose.msra.mxu0 0.0
    %2015 = vmatprep.subr.mxu0 0.0
    %2016 = vmatpush1.xpose.msra.mxu0 0.0
    %2017 = vmatprep.subr.mxu0 0.0
    %2018 = vmatpush1.xpose.msra.mxu0 0.0
    %2019 = vmatprep.subr.mxu0 0.0
    %2020 = vmatpush1.xpose.msra.mxu0 0.0
    %2021 = vmatprep.subr.mxu0 0.0
    %2022 = vmatpush1.xpose.msra.mxu0 0.0
    %2023 = vmatprep.subr.mxu0 0.0
    %2024 = vmatpush1.xpose.msra.mxu0 0.0
    %2025 = vmatprep.subr.mxu0 0.0
    %2026 = vmatpush1.xpose.msra.mxu0 0.0
    %2027 = vmatprep.mubr.f32.mxu0 0.0
    %2028 = vmatmul.mubr.f32.gmra.mrb[0].mxu0 %v1822
    %v2029 = vpop.f32.mrb[0].mxu0
    %v2030 = vadd.f32 %v1860, %v2029
    %v2031 = vpop.f32.mrb[0].mxu0
    %2032 = vdwg.mxu0
    %2033 = vmatprep.subr.mxu0 0.0
    %2034 = vmatpush1.xpose.msra.mxu0 %v1686
    %2035 = vmatprep.subr.mxu0 0.0
    %2036 = vmatpush1.xpose.msra.mxu0 %v1687
    %2037 = vmatprep.subr.mxu0 0.0
    %2038 = vmatpush1.xpose.msra.mxu0 0.0
    %2039 = vmatprep.subr.mxu0 0.0
    %2040 = vmatpush1.xpose.msra.mxu0 0.0
    %2041 = vmatprep.subr.mxu0 0.0
    %2042 = vmatpush1.xpose.msra.mxu0 0.0
    %2043 = vmatprep.subr.mxu0 0.0
    %2044 = vmatpush1.xpose.msra.mxu0 0.0
    %2045 = vmatprep.subr.mxu0 0.0
    %2046 = vmatpush1.xpose.msra.mxu0 0.0
    %2047 = vmatprep.subr.mxu0 0.0
    %2048 = vmatpush1.xpose.msra.mxu0 0.0
    %2049 = vmatprep.subr.mxu0 0.0
    %2050 = vmatpush1.xpose.msra.mxu0 0.0
    %2051 = vmatprep.subr.mxu0 0.0
    %2052 = vmatpush1.xpose.msra.mxu0 0.0
    %2053 = vmatprep.subr.mxu0 0.0
    %2054 = vmatpush1.xpose.msra.mxu0 0.0
    %2055 = vmatprep.subr.mxu0 0.0
    %2056 = vmatpush1.xpose.msra.mxu0 0.0
    %2057 = vmatprep.subr.mxu0 0.0
    %2058 = vmatpush1.xpose.msra.mxu0 0.0
    %2059 = vmatprep.subr.mxu0 0.0
    %2060 = vmatpush1.xpose.msra.mxu0 0.0
    %2061 = vmatprep.subr.mxu0 0.0
    %2062 = vmatpush1.xpose.msra.mxu0 0.0
    %2063 = vmatprep.subr.mxu0 0.0
    %2064 = vmatpush1.xpose.msra.mxu0 0.0
    %2065 = vmatprep.subr.mxu0 0.0
    %2066 = vmatpush1.xpose.msra.mxu0 0.0
    %2067 = vmatprep.subr.mxu0 0.0
    %2068 = vmatpush1.xpose.msra.mxu0 0.0
    %2069 = vmatprep.subr.mxu0 0.0
    %2070 = vmatpush1.xpose.msra.mxu0 0.0
    %2071 = vmatprep.subr.mxu0 0.0
    %2072 = vmatpush1.xpose.msra.mxu0 0.0
    %2073 = vmatprep.subr.mxu0 0.0
    %2074 = vmatpush1.xpose.msra.mxu0 0.0
    %2075 = vmatprep.subr.mxu0 0.0
    %2076 = vmatpush1.xpose.msra.mxu0 0.0
    %2077 = vmatprep.subr.mxu0 0.0
    %2078 = vmatpush1.xpose.msra.mxu0 0.0
    %2079 = vmatprep.subr.mxu0 0.0
    %2080 = vmatpush1.xpose.msra.mxu0 0.0
    %2081 = vmatprep.subr.mxu0 0.0
    %2082 = vmatpush1.xpose.msra.mxu0 0.0
    %2083 = vmatprep.subr.mxu0 0.0
    %2084 = vmatpush1.xpose.msra.mxu0 0.0
    %2085 = vmatprep.subr.mxu0 0.0
    %2086 = vmatpush1.xpose.msra.mxu0 0.0
    %2087 = vmatprep.subr.mxu0 0.0
    %2088 = vmatpush1.xpose.msra.mxu0 0.0
    %2089 = vmatprep.subr.mxu0 0.0
    %2090 = vmatpush1.xpose.msra.mxu0 0.0
    %2091 = vmatprep.subr.mxu0 0.0
    %2092 = vmatpush1.xpose.msra.mxu0 0.0
    %2093 = vmatprep.subr.mxu0 0.0
    %2094 = vmatpush1.xpose.msra.mxu0 0.0
    %2095 = vmatprep.subr.mxu0 0.0
    %2096 = vmatpush1.xpose.msra.mxu0 0.0
    %2097 = vmatprep.mubr.f32.mxu0 0.0
    %2098 = vmatmul.mubr.f32.gmra.mrb[0].mxu0 %v1830
    %v2099 = vpop.f32.mrb[0].mxu0
    %v2100 = vadd.f32 %v1864, %v2099
    %v2101 = vpop.f32.mrb[0].mxu0
    %2102 = vdwg.mxu0
    %2103 = vmatprep.subr.mxu0 0.0
    %2104 = vmatpush1.xpose.msra.mxu0 %v1688
    %2105 = vmatprep.subr.mxu0 0.0
    %2106 = vmatpush1.xpose.msra.mxu0 %v1689
    %2107 = vmatprep.subr.mxu0 0.0
    %2108 = vmatpush1.xpose.msra.mxu0 0.0
    %2109 = vmatprep.subr.mxu0 0.0
    %2110 = vmatpush1.xpose.msra.mxu0 0.0
    %2111 = vmatprep.subr.mxu0 0.0
    %2112 = vmatpush1.xpose.msra.mxu0 0.0
    %2113 = vmatprep.subr.mxu0 0.0
    %2114 = vmatpush1.xpose.msra.mxu0 0.0
    %2115 = vmatprep.subr.mxu0 0.0
    %2116 = vmatpush1.xpose.msra.mxu0 0.0
    %2117 = vmatprep.subr.mxu0 0.0
    %2118 = vmatpush1.xpose.msra.mxu0 0.0
    %2119 = vmatprep.subr.mxu0 0.0
    %2120 = vmatpush1.xpose.msra.mxu0 0.0
    %2121 = vmatprep.subr.mxu0 0.0
    %2122 = vmatpush1.xpose.msra.mxu0 0.0
    %2123 = vmatprep.subr.mxu0 0.0
    %2124 = vmatpush1.xpose.msra.mxu0 0.0
    %2125 = vmatprep.subr.mxu0 0.0
    %2126 = vmatpush1.xpose.msra.mxu0 0.0
    %2127 = vmatprep.subr.mxu0 0.0
    %2128 = vmatpush1.xpose.msra.mxu0 0.0
    %2129 = vmatprep.subr.mxu0 0.0
    %2130 = vmatpush1.xpose.msra.mxu0 0.0
    %2131 = vmatprep.subr.mxu0 0.0
    %2132 = vmatpush1.xpose.msra.mxu0 0.0
    %2133 = vmatprep.subr.mxu0 0.0
    %2134 = vmatpush1.xpose.msra.mxu0 0.0
    %2135 = vmatprep.subr.mxu0 0.0
    %2136 = vmatpush1.xpose.msra.mxu0 0.0
    %2137 = vmatprep.subr.mxu0 0.0
    %2138 = vmatpush1.xpose.msra.mxu0 0.0
    %2139 = vmatprep.subr.mxu0 0.0
    %2140 = vmatpush1.xpose.msra.mxu0 0.0
    %2141 = vmatprep.subr.mxu0 0.0
    %2142 = vmatpush1.xpose.msra.mxu0 0.0
    %2143 = vmatprep.subr.mxu0 0.0
    %2144 = vmatpush1.xpose.msra.mxu0 0.0
    %2145 = vmatprep.subr.mxu0 0.0
    %2146 = vmatpush1.xpose.msra.mxu0 0.0
    %2147 = vmatprep.subr.mxu0 0.0
    %2148 = vmatpush1.xpose.msra.mxu0 0.0
    %2149 = vmatprep.subr.mxu0 0.0
    %2150 = vmatpush1.xpose.msra.mxu0 0.0
    %2151 = vmatprep.subr.mxu0 0.0
    %2152 = vmatpush1.xpose.msra.mxu0 0.0
    %2153 = vmatprep.subr.mxu0 0.0
    %2154 = vmatpush1.xpose.msra.mxu0 0.0
    %2155 = vmatprep.subr.mxu0 0.0
    %2156 = vmatpush1.xpose.msra.mxu0 0.0
    %2157 = vmatprep.subr.mxu0 0.0
    %2158 = vmatpush1.xpose.msra.mxu0 0.0
    %2159 = vmatprep.subr.mxu0 0.0
    %2160 = vmatpush1.xpose.msra.mxu0 0.0
    %2161 = vmatprep.subr.mxu0 0.0
    %2162 = vmatpush1.xpose.msra.mxu0 0.0
    %2163 = vmatprep.subr.mxu0 0.0
    %2164 = vmatpush1.xpose.msra.mxu0 0.0
    %2165 = vmatprep.subr.mxu0 0.0
    %2166 = vmatpush1.xpose.msra.mxu0 0.0
    %2167 = vmatprep.mubr.f32.mxu0 0.0
    %2168 = vmatmul.mubr.f32.gmra.mrb[0].mxu0 %v1832
    %v2169 = vpop.f32.mrb[0].mxu0
    %v2170 = vadd.f32 %v1868, %v2169
    %v2171 = vpop.f32.mrb[0].mxu0
    %2172 = vdwg.mxu0
    %2173 = vmatprep.subr.mxu0 0.0
    %2174 = vmatpush1.xpose.msra.mxu0 %v1690
    %2175 = vmatprep.subr.mxu0 0.0
    %2176 = vmatpush1.xpose.msra.mxu0 %v1691
    %2177 = vmatprep.subr.mxu0 0.0
    %2178 = vmatpush1.xpose.msra.mxu0 0.0
    %2179 = vmatprep.subr.mxu0 0.0
    %2180 = vmatpush1.xpose.msra.mxu0 0.0
    %2181 = vmatprep.subr.mxu0 0.0
    %2182 = vmatpush1.xpose.msra.mxu0 0.0
    %2183 = vmatprep.subr.mxu0 0.0
    %2184 = vmatpush1.xpose.msra.mxu0 0.0
    %2185 = vmatprep.subr.mxu0 0.0
    %2186 = vmatpush1.xpose.msra.mxu0 0.0
    %2187 = vmatprep.subr.mxu0 0.0
    %2188 = vmatpush1.xpose.msra.mxu0 0.0
    %2189 = vmatprep.subr.mxu0 0.0
    %2190 = vmatpush1.xpose.msra.mxu0 0.0
    %2191 = vmatprep.subr.mxu0 0.0
    %2192 = vmatpush1.xpose.msra.mxu0 0.0
    %2193 = vmatprep.subr.mxu0 0.0
    %2194 = vmatpush1.xpose.msra.mxu0 0.0
    %2195 = vmatprep.subr.mxu0 0.0
    %2196 = vmatpush1.xpose.msra.mxu0 0.0
    %2197 = vmatprep.subr.mxu0 0.0
    %2198 = vmatpush1.xpose.msra.mxu0 0.0
    %2199 = vmatprep.subr.mxu0 0.0
    %2200 = vmatpush1.xpose.msra.mxu0 0.0
    %2201 = vmatprep.subr.mxu0 0.0
    %2202 = vmatpush1.xpose.msra.mxu0 0.0
    %2203 = vmatprep.subr.mxu0 0.0
    %2204 = vmatpush1.xpose.msra.mxu0 0.0
    %2205 = vmatprep.subr.mxu0 0.0
    %2206 = vmatpush1.xpose.msra.mxu0 0.0
    %2207 = vmatprep.subr.mxu0 0.0
    %2208 = vmatpush1.xpose.msra.mxu0 0.0
    %2209 = vmatprep.subr.mxu0 0.0
    %2210 = vmatpush1.xpose.msra.mxu0 0.0
    %2211 = vmatprep.subr.mxu0 0.0
    %2212 = vmatpush1.xpose.msra.mxu0 0.0
    %2213 = vmatprep.subr.mxu0 0.0
    %2214 = vmatpush1.xpose.msra.mxu0 0.0
    %2215 = vmatprep.subr.mxu0 0.0
    %2216 = vmatpush1.xpose.msra.mxu0 0.0
    %2217 = vmatprep.subr.mxu0 0.0
    %2218 = vmatpush1.xpose.msra.mxu0 0.0
    %2219 = vmatprep.subr.mxu0 0.0
    %2220 = vmatpush1.xpose.msra.mxu0 0.0
    %2221 = vmatprep.subr.mxu0 0.0
    %2222 = vmatpush1.xpose.msra.mxu0 0.0
    %2223 = vmatprep.subr.mxu0 0.0
    %2224 = vmatpush1.xpose.msra.mxu0 0.0
    %2225 = vmatprep.subr.mxu0 0.0
    %2226 = vmatpush1.xpose.msra.mxu0 0.0
    %2227 = vmatprep.subr.mxu0 0.0
    %2228 = vmatpush1.xpose.msra.mxu0 0.0
    %2229 = vmatprep.subr.mxu0 0.0
    %2230 = vmatpush1.xpose.msra.mxu0 0.0
    %2231 = vmatprep.subr.mxu0 0.0
    %2232 = vmatpush1.xpose.msra.mxu0 0.0
    %2233 = vmatprep.subr.mxu0 0.0
    %2234 = vmatpush1.xpose.msra.mxu0 0.0
    %2235 = vmatprep.subr.mxu0 0.0
    %2236 = vmatpush1.xpose.msra.mxu0 0.0
    %2237 = vmatprep.mubr.f32.mxu0 0.0
    %2238 = vmatmul.mubr.f32.gmra.mrb[0].mxu0 %v1815
    %v2239 = vpop.f32.mrb[0].mxu0
    %v2240 = vadd.f32 %v1872, %v2239
    %v2241 = vpop.f32.mrb[0].mxu0
    %2242 = vdwg.mxu0
    %2243 = vmatprep.subr.mxu0 0.0
    %2244 = vmatpush1.xpose.msra.mxu0 %v1692
    %2245 = vmatprep.subr.mxu0 0.0
    %2246 = vmatpush1.xpose.msra.mxu0 %v1693
    %2247 = vmatprep.subr.mxu0 0.0
    %2248 = vmatpush1.xpose.msra.mxu0 0.0
    %2249 = vmatprep.subr.mxu0 0.0
    %2250 = vmatpush1.xpose.msra.mxu0 0.0
    %2251 = vmatprep.subr.mxu0 0.0
    %2252 = vmatpush1.xpose.msra.mxu0 0.0
    %2253 = vmatprep.subr.mxu0 0.0
    %2254 = vmatpush1.xpose.msra.mxu0 0.0
    %2255 = vmatprep.subr.mxu0 0.0
    %2256 = vmatpush1.xpose.msra.mxu0 0.0
    %2257 = vmatprep.subr.mxu0 0.0
    %2258 = vmatpush1.xpose.msra.mxu0 0.0
    %2259 = vmatprep.subr.mxu0 0.0
    %2260 = vmatpush1.xpose.msra.mxu0 0.0
    %2261 = vmatprep.subr.mxu0 0.0
    %2262 = vmatpush1.xpose.msra.mxu0 0.0
    %2263 = vmatprep.subr.mxu0 0.0
    %2264 = vmatpush1.xpose.msra.mxu0 0.0
    %2265 = vmatprep.subr.mxu0 0.0
    %2266 = vmatpush1.xpose.msra.mxu0 0.0
    %2267 = vmatprep.subr.mxu0 0.0
    %2268 = vmatpush1.xpose.msra.mxu0 0.0
    %2269 = vmatprep.subr.mxu0 0.0
    %2270 = vmatpush1.xpose.msra.mxu0 0.0
    %2271 = vmatprep.subr.mxu0 0.0
    %2272 = vmatpush1.xpose.msra.mxu0 0.0
    %2273 = vmatprep.subr.mxu0 0.0
    %2274 = vmatpush1.xpose.msra.mxu0 0.0
    %2275 = vmatprep.subr.mxu0 0.0
    %2276 = vmatpush1.xpose.msra.mxu0 0.0
    %2277 = vmatprep.subr.mxu0 0.0
    %2278 = vmatpush1.xpose.msra.mxu0 0.0
    %2279 = vmatprep.subr.mxu0 0.0
    %2280 = vmatpush1.xpose.msra.mxu0 0.0
    %2281 = vmatprep.subr.mxu0 0.0
    %2282 = vmatpush1.xpose.msra.mxu0 0.0
    %2283 = vmatprep.subr.mxu0 0.0
    %2284 = vmatpush1.xpose.msra.mxu0 0.0
    %2285 = vmatprep.subr.mxu0 0.0
    %2286 = vmatpush1.xpose.msra.mxu0 0.0
    %2287 = vmatprep.subr.mxu0 0.0
    %2288 = vmatpush1.xpose.msra.mxu0 0.0
    %2289 = vmatprep.subr.mxu0 0.0
    %2290 = vmatpush1.xpose.msra.mxu0 0.0
    %2291 = vmatprep.subr.mxu0 0.0
    %2292 = vmatpush1.xpose.msra.mxu0 0.0
    %2293 = vmatprep.subr.mxu0 0.0
    %2294 = vmatpush1.xpose.msra.mxu0 0.0
    %2295 = vmatprep.subr.mxu0 0.0
    %2296 = vmatpush1.xpose.msra.mxu0 0.0
    %2297 = vmatprep.subr.mxu0 0.0
    %2298 = vmatpush1.xpose.msra.mxu0 0.0
    %2299 = vmatprep.subr.mxu0 0.0
    %2300 = vmatpush1.xpose.msra.mxu0 0.0
    %2301 = vmatprep.subr.mxu0 0.0
    %2302 = vmatpush1.xpose.msra.mxu0 0.0
    %2303 = vmatprep.subr.mxu0 0.0
    %2304 = vmatpush1.xpose.msra.mxu0 0.0
    %2305 = vmatprep.subr.mxu0 0.0
    %2306 = vmatpush1.xpose.msra.mxu0 0.0
    %2307 = vmatprep.mubr.f32.mxu0 0.0
    %2308 = vmatmul.mubr.f32.gmra.mrb[0].mxu0 %v1829
    %v2309 = vpop.f32.mrb[0].mxu0
    %v2310 = vadd.f32 %v1876, %v2309
    %v2311 = vpop.f32.mrb[0].mxu0
    %2312 = vdwg.mxu0
    %2313 = vmatprep.subr.mxu0 0.0
    %2314 = vmatpush1.xpose.msra.mxu0 %v1694
    %2315 = vmatprep.subr.mxu0 0.0
    %2316 = vmatpush1.xpose.msra.mxu0 %v1695
    %2317 = vmatprep.subr.mxu0 0.0
    %2318 = vmatpush1.xpose.msra.mxu0 0.0
    %2319 = vmatprep.subr.mxu0 0.0
    %2320 = vmatpush1.xpose.msra.mxu0 0.0
    %2321 = vmatprep.subr.mxu0 0.0
    %2322 = vmatpush1.xpose.msra.mxu0 0.0
    %2323 = vmatprep.subr.mxu0 0.0
    %2324 = vmatpush1.xpose.msra.mxu0 0.0
    %2325 = vmatprep.subr.mxu0 0.0
    %2326 = vmatpush1.xpose.msra.mxu0 0.0
    %2327 = vmatprep.subr.mxu0 0.0
    %2328 = vmatpush1.xpose.msra.mxu0 0.0
    %2329 = vmatprep.subr.mxu0 0.0
    %2330 = vmatpush1.xpose.msra.mxu0 0.0
    %2331 = vmatprep.subr.mxu0 0.0
    %2332 = vmatpush1.xpose.msra.mxu0 0.0
    %2333 = vmatprep.subr.mxu0 0.0
    %2334 = vmatpush1.xpose.msra.mxu0 0.0
    %2335 = vmatprep.subr.mxu0 0.0
    %2336 = vmatpush1.xpose.msra.mxu0 0.0
    %2337 = vmatprep.subr.mxu0 0.0
    %2338 = vmatpush1.xpose.msra.mxu0 0.0
    %2339 = vmatprep.subr.mxu0 0.0
    %2340 = vmatpush1.xpose.msra.mxu0 0.0
    %2341 = vmatprep.subr.mxu0 0.0
    %2342 = vmatpush1.xpose.msra.mxu0 0.0
    %2343 = vmatprep.subr.mxu0 0.0
    %2344 = vmatpush1.xpose.msra.mxu0 0.0
    %2345 = vmatprep.subr.mxu0 0.0
    %2346 = vmatpush1.xpose.msra.mxu0 0.0
    %2347 = vmatprep.subr.mxu0 0.0
    %2348 = vmatpush1.xpose.msra.mxu0 0.0
    %2349 = vmatprep.subr.mxu0 0.0
    %2350 = vmatpush1.xpose.msra.mxu0 0.0
    %2351 = vmatprep.subr.mxu0 0.0
    %2352 = vmatpush1.xpose.msra.mxu0 0.0
    %2353 = vmatprep.subr.mxu0 0.0
    %2354 = vmatpush1.xpose.msra.mxu0 0.0
    %2355 = vmatprep.subr.mxu0 0.0
    %2356 = vmatpush1.xpose.msra.mxu0 0.0
    %2357 = vmatprep.subr.mxu0 0.0
    %2358 = vmatpush1.xpose.msra.mxu0 0.0
    %2359 = vmatprep.subr.mxu0 0.0
    %2360 = vmatpush1.xpose.msra.mxu0 0.0
    %2361 = vmatprep.subr.mxu0 0.0
    %2362 = vmatpush1.xpose.msra.mxu0 0.0
    %2363 = vmatprep.subr.mxu0 0.0
    %2364 = vmatpush1.xpose.msra.mxu0 0.0
    %2365 = vmatprep.subr.mxu0 0.0
    %2366 = vmatpush1.xpose.msra.mxu0 0.0
    %2367 = vmatprep.subr.mxu0 0.0
    %2368 = vmatpush1.xpose.msra.mxu0 0.0
    %2369 = vmatprep.subr.mxu0 0.0
    %2370 = vmatpush1.xpose.msra.mxu0 0.0
    %2371 = vmatprep.subr.mxu0 0.0
    %2372 = vmatpush1.xpose.msra.mxu0 0.0
    %2373 = vmatprep.subr.mxu0 0.0
    %2374 = vmatpush1.xpose.msra.mxu0 0.0
    %2375 = vmatprep.subr.mxu0 0.0
    %2376 = vmatpush1.xpose.msra.mxu0 0.0
    %2377 = vmatprep.mubr.f32.mxu0 0.0
    %2378 = vmatmul.mubr.f32.gmra.mrb[0].mxu0 %v1831
    %v2379 = vpop.f32.mrb[0].mxu0
    %v2380 = vadd.f32 %v1880, %v2379
    %v2381 = vpop.f32.mrb[0].mxu0
    %2382 = vdwg.mxu0
    %2383 = vmatprep.subr.mxu0 0.0
    %2384 = vmatpush1.xpose.msra.mxu0 %v1696
    %2385 = vmatprep.subr.mxu0 0.0
    %2386 = vmatpush1.xpose.msra.mxu0 %v1697
    %2387 = vmatprep.subr.mxu0 0.0
    %2388 = vmatpush1.xpose.msra.mxu0 0.0
    %2389 = vmatprep.subr.mxu0 0.0
    %2390 = vmatpush1.xpose.msra.mxu0 0.0
    %2391 = vmatprep.subr.mxu0 0.0
    %2392 = vmatpush1.xpose.msra.mxu0 0.0
    %2393 = vmatprep.subr.mxu0 0.0
    %2394 = vmatpush1.xpose.msra.mxu0 0.0
    %2395 = vmatprep.subr.mxu0 0.0
    %2396 = vmatpush1.xpose.msra.mxu0 0.0
    %2397 = vmatprep.subr.mxu0 0.0
    %2398 = vmatpush1.xpose.msra.mxu0 0.0
    %2399 = vmatprep.subr.mxu0 0.0
    %2400 = vmatpush1.xpose.msra.mxu0 0.0
    %2401 = vmatprep.subr.mxu0 0.0
    %2402 = vmatpush1.xpose.msra.mxu0 0.0
    %2403 = vmatprep.subr.mxu0 0.0
    %2404 = vmatpush1.xpose.msra.mxu0 0.0
    %2405 = vmatprep.subr.mxu0 0.0
    %2406 = vmatpush1.xpose.msra.mxu0 0.0
    %2407 = vmatprep.subr.mxu0 0.0
    %2408 = vmatpush1.xpose.msra.mxu0 0.0
    %2409 = vmatprep.subr.mxu0 0.0
    %2410 = vmatpush1.xpose.msra.mxu0 0.0
    %2411 = vmatprep.subr.mxu0 0.0
    %2412 = vmatpush1.xpose.msra.mxu0 0.0
    %2413 = vmatprep.subr.mxu0 0.0
    %2414 = vmatpush1.xpose.msra.mxu0 0.0
    %2415 = vmatprep.subr.mxu0 0.0
    %2416 = vmatpush1.xpose.msra.mxu0 0.0
    %2417 = vmatprep.subr.mxu0 0.0
    %2418 = vmatpush1.xpose.msra.mxu0 0.0
    %2419 = vmatprep.subr.mxu0 0.0
    %2420 = vmatpush1.xpose.msra.mxu0 0.0
    %2421 = vmatprep.subr.mxu0 0.0
    %2422 = vmatpush1.xpose.msra.mxu0 0.0
    %2423 = vmatprep.subr.mxu0 0.0
    %2424 = vmatpush1.xpose.msra.mxu0 0.0
    %2425 = vmatprep.subr.mxu0 0.0
    %2426 = vmatpush1.xpose.msra.mxu0 0.0
    %2427 = vmatprep.subr.mxu0 0.0
    %2428 = vmatpush1.xpose.msra.mxu0 0.0
    %2429 = vmatprep.subr.mxu0 0.0
    %2430 = vmatpush1.xpose.msra.mxu0 0.0
    %2431 = vmatprep.subr.mxu0 0.0
    %2432 = vmatpush1.xpose.msra.mxu0 0.0
    %2433 = vmatprep.subr.mxu0 0.0
    %2434 = vmatpush1.xpose.msra.mxu0 0.0
    %2435 = vmatprep.subr.mxu0 0.0
    %2436 = vmatpush1.xpose.msra.mxu0 0.0
    %2437 = vmatprep.subr.mxu0 0.0
    %2438 = vmatpush1.xpose.msra.mxu0 0.0
    %2439 = vmatprep.subr.mxu0 0.0
    %2440 = vmatpush1.xpose.msra.mxu0 0.0
    %2441 = vmatprep.subr.mxu0 0.0
    %2442 = vmatpush1.xpose.msra.mxu0 0.0
    %2443 = vmatprep.subr.mxu0 0.0
    %2444 = vmatpush1.xpose.msra.mxu0 0.0
    %2445 = vmatprep.subr.mxu0 0.0
    %2446 = vmatpush1.xpose.msra.mxu0 0.0
    %2447 = vmatprep.mubr.f32.mxu0 0.0
    %2448 = vmatmul.mubr.f32.gmra.mrb[0].mxu0 %v1833
    %v2449 = vpop.f32.mrb[0].mxu0
    %v2450 = vadd.f32 %v1884, %v2449
    %v2451 = vpop.f32.mrb[0].mxu0
    %2452 = vdwg.mxu0
    %v2453 = vlaneseq
    %v2454 = vand.u32 %v2453, 127
    %v2455 = vld [vmem:[%s4] sm:$0xff]
    %v2456 = vcombine.high %v2455, %v2455
    %v2458 = vunpack.c.l.s4 1966171168
    %v2459 = vunpack.c.0.s8 %v2458
    %v2460 = vlaneseq
    %v2461 = vshrl.u32 %v2460, 7
    %v2462 = vsub.s32 %v2459, %v2461
    %v2463 = vrot.slane %v2455, %v2462
    %v2465 = vunpack.c.l.s4 1966171168
    %v2466 = vunpack.c.0.s8 %v2465
    %v2467 = vlaneseq
    %v2468 = vshrl.u32 %v2467, 7
    %v2469 = vsub.s32 %v2466, %v2468
    %v2470 = vrot.slane %v2456, %v2469
    %v2471 = vcombine.high %v2463, %v2463
    %v2472 = vcombine.high %v2470, %v2470
    %v2474 = vunpack.c.l.s4 1966171168
    %v2475 = vunpack.c.0.s8 %v2474
    %v2476 = vlaneseq
    %v2477 = vshrl.u32 %v2476, 7
    %v2478 = vsub.s32 %v2475, %v2477
    %v2479 = vrot.slane %v2463, %v2478
    %v2481 = vunpack.c.l.s4 1966171168
    %v2482 = vunpack.c.0.s8 %v2481
    %v2483 = vlaneseq
    %v2484 = vshrl.u32 %v2483, 7
    %v2485 = vsub.s32 %v2482, %v2484
    %v2486 = vrot.slane %v2470, %v2485
    %v2488 = vunpack.c.l.s4 1966171168
    %v2489 = vunpack.c.0.s8 %v2488
    %v2490 = vlaneseq
    %v2491 = vshrl.u32 %v2490, 7
    %v2492 = vsub.s32 %v2489, %v2491
    %v2493 = vrot.slane %v2471, %v2492
    %v2495 = vunpack.c.l.s4 1966171168
    %v2496 = vunpack.c.0.s8 %v2495
    %v2497 = vlaneseq
    %v2498 = vshrl.u32 %v2497, 7
    %v2499 = vsub.s32 %v2496, %v2498
    %v2500 = vrot.slane %v2472, %v2499
    %v2501 = vcombine.high %v2479, %v2479
    %v2502 = vcombine.high %v2486, %v2486
    %v2503 = vcombine.high %v2493, %v2493
    %v2504 = vcombine.high %v2500, %v2500
    %2505 = vset.pattern.permute.xlu0 0
    %2506 = vperm.xlu0 %2505, %v2479
    %v2507 = vpop.permute.xlu0 %2506
    %v2508 = vlaneseq
    %v2509 = vshrl.u32 %v2508, 7
    %v2510 = vsub.s32 0, %v2509
    %v2511 = vrot.slane %v2507, %v2510
    %2512 = vset.pattern.permute.xlu0 0
    %2513 = vperm.xlu0 %2512, %v2493
    %v2514 = vpop.permute.xlu0 %2513
    %v2515 = vlaneseq
    %v2516 = vshrl.u32 %v2515, 7
    %v2517 = vsub.s32 0, %v2516
    %v2518 = vrot.slane %v2514, %v2517
    %2519 = vset.pattern.permute.xlu0 0
    %2520 = vperm.xlu0 %2519, %v2501
    %v2521 = vpop.permute.xlu0 %2520
    %v2522 = vlaneseq
    %v2523 = vshrl.u32 %v2522, 7
    %v2524 = vsub.s32 0, %v2523
    %v2525 = vrot.slane %v2521, %v2524
    %2526 = vset.pattern.permute.xlu0 0
    %2527 = vperm.xlu0 %2526, %v2503
    %v2528 = vpop.permute.xlu0 %2527
    %v2529 = vlaneseq
    %v2530 = vshrl.u32 %v2529, 7
    %v2531 = vsub.s32 0, %v2530
    %v2532 = vrot.slane %v2528, %v2531
    %2533 = vset.pattern.permute.xlu0 0
    %2534 = vperm.xlu0 %2533, %v2486
    %v2535 = vpop.permute.xlu0 %2534
    %v2536 = vlaneseq
    %v2537 = vshrl.u32 %v2536, 7
    %v2538 = vsub.s32 0, %v2537
    %v2539 = vrot.slane %v2535, %v2538
    %2540 = vset.pattern.permute.xlu0 0
    %2541 = vperm.xlu0 %2540, %v2500
    %v2542 = vpop.permute.xlu0 %2541
    %v2543 = vlaneseq
    %v2544 = vshrl.u32 %v2543, 7
    %v2545 = vsub.s32 0, %v2544
    %v2546 = vrot.slane %v2542, %v2545
    %2547 = vset.pattern.permute.xlu0 0
    %2548 = vperm.xlu0 %2547, %v2502
    %v2549 = vpop.permute.xlu0 %2548
    %v2550 = vlaneseq
    %v2551 = vshrl.u32 %v2550, 7
    %v2552 = vsub.s32 0, %v2551
    %v2553 = vrot.slane %v2549, %v2552
    %2554 = vset.pattern.permute.xlu0 0
    %2555 = vperm.xlu0 %2554, %v2504
    %v2556 = vpop.permute.xlu0 %2555
    %v2557 = vlaneseq
    %v2558 = vshrl.u32 %v2557, 7
    %v2559 = vsub.s32 0, %v2558
    %v2560 = vrot.slane %v2556, %v2559
    %vm2561 = vcmp.lt.s32.totalorder %v2454, %v2511
    %vm2562 = vcmp.lt.s32.totalorder %v2454, %v2518
    %vm2563 = vcmp.lt.s32.totalorder %v2454, %v2525
    %vm2564 = vcmp.lt.s32.totalorder %v2454, %v2532
    %vm2565 = vcmp.lt.s32.totalorder %v2454, %v2539
    %vm2566 = vcmp.lt.s32.totalorder %v2454, %v2546
    %vm2567 = vcmp.lt.s32.totalorder %v2454, %v2553
    %vm2568 = vcmp.lt.s32.totalorder %v2454, %v2560
    %v2569 = vsel %vm2561, %v1960, -1e+30
    %v2570 = vsel %vm2562, %v2030, -1e+30
    %v2571 = vsel %vm2563, %v2100, -1e+30
    %v2572 = vsel %vm2564, %v2170, -1e+30
    %v2573 = vsel %vm2565, %v2240, -1e+30
    %v2574 = vsel %vm2566, %v2310, -1e+30
    %v2575 = vsel %vm2567, %v2380, -1e+30
    %v2576 = vsel %vm2568, %v2450, -1e+30
    %vm2577 = vcmask 122880
    %v2578 = vsel %vm2577, %v2569, -inf
    %2579 = vmax.xlane.f32.xlu0 %v2578
    %v2580 = vpop.xlane.xlu0 %2579
    %v2581 = vsel %vm2577, %v2570, -inf
    %2582 = vmax.xlane.f32.xlu0 %v2581
    %v2583 = vpop.xlane.xlu0 %2582
    %v2584 = vsel %vm2577, %v2571, -inf
    %2585 = vmax.xlane.f32.xlu0 %v2584
    %v2586 = vpop.xlane.xlu0 %2585
    %v2587 = vsel %vm2577, %v2572, -inf
    %2588 = vmax.xlane.f32.xlu0 %v2587
    %v2589 = vpop.xlane.xlu0 %2588
    %v2590 = vsel %vm2577, %v2573, -inf
    %2591 = vmax.xlane.f32.xlu0 %v2590
    %v2592 = vpop.xlane.xlu0 %2591
    %v2593 = vsel %vm2577, %v2574, -inf
    %2594 = vmax.xlane.f32.xlu0 %v2593
    %v2595 = vpop.xlane.xlu0 %2594
    %v2596 = vsel %vm2577, %v2575, -inf
    %2597 = vmax.xlane.f32.xlu0 %v2596
    %v2598 = vpop.xlane.xlu0 %2597
    %v2599 = vsel %vm2577, %v2576, -inf
    %2600 = vmax.xlane.f32.xlu0 %v2599
    %v2601 = vpop.xlane.xlu0 %2600
    %v2602 = vsub.f32 %v2569, %v2580
    %v2603 = vsub.f32 %v2570, %v2583
    %v2604 = vsub.f32 %v2571, %v2586
    %v2605 = vsub.f32 %v2572, %v2589
    %v2606 = vsub.f32 %v2573, %v2592
    %v2607 = vsub.f32 %v2574, %v2595
    %v2608 = vsub.f32 %v2575, %v2598
    %v2609 = vsub.f32 %v2576, %v2601
    %v2610 = vmul.f32 %v2602, 1.442695
    %v2611 = vpow.pop %v2610
    %v2612 = vmul.f32 %v2603, 1.442695
    %v2613 = vpow.pop %v2612
    %v2614 = vmul.f32 %v2604, 1.442695
    %v2615 = vpow.pop %v2614
    %v2616 = vmul.f32 %v2605, 1.442695
    %v2617 = vpow.pop %v2616
    %v2618 = vmul.f32 %v2606, 1.442695
    %v2619 = vpow.pop %v2618
    %v2620 = vmul.f32 %v2607, 1.442695
    %v2621 = vpow.pop %v2620
    %v2622 = vmul.f32 %v2608, 1.442695
    %v2623 = vpow.pop %v2622
    %v2624 = vmul.f32 %v2609, 1.442695
    %v2625 = vpow.pop %v2624
    %v2626 = vsel %vm2577, %v2611, 0.0
    %2627 = vadd.xlane.f32.xlu0 %v2626
    %v2628 = vpop.xlane.xlu0 %2627
    %v2629 = vsel %vm2577, %v2613, 0.0
    %2630 = vadd.xlane.f32.xlu0 %v2629
    %v2631 = vpop.xlane.xlu0 %2630
    %v2632 = vsel %vm2577, %v2615, 0.0
    %2633 = vadd.xlane.f32.xlu0 %v2632
    %v2634 = vpop.xlane.xlu0 %2633
    %v2635 = vsel %vm2577, %v2617, 0.0
    %2636 = vadd.xlane.f32.xlu0 %v2635
    %v2637 = vpop.xlane.xlu0 %2636
    %v2638 = vsel %vm2577, %v2619, 0.0
    %2639 = vadd.xlane.f32.xlu0 %v2638
    %v2640 = vpop.xlane.xlu0 %2639
    %v2641 = vsel %vm2577, %v2621, 0.0
    %2642 = vadd.xlane.f32.xlu0 %v2641
    %v2643 = vpop.xlane.xlu0 %2642
    %v2644 = vsel %vm2577, %v2623, 0.0
    %2645 = vadd.xlane.f32.xlu0 %v2644
    %v2646 = vpop.xlane.xlu0 %2645
    %v2647 = vsel %vm2577, %v2625, 0.0
    %2648 = vadd.xlane.f32.xlu0 %v2647
    %v2649 = vpop.xlane.xlu0 %2648
    %v2650 = vrcp.pop %v2628
    %v2651 = vrcp.pop %v2631
    %v2652 = vrcp.pop %v2634
    %v2653 = vrcp.pop %v2637
    %v2654 = vrcp.pop %v2640
    %v2655 = vrcp.pop %v2643
    %v2656 = vrcp.pop %v2646
    %v2657 = vrcp.pop %v2649
    %v2658 = vmul.f32 %v2611, %v2650
    %v2659 = vmul.f32 %v2613, %v2651
    %v2660 = vmul.f32 %v2615, %v2652
    %v2661 = vmul.f32 %v2617, %v2653
    %v2662 = vmul.f32 %v2619, %v2654
    %v2663 = vmul.f32 %v2621, %v2655
    %v2664 = vmul.f32 %v2623, %v2656
    %v2665 = vmul.f32 %v2625, %v2657
    %v2674 = vrot.slane %v2659, 7
    %vm2675 = vcmask 1041409
    %v2676 = vsel %vm2675, %v2674, %v2658
    %v2677 = vrot.slane %v2660, 6
    %vm2678 = vcmask 1042434
    %v2679 = vsel %vm2678, %v2677, %v2676
    %v2680 = vrot.slane %v2661, 5
    %vm2681 = vcmask 1043459
    %v2682 = vsel %vm2681, %v2680, %v2679
    %v2683 = vrot.slane %v2662, 4
    %vm2684 = vcmask 1044484
    %v2685 = vsel %vm2684, %v2683, %v2682
    %v2686 = vrot.slane %v2663, 3
    %vm2687 = vcmask 1045509
    %v2688 = vsel %vm2687, %v2686, %v2685
    %v2689 = vrot.slane %v2664, 2
    %vm2690 = vcmask 1046534
    %v2691 = vsel %vm2690, %v2689, %v2688
    %v2692 = vrot.slane %v2665, 1
    %vm2693 = vcmask 1047559
    %v2694 = vsel %vm2693, %v2692, %v2691
    %vm2696 = vcmask 130048
    %2697 = vst.msk [vmem:[#allocation22] sm:$0xff] %vm2696, %v2694
    %v2698 = vsel %vm2696, %v2658, 0
    %2700 = vmatprep.subr.mxu0 0.0
    %2701 = vmatpush1.msra.mxu0 %v1682
    %2702 = vmatprep.subr.mxu0 0.0
    %2703 = vmatpush1.msra.mxu0 %v1683
    %2704 = vmatprep.subr.mxu0 0.0
    %2705 = vmatpush1.msra.mxu0 0.0
    %2706 = vmatprep.subr.mxu0 0.0
    %2707 = vmatpush1.msra.mxu0 0.0
    %2708 = vmatprep.subr.mxu0 0.0
    %2709 = vmatpush1.msra.mxu0 0.0
    %2710 = vmatprep.subr.mxu0 0.0
    %2711 = vmatpush1.msra.mxu0 0.0
    %2712 = vmatprep.subr.mxu0 0.0
    %2713 = vmatpush1.msra.mxu0 0.0
    %2714 = vmatprep.subr.mxu0 0.0
    %2715 = vmatpush1.msra.mxu0 0.0
    %2716 = vmatprep.subr.mxu0 0.0
    %2717 = vmatpush1.msra.mxu0 0.0
    %2718 = vmatprep.subr.mxu0 0.0
    %2719 = vmatpush1.msra.mxu0 0.0
    %2720 = vmatprep.subr.mxu0 0.0
    %2721 = vmatpush1.msra.mxu0 0.0
    %2722 = vmatprep.subr.mxu0 0.0
    %2723 = vmatpush1.msra.mxu0 0.0
    %2724 = vmatprep.subr.mxu0 0.0
    %2725 = vmatpush1.msra.mxu0 0.0
    %2726 = vmatprep.subr.mxu0 0.0
    %2727 = vmatpush1.msra.mxu0 0.0
    %2728 = vmatprep.subr.mxu0 0.0
    %2729 = vmatpush1.msra.mxu0 0.0
    %2730 = vmatprep.subr.mxu0 0.0
    %2731 = vmatpush1.msra.mxu0 0.0
    %2732 = vmatprep.subr.mxu0 0.0
    %2733 = vmatpush1.msra.mxu0 0.0
    %2734 = vmatprep.subr.mxu0 0.0
    %2735 = vmatpush1.msra.mxu0 0.0
    %2736 = vmatprep.subr.mxu0 0.0
    %2737 = vmatpush1.msra.mxu0 0.0
    %2738 = vmatprep.subr.mxu0 0.0
    %2739 = vmatpush1.msra.mxu0 0.0
    %2740 = vmatprep.subr.mxu0 0.0
    %2741 = vmatpush1.msra.mxu0 0.0
    %2742 = vmatprep.subr.mxu0 0.0
    %2743 = vmatpush1.msra.mxu0 0.0
    %2744 = vmatprep.subr.mxu0 0.0
    %2745 = vmatpush1.msra.mxu0 0.0
    %2746 = vmatprep.subr.mxu0 0.0
    %2747 = vmatpush1.msra.mxu0 0.0
    %2748 = vmatprep.subr.mxu0 0.0
    %2749 = vmatpush1.msra.mxu0 0.0
    %2750 = vmatprep.subr.mxu0 0.0
    %2751 = vmatpush1.msra.mxu0 0.0
    %2752 = vmatprep.subr.mxu0 0.0
    %2753 = vmatpush1.msra.mxu0 0.0
    %2754 = vmatprep.subr.mxu0 0.0
    %2755 = vmatpush1.msra.mxu0 0.0
    %2756 = vmatprep.subr.mxu0 0.0
    %2757 = vmatpush1.msra.mxu0 0.0
    %2758 = vmatprep.subr.mxu0 0.0
    %2759 = vmatpush1.msra.mxu0 0.0
    %2760 = vmatprep.subr.mxu0 0.0
    %2761 = vmatpush1.msra.mxu0 0.0
    %2762 = vmatprep.subr.mxu0 0.0
    %2763 = vmatpush1.msra.mxu0 0.0
    %2764 = vmatprep.mubr.f32.mxu0 0.0
    %2765 = vmatmul.mubr.f32.gmra.mrb[0].mxu0 %v2698
    %v2766 = vpop.f32.mrb[0].mxu0
    %v2767 = vadd.f32 0.0, %v2766
    %v2768 = vpop.f32.mrb[0].mxu0
    %2769 = vdwg.mxu0
    %v2770 = vsel %vm2696, %v2659, 0
    %2772 = vmatprep.subr.mxu0 0.0
    %2773 = vmatpush1.msra.mxu0 %v1684
    %2774 = vmatprep.subr.mxu0 0.0
    %2775 = vmatpush1.msra.mxu0 %v1685
    %2776 = vmatprep.subr.mxu0 0.0
    %2777 = vmatpush1.msra.mxu0 0.0
    %2778 = vmatprep.subr.mxu0 0.0
    %2779 = vmatpush1.msra.mxu0 0.0
    %2780 = vmatprep.subr.mxu0 0.0
    %2781 = vmatpush1.msra.mxu0 0.0
    %2782 = vmatprep.subr.mxu0 0.0
    %2783 = vmatpush1.msra.mxu0 0.0
    %2784 = vmatprep.subr.mxu0 0.0
    %2785 = vmatpush1.msra.mxu0 0.0
    %2786 = vmatprep.subr.mxu0 0.0
    %2787 = vmatpush1.msra.mxu0 0.0
    %2788 = vmatprep.subr.mxu0 0.0
    %2789 = vmatpush1.msra.mxu0 0.0
    %2790 = vmatprep.subr.mxu0 0.0
    %2791 = vmatpush1.msra.mxu0 0.0
    %2792 = vmatprep.subr.mxu0 0.0
    %2793 = vmatpush1.msra.mxu0 0.0
    %2794 = vmatprep.subr.mxu0 0.0
    %2795 = vmatpush1.msra.mxu0 0.0
    %2796 = vmatprep.subr.mxu0 0.0
    %2797 = vmatpush1.msra.mxu0 0.0
    %2798 = vmatprep.subr.mxu0 0.0
    %2799 = vmatpush1.msra.mxu0 0.0
    %2800 = vmatprep.subr.mxu0 0.0
    %2801 = vmatpush1.msra.mxu0 0.0
    %2802 = vmatprep.subr.mxu0 0.0
    %2803 = vmatpush1.msra.mxu0 0.0
    %2804 = vmatprep.subr.mxu0 0.0
    %2805 = vmatpush1.msra.mxu0 0.0
    %2806 = vmatprep.subr.mxu0 0.0
    %2807 = vmatpush1.msra.mxu0 0.0
    %2808 = vmatprep.subr.mxu0 0.0
    %2809 = vmatpush1.msra.mxu0 0.0
    %2810 = vmatprep.subr.mxu0 0.0
    %2811 = vmatpush1.msra.mxu0 0.0
    %2812 = vmatprep.subr.mxu0 0.0
    %2813 = vmatpush1.msra.mxu0 0.0
    %2814 = vmatprep.subr.mxu0 0.0
    %2815 = vmatpush1.msra.mxu0 0.0
    %2816 = vmatprep.subr.mxu0 0.0
    %2817 = vmatpush1.msra.mxu0 0.0
    %2818 = vmatprep.subr.mxu0 0.0
    %2819 = vmatpush1.msra.mxu0 0.0
    %2820 = vmatprep.subr.mxu0 0.0
    %2821 = vmatpush1.msra.mxu0 0.0
    %2822 = vmatprep.subr.mxu0 0.0
    %2823 = vmatpush1.msra.mxu0 0.0
    %2824 = vmatprep.subr.mxu0 0.0
    %2825 = vmatpush1.msra.mxu0 0.0
    %2826 = vmatprep.subr.mxu0 0.0
    %2827 = vmatpush1.msra.mxu0 0.0
    %2828 = vmatprep.subr.mxu0 0.0
    %2829 = vmatpush1.msra.mxu0 0.0
    %2830 = vmatprep.subr.mxu0 0.0
    %2831 = vmatpush1.msra.mxu0 0.0
    %2832 = vmatprep.subr.mxu0 0.0
    %2833 = vmatpush1.msra.mxu0 0.0
    %2834 = vmatprep.subr.mxu0 0.0
    %2835 = vmatpush1.msra.mxu0 0.0
    %2836 = vmatprep.mubr.f32.mxu0 0.0
    %2837 = vmatmul.mubr.f32.gmra.mrb[0].mxu0 %v2770
    %v2838 = vpop.f32.mrb[0].mxu0
    %v2839 = vadd.f32 0.0, %v2838
    %v2840 = vpop.f32.mrb[0].mxu0
    %2841 = vdwg.mxu0
    %v2842 = vsel %vm2696, %v2660, 0
    %2844 = vmatprep.subr.mxu0 0.0
    %2845 = vmatpush1.msra.mxu0 %v1686
    %2846 = vmatprep.subr.mxu0 0.0
    %2847 = vmatpush1.msra.mxu0 %v1687
    %2848 = vmatprep.subr.mxu0 0.0
    %2849 = vmatpush1.msra.mxu0 0.0
    %2850 = vmatprep.subr.mxu0 0.0
    %2851 = vmatpush1.msra.mxu0 0.0
    %2852 = vmatprep.subr.mxu0 0.0
    %2853 = vmatpush1.msra.mxu0 0.0
    %2854 = vmatprep.subr.mxu0 0.0
    %2855 = vmatpush1.msra.mxu0 0.0
    %2856 = vmatprep.subr.mxu0 0.0
    %2857 = vmatpush1.msra.mxu0 0.0
    %2858 = vmatprep.subr.mxu0 0.0
    %2859 = vmatpush1.msra.mxu0 0.0
    %2860 = vmatprep.subr.mxu0 0.0
    %2861 = vmatpush1.msra.mxu0 0.0
    %2862 = vmatprep.subr.mxu0 0.0
    %2863 = vmatpush1.msra.mxu0 0.0
    %2864 = vmatprep.subr.mxu0 0.0
    %2865 = vmatpush1.msra.mxu0 0.0
    %2866 = vmatprep.subr.mxu0 0.0
    %2867 = vmatpush1.msra.mxu0 0.0
    %2868 = vmatprep.subr.mxu0 0.0
    %2869 = vmatpush1.msra.mxu0 0.0
    %2870 = vmatprep.subr.mxu0 0.0
    %2871 = vmatpush1.msra.mxu0 0.0
    %2872 = vmatprep.subr.mxu0 0.0
    %2873 = vmatpush1.msra.mxu0 0.0
    %2874 = vmatprep.subr.mxu0 0.0
    %2875 = vmatpush1.msra.mxu0 0.0
    %2876 = vmatprep.subr.mxu0 0.0
    %2877 = vmatpush1.msra.mxu0 0.0
    %2878 = vmatprep.subr.mxu0 0.0
    %2879 = vmatpush1.msra.mxu0 0.0
    %2880 = vmatprep.subr.mxu0 0.0
    %2881 = vmatpush1.msra.mxu0 0.0
    %2882 = vmatprep.subr.mxu0 0.0
    %2883 = vmatpush1.msra.mxu0 0.0
    %2884 = vmatprep.subr.mxu0 0.0
    %2885 = vmatpush1.msra.mxu0 0.0
    %2886 = vmatprep.subr.mxu0 0.0
    %2887 = vmatpush1.msra.mxu0 0.0
    %2888 = vmatprep.subr.mxu0 0.0
    %2889 = vmatpush1.msra.mxu0 0.0
    %2890 = vmatprep.subr.mxu0 0.0
    %2891 = vmatpush1.msra.mxu0 0.0
    %2892 = vmatprep.subr.mxu0 0.0
    %2893 = vmatpush1.msra.mxu0 0.0
    %2894 = vmatprep.subr.mxu0 0.0
    %2895 = vmatpush1.msra.mxu0 0.0
    %2896 = vmatprep.subr.mxu0 0.0
    %2897 = vmatpush1.msra.mxu0 0.0
    %2898 = vmatprep.subr.mxu0 0.0
    %2899 = vmatpush1.msra.mxu0 0.0
    %2900 = vmatprep.subr.mxu0 0.0
    %2901 = vmatpush1.msra.mxu0 0.0
    %2902 = vmatprep.subr.mxu0 0.0
    %2903 = vmatpush1.msra.mxu0 0.0
    %2904 = vmatprep.subr.mxu0 0.0
    %2905 = vmatpush1.msra.mxu0 0.0
    %2906 = vmatprep.subr.mxu0 0.0
    %2907 = vmatpush1.msra.mxu0 0.0
    %2908 = vmatprep.mubr.f32.mxu0 0.0
    %2909 = vmatmul.mubr.f32.gmra.mrb[0].mxu0 %v2842
    %v2910 = vpop.f32.mrb[0].mxu0
    %v2911 = vadd.f32 0.0, %v2910
    %v2912 = vpop.f32.mrb[0].mxu0
    %2913 = vdwg.mxu0
    %v2914 = vsel %vm2696, %v2661, 0
    %2916 = vmatprep.subr.mxu0 0.0
    %2917 = vmatpush1.msra.mxu0 %v1688
    %2918 = vmatprep.subr.mxu0 0.0
    %2919 = vmatpush1.msra.mxu0 %v1689
    %2920 = vmatprep.subr.mxu0 0.0
    %2921 = vmatpush1.msra.mxu0 0.0
    %2922 = vmatprep.subr.mxu0 0.0
    %2923 = vmatpush1.msra.mxu0 0.0
    %2924 = vmatprep.subr.mxu0 0.0
    %2925 = vmatpush1.msra.mxu0 0.0
    %2926 = vmatprep.subr.mxu0 0.0
    %2927 = vmatpush1.msra.mxu0 0.0
    %2928 = vmatprep.subr.mxu0 0.0
    %2929 = vmatpush1.msra.mxu0 0.0
    %2930 = vmatprep.subr.mxu0 0.0
    %2931 = vmatpush1.msra.mxu0 0.0
    %2932 = vmatprep.subr.mxu0 0.0
    %2933 = vmatpush1.msra.mxu0 0.0
    %2934 = vmatprep.subr.mxu0 0.0
    %2935 = vmatpush1.msra.mxu0 0.0
    %2936 = vmatprep.subr.mxu0 0.0
    %2937 = vmatpush1.msra.mxu0 0.0
    %2938 = vmatprep.subr.mxu0 0.0
    %2939 = vmatpush1.msra.mxu0 0.0
    %2940 = vmatprep.subr.mxu0 0.0
    %2941 = vmatpush1.msra.mxu0 0.0
    %2942 = vmatprep.subr.mxu0 0.0
    %2943 = vmatpush1.msra.mxu0 0.0
    %2944 = vmatprep.subr.mxu0 0.0
    %2945 = vmatpush1.msra.mxu0 0.0
    %2946 = vmatprep.subr.mxu0 0.0
    %2947 = vmatpush1.msra.mxu0 0.0
    %2948 = vmatprep.subr.mxu0 0.0
    %2949 = vmatpush1.msra.mxu0 0.0
    %2950 = vmatprep.subr.mxu0 0.0
    %2951 = vmatpush1.msra.mxu0 0.0
    %2952 = vmatprep.subr.mxu0 0.0
    %2953 = vmatpush1.msra.mxu0 0.0
    %2954 = vmatprep.subr.mxu0 0.0
    %2955 = vmatpush1.msra.mxu0 0.0
    %2956 = vmatprep.subr.mxu0 0.0
    %2957 = vmatpush1.msra.mxu0 0.0
    %2958 = vmatprep.subr.mxu0 0.0
    %2959 = vmatpush1.msra.mxu0 0.0
    %2960 = vmatprep.subr.mxu0 0.0
    %2961 = vmatpush1.msra.mxu0 0.0
    %2962 = vmatprep.subr.mxu0 0.0
    %2963 = vmatpush1.msra.mxu0 0.0
    %2964 = vmatprep.subr.mxu0 0.0
    %2965 = vmatpush1.msra.mxu0 0.0
    %2966 = vmatprep.subr.mxu0 0.0
    %2967 = vmatpush1.msra.mxu0 0.0
    %2968 = vmatprep.subr.mxu0 0.0
    %2969 = vmatpush1.msra.mxu0 0.0
    %2970 = vmatprep.subr.mxu0 0.0
    %2971 = vmatpush1.msra.mxu0 0.0
    %2972 = vmatprep.subr.mxu0 0.0
    %2973 = vmatpush1.msra.mxu0 0.0
    %2974 = vmatprep.subr.mxu0 0.0
    %2975 = vmatpush1.msra.mxu0 0.0
    %2976 = vmatprep.subr.mxu0 0.0
    %2977 = vmatpush1.msra.mxu0 0.0
    %2978 = vmatprep.subr.mxu0 0.0
    %2979 = vmatpush1.msra.mxu0 0.0
    %2980 = vmatprep.mubr.f32.mxu0 0.0
    %2981 = vmatmul.mubr.f32.gmra.mrb[0].mxu0 %v2914
    %v2982 = vpop.f32.mrb[0].mxu0
    %v2983 = vadd.f32 0.0, %v2982
    %v2984 = vpop.f32.mrb[0].mxu0
    %2985 = vdwg.mxu0
    %v2986 = vsel %vm2696, %v2662, 0
    %2988 = vmatprep.subr.mxu0 0.0
    %2989 = vmatpush1.msra.mxu0 %v1690
    %2990 = vmatprep.subr.mxu0 0.0
    %2991 = vmatpush1.msra.mxu0 %v1691
    %2992 = vmatprep.subr.mxu0 0.0
    %2993 = vmatpush1.msra.mxu0 0.0
    %2994 = vmatprep.subr.mxu0 0.0
    %2995 = vmatpush1.msra.mxu0 0.0
    %2996 = vmatprep.subr.mxu0 0.0
    %2997 = vmatpush1.msra.mxu0 0.0
    %2998 = vmatprep.subr.mxu0 0.0
    %2999 = vmatpush1.msra.mxu0 0.0
    %3000 = vmatprep.subr.mxu0 0.0
    %3001 = vmatpush1.msra.mxu0 0.0
    %3002 = vmatprep.subr.mxu0 0.0
    %3003 = vmatpush1.msra.mxu0 0.0
    %3004 = vmatprep.subr.mxu0 0.0
    %3005 = vmatpush1.msra.mxu0 0.0
    %3006 = vmatprep.subr.mxu0 0.0
    %3007 = vmatpush1.msra.mxu0 0.0
    %3008 = vmatprep.subr.mxu0 0.0
    %3009 = vmatpush1.msra.mxu0 0.0
    %3010 = vmatprep.subr.mxu0 0.0
    %3011 = vmatpush1.msra.mxu0 0.0
    %3012 = vmatprep.subr.mxu0 0.0
    %3013 = vmatpush1.msra.mxu0 0.0
    %3014 = vmatprep.subr.mxu0 0.0
    %3015 = vmatpush1.msra.mxu0 0.0
    %3016 = vmatprep.subr.mxu0 0.0
    %3017 = vmatpush1.msra.mxu0 0.0
    %3018 = vmatprep.subr.mxu0 0.0
    %3019 = vmatpush1.msra.mxu0 0.0
    %3020 = vmatprep.subr.mxu0 0.0
    %3021 = vmatpush1.msra.mxu0 0.0
    %3022 = vmatprep.subr.mxu0 0.0
    %3023 = vmatpush1.msra.mxu0 0.0
    %3024 = vmatprep.subr.mxu0 0.0
    %3025 = vmatpush1.msra.mxu0 0.0
    %3026 = vmatprep.subr.mxu0 0.0
    %3027 = vmatpush1.msra.mxu0 0.0
    %3028 = vmatprep.subr.mxu0 0.0
    %3029 = vmatpush1.msra.mxu0 0.0
    %3030 = vmatprep.subr.mxu0 0.0
    %3031 = vmatpush1.msra.mxu0 0.0
    %3032 = vmatprep.subr.mxu0 0.0
    %3033 = vmatpush1.msra.mxu0 0.0
    %3034 = vmatprep.subr.mxu0 0.0
    %3035 = vmatpush1.msra.mxu0 0.0
    %3036 = vmatprep.subr.mxu0 0.0
    %3037 = vmatpush1.msra.mxu0 0.0
    %3038 = vmatprep.subr.mxu0 0.0
    %3039 = vmatpush1.msra.mxu0 0.0
    %3040 = vmatprep.subr.mxu0 0.0
    %3041 = vmatpush1.msra.mxu0 0.0
    %3042 = vmatprep.subr.mxu0 0.0
    %3043 = vmatpush1.msra.mxu0 0.0
    %3044 = vmatprep.subr.mxu0 0.0
    %3045 = vmatpush1.msra.mxu0 0.0
    %3046 = vmatprep.subr.mxu0 0.0
    %3047 = vmatpush1.msra.mxu0 0.0
    %3048 = vmatprep.subr.mxu0 0.0
    %3049 = vmatpush1.msra.mxu0 0.0
    %3050 = vmatprep.subr.mxu0 0.0
    %3051 = vmatpush1.msra.mxu0 0.0
    %3052 = vmatprep.mubr.f32.mxu0 0.0
    %3053 = vmatmul.mubr.f32.gmra.mrb[0].mxu0 %v2986
    %v3054 = vpop.f32.mrb[0].mxu0
    %v3055 = vadd.f32 0.0, %v3054
    %v3056 = vpop.f32.mrb[0].mxu0
    %3057 = vdwg.mxu0
    %v3058 = vsel %vm2696, %v2663, 0
    %3060 = vmatprep.subr.mxu0 0.0
    %3061 = vmatpush1.msra.mxu0 %v1692
    %3062 = vmatprep.subr.mxu0 0.0
    %3063 = vmatpush1.msra.mxu0 %v1693
    %3064 = vmatprep.subr.mxu0 0.0
    %3065 = vmatpush1.msra.mxu0 0.0
    %3066 = vmatprep.subr.mxu0 0.0
    %3067 = vmatpush1.msra.mxu0 0.0
    %3068 = vmatprep.subr.mxu0 0.0
    %3069 = vmatpush1.msra.mxu0 0.0
    %3070 = vmatprep.subr.mxu0 0.0
    %3071 = vmatpush1.msra.mxu0 0.0
    %3072 = vmatprep.subr.mxu0 0.0
    %3073 = vmatpush1.msra.mxu0 0.0
    %3074 = vmatprep.subr.mxu0 0.0
    %3075 = vmatpush1.msra.mxu0 0.0
    %3076 = vmatprep.subr.mxu0 0.0
    %3077 = vmatpush1.msra.mxu0 0.0
    %3078 = vmatprep.subr.mxu0 0.0
    %3079 = vmatpush1.msra.mxu0 0.0
    %3080 = vmatprep.subr.mxu0 0.0
    %3081 = vmatpush1.msra.mxu0 0.0
    %3082 = vmatprep.subr.mxu0 0.0
    %3083 = vmatpush1.msra.mxu0 0.0
    %3084 = vmatprep.subr.mxu0 0.0
    %3085 = vmatpush1.msra.mxu0 0.0
    %3086 = vmatprep.subr.mxu0 0.0
    %3087 = vmatpush1.msra.mxu0 0.0
    %3088 = vmatprep.subr.mxu0 0.0
    %3089 = vmatpush1.msra.mxu0 0.0
    %3090 = vmatprep.subr.mxu0 0.0
    %3091 = vmatpush1.msra.mxu0 0.0
    %3092 = vmatprep.subr.mxu0 0.0
    %3093 = vmatpush1.msra.mxu0 0.0
    %3094 = vmatprep.subr.mxu0 0.0
    %3095 = vmatpush1.msra.mxu0 0.0
    %3096 = vmatprep.subr.mxu0 0.0
    %3097 = vmatpush1.msra.mxu0 0.0
    %3098 = vmatprep.subr.mxu0 0.0
    %3099 = vmatpush1.msra.mxu0 0.0
    %3100 = vmatprep.subr.mxu0 0.0
    %3101 = vmatpush1.msra.mxu0 0.0
    %3102 = vmatprep.subr.mxu0 0.0
    %3103 = vmatpush1.msra.mxu0 0.0
    %3104 = vmatprep.subr.mxu0 0.0
    %3105 = vmatpush1.msra.mxu0 0.0
    %3106 = vmatprep.subr.mxu0 0.0
    %3107 = vmatpush1.msra.mxu0 0.0
    %3108 = vmatprep.subr.mxu0 0.0
    %3109 = vmatpush1.msra.mxu0 0.0
    %3110 = vmatprep.subr.mxu0 0.0
    %3111 = vmatpush1.msra.mxu0 0.0
    %3112 = vmatprep.subr.mxu0 0.0
    %3113 = vmatpush1.msra.mxu0 0.0
    %3114 = vmatprep.subr.mxu0 0.0
    %3115 = vmatpush1.msra.mxu0 0.0
    %3116 = vmatprep.subr.mxu0 0.0
    %3117 = vmatpush1.msra.mxu0 0.0
    %3118 = vmatprep.subr.mxu0 0.0
    %3119 = vmatpush1.msra.mxu0 0.0
    %3120 = vmatprep.subr.mxu0 0.0
    %3121 = vmatpush1.msra.mxu0 0.0
    %3122 = vmatprep.subr.mxu0 0.0
    %3123 = vmatpush1.msra.mxu0 0.0
    %3124 = vmatprep.mubr.f32.mxu0 0.0
    %3125 = vmatmul.mubr.f32.gmra.mrb[0].mxu0 %v3058
    %v3126 = vpop.f32.mrb[0].mxu0
    %v3127 = vadd.f32 0.0, %v3126
    %v3128 = vpop.f32.mrb[0].mxu0
    %3129 = vdwg.mxu0
    %v3130 = vsel %vm2696, %v2664, 0
    %3132 = vmatprep.subr.mxu0 0.0
    %3133 = vmatpush1.msra.mxu0 %v1694
    %3134 = vmatprep.subr.mxu0 0.0
    %3135 = vmatpush1.msra.mxu0 %v1695
    %3136 = vmatprep.subr.mxu0 0.0
    %3137 = vmatpush1.msra.mxu0 0.0
    %3138 = vmatprep.subr.mxu0 0.0
    %3139 = vmatpush1.msra.mxu0 0.0
    %3140 = vmatprep.subr.mxu0 0.0
    %3141 = vmatpush1.msra.mxu0 0.0
    %3142 = vmatprep.subr.mxu0 0.0
    %3143 = vmatpush1.msra.mxu0 0.0
    %3144 = vmatprep.subr.mxu0 0.0
    %3145 = vmatpush1.msra.mxu0 0.0
    %3146 = vmatprep.subr.mxu0 0.0
    %3147 = vmatpush1.msra.mxu0 0.0
    %3148 = vmatprep.subr.mxu0 0.0
    %3149 = vmatpush1.msra.mxu0 0.0
    %3150 = vmatprep.subr.mxu0 0.0
    %3151 = vmatpush1.msra.mxu0 0.0
    %3152 = vmatprep.subr.mxu0 0.0
    %3153 = vmatpush1.msra.mxu0 0.0
    %3154 = vmatprep.subr.mxu0 0.0
    %3155 = vmatpush1.msra.mxu0 0.0
    %3156 = vmatprep.subr.mxu0 0.0
    %3157 = vmatpush1.msra.mxu0 0.0
    %3158 = vmatprep.subr.mxu0 0.0
    %3159 = vmatpush1.msra.mxu0 0.0
    %3160 = vmatprep.subr.mxu0 0.0
    %3161 = vmatpush1.msra.mxu0 0.0
    %3162 = vmatprep.subr.mxu0 0.0
    %3163 = vmatpush1.msra.mxu0 0.0
    %3164 = vmatprep.subr.mxu0 0.0
    %3165 = vmatpush1.msra.mxu0 0.0
    %3166 = vmatprep.subr.mxu0 0.0
    %3167 = vmatpush1.msra.mxu0 0.0
    %3168 = vmatprep.subr.mxu0 0.0
    %3169 = vmatpush1.msra.mxu0 0.0
    %3170 = vmatprep.subr.mxu0 0.0
    %3171 = vmatpush1.msra.mxu0 0.0
    %3172 = vmatprep.subr.mxu0 0.0
    %3173 = vmatpush1.msra.mxu0 0.0
    %3174 = vmatprep.subr.mxu0 0.0
    %3175 = vmatpush1.msra.mxu0 0.0
    %3176 = vmatprep.subr.mxu0 0.0
    %3177 = vmatpush1.msra.mxu0 0.0
    %3178 = vmatprep.subr.mxu0 0.0
    %3179 = vmatpush1.msra.mxu0 0.0
    %3180 = vmatprep.subr.mxu0 0.0
    %3181 = vmatpush1.msra.mxu0 0.0
    %3182 = vmatprep.subr.mxu0 0.0
    %3183 = vmatpush1.msra.mxu0 0.0
    %3184 = vmatprep.subr.mxu0 0.0
    %3185 = vmatpush1.msra.mxu0 0.0
    %3186 = vmatprep.subr.mxu0 0.0
    %3187 = vmatpush1.msra.mxu0 0.0
    %3188 = vmatprep.subr.mxu0 0.0
    %3189 = vmatpush1.msra.mxu0 0.0
    %3190 = vmatprep.subr.mxu0 0.0
    %3191 = vmatpush1.msra.mxu0 0.0
    %3192 = vmatprep.subr.mxu0 0.0
    %3193 = vmatpush1.msra.mxu0 0.0
    %3194 = vmatprep.subr.mxu0 0.0
    %3195 = vmatpush1.msra.mxu0 0.0
    %3196 = vmatprep.mubr.f32.mxu0 0.0
    %3197 = vmatmul.mubr.f32.gmra.mrb[0].mxu0 %v3130
    %v3198 = vpop.f32.mrb[0].mxu0
    %v3199 = vadd.f32 0.0, %v3198
    %v3200 = vpop.f32.mrb[0].mxu0
    %3201 = vdwg.mxu0
    %v3202 = vsel %vm2696, %v2665, 0
    %3204 = vmatprep.subr.mxu0 0.0
    %3205 = vmatpush1.msra.mxu0 %v1696
    %3206 = vmatprep.subr.mxu0 0.0
    %3207 = vmatpush1.msra.mxu0 %v1697
    %3208 = vmatprep.subr.mxu0 0.0
    %3209 = vmatpush1.msra.mxu0 0.0
    %3210 = vmatprep.subr.mxu0 0.0
    %3211 = vmatpush1.msra.mxu0 0.0
    %3212 = vmatprep.subr.mxu0 0.0
    %3213 = vmatpush1.msra.mxu0 0.0
    %3214 = vmatprep.subr.mxu0 0.0
    %3215 = vmatpush1.msra.mxu0 0.0
    %3216 = vmatprep.subr.mxu0 0.0
    %3217 = vmatpush1.msra.mxu0 0.0
    %3218 = vmatprep.subr.mxu0 0.0
    %3219 = vmatpush1.msra.mxu0 0.0
    %3220 = vmatprep.subr.mxu0 0.0
    %3221 = vmatpush1.msra.mxu0 0.0
    %3222 = vmatprep.subr.mxu0 0.0
    %3223 = vmatpush1.msra.mxu0 0.0
    %3224 = vmatprep.subr.mxu0 0.0
    %3225 = vmatpush1.msra.mxu0 0.0
    %3226 = vmatprep.subr.mxu0 0.0
    %3227 = vmatpush1.msra.mxu0 0.0
    %3228 = vmatprep.subr.mxu0 0.0
    %3229 = vmatpush1.msra.mxu0 0.0
    %3230 = vmatprep.subr.mxu0 0.0
    %3231 = vmatpush1.msra.mxu0 0.0
    %3232 = vmatprep.subr.mxu0 0.0
    %3233 = vmatpush1.msra.mxu0 0.0
    %3234 = vmatprep.subr.mxu0 0.0
    %3235 = vmatpush1.msra.mxu0 0.0
    %3236 = vmatprep.subr.mxu0 0.0
    %3237 = vmatpush1.msra.mxu0 0.0
    %3238 = vmatprep.subr.mxu0 0.0
    %3239 = vmatpush1.msra.mxu0 0.0
    %3240 = vmatprep.subr.mxu0 0.0
    %3241 = vmatpush1.msra.mxu0 0.0
    %3242 = vmatprep.subr.mxu0 0.0
    %3243 = vmatpush1.msra.mxu0 0.0
    %3244 = vmatprep.subr.mxu0 0.0
    %3245 = vmatpush1.msra.mxu0 0.0
    %3246 = vmatprep.subr.mxu0 0.0
    %3247 = vmatpush1.msra.mxu0 0.0
    %3248 = vmatprep.subr.mxu0 0.0
    %3249 = vmatpush1.msra.mxu0 0.0
    %3250 = vmatprep.subr.mxu0 0.0
    %3251 = vmatpush1.msra.mxu0 0.0
    %3252 = vmatprep.subr.mxu0 0.0
    %3253 = vmatpush1.msra.mxu0 0.0
    %3254 = vmatprep.subr.mxu0 0.0
    %3255 = vmatpush1.msra.mxu0 0.0
    %3256 = vmatprep.subr.mxu0 0.0
    %3257 = vmatpush1.msra.mxu0 0.0
    %3258 = vmatprep.subr.mxu0 0.0
    %3259 = vmatpush1.msra.mxu0 0.0
    %3260 = vmatprep.subr.mxu0 0.0
    %3261 = vmatpush1.msra.mxu0 0.0
    %3262 = vmatprep.subr.mxu0 0.0
    %3263 = vmatpush1.msra.mxu0 0.0
    %3264 = vmatprep.subr.mxu0 0.0
    %3265 = vmatpush1.msra.mxu0 0.0
    %3266 = vmatprep.subr.mxu0 0.0
    %3267 = vmatpush1.msra.mxu0 0.0
    %3268 = vmatprep.mubr.f32.mxu0 0.0
    %3269 = vmatmul.mubr.f32.gmra.mrb[0].mxu0 %v3202
    %v3270 = vpop.f32.mrb[0].mxu0
    %v3271 = vadd.f32 0.0, %v3270
    %v3272 = vpop.f32.mrb[0].mxu0
    %3273 = vdwg.mxu0
    %v3274 = vld [vmem:[#allocation8] sm:$0xff]
    %v3275 = vld [vmem:[#allocation8 + $0x8] sm:$0xff]
    %v3276 = vld [vmem:[#allocation8 + $0x10] sm:$0xff]
    %v3277 = vld [vmem:[#allocation8 + $0x18] sm:$0xff]
    %v3278 = vld [vmem:[#allocation8 + $0x20] sm:$0xff]
    %v3279 = vld [vmem:[#allocation8 + $0x28] sm:$0xff]
    %v3280 = vld [vmem:[#allocation8 + $0x30] sm:$0xff]
    %v3281 = vld [vmem:[#allocation8 + $0x38] sm:$0xff]
    %v3282 = vld [vmem:[#allocation8 + $0x40] sm:$0xff]
    %v3283 = vld [vmem:[#allocation8 + $0x48] sm:$0xff]
    %v3284 = vld [vmem:[#allocation8 + $0x50] sm:$0xff]
    %v3285 = vld [vmem:[#allocation8 + $0x58] sm:$0xff]
    %v3286 = vld [vmem:[#allocation8 + $0x60] sm:$0xff]
    %v3287 = vld [vmem:[#allocation8 + $0x68] sm:$0xff]
    %v3288 = vld [vmem:[#allocation8 + $0x70] sm:$0xff]
    %v3289 = vld [vmem:[#allocation8 + $0x78] sm:$0xff]
    %v3290 = vld [vmem:[#allocation10] sm:$0xff]
    %v3291 = vld [vmem:[#allocation10 + $0x8] sm:$0xff]
    %v3292 = vld [vmem:[#allocation10 + $0x10] sm:$0xff]
    %v3293 = vld [vmem:[#allocation10 + $0x18] sm:$0xff]
    %v3294 = vld [vmem:[#allocation10 + $0x20] sm:$0xff]
    %v3295 = vld [vmem:[#allocation10 + $0x28] sm:$0xff]
    %v3296 = vld [vmem:[#allocation10 + $0x30] sm:$0xff]
    %v3297 = vld [vmem:[#allocation10 + $0x38] sm:$0xff]
    %v3298 = vld [vmem:[#allocation10 + $0x40] sm:$0xff]
    %v3299 = vld [vmem:[#allocation10 + $0x48] sm:$0xff]
    %v3300 = vld [vmem:[#allocation10 + $0x50] sm:$0xff]
    %v3301 = vld [vmem:[#allocation10 + $0x58] sm:$0xff]
    %v3302 = vld [vmem:[#allocation10 + $0x60] sm:$0xff]
    %v3303 = vld [vmem:[#allocation10 + $0x68] sm:$0xff]
    %v3304 = vld [vmem:[#allocation10 + $0x70] sm:$0xff]
    %v3305 = vld [vmem:[#allocation10 + $0x78] sm:$0xff]
    %3306 = vmatprep.subr.mxu0 0.0
    %3307 = vmatpush1.msra.mxu0 %v3290
    %3308 = vmatprep.subr.mxu0 0.0
    %3309 = vmatpush1.msra.mxu0 %v3291
    %3310 = vmatprep.subr.mxu0 0.0
    %3311 = vmatpush1.msra.mxu0 %v3292
    %3312 = vmatprep.subr.mxu0 0.0
    %3313 = vmatpush1.msra.mxu0 %v3293
    %3314 = vmatprep.subr.mxu0 0.0
    %3315 = vmatpush1.msra.mxu0 %v3294
    %3316 = vmatprep.subr.mxu0 0.0
    %3317 = vmatpush1.msra.mxu0 %v3295
    %3318 = vmatprep.subr.mxu0 0.0
    %3319 = vmatpush1.msra.mxu0 %v3296
    %3320 = vmatprep.subr.mxu0 0.0
    %3321 = vmatpush1.msra.mxu0 %v3297
    %3322 = vmatprep.subr.mxu0 0.0
    %3323 = vmatpush1.msra.mxu0 %v3298
    %3324 = vmatprep.subr.mxu0 0.0
    %3325 = vmatpush1.msra.mxu0 %v3299
    %3326 = vmatprep.subr.mxu0 0.0
    %3327 = vmatpush1.msra.mxu0 %v3300
    %3328 = vmatprep.subr.mxu0 0.0
    %3329 = vmatpush1.msra.mxu0 %v3301
    %3330 = vmatprep.subr.mxu0 0.0
    %3331 = vmatpush1.msra.mxu0 %v3302
    %3332 = vmatprep.subr.mxu0 0.0
    %3333 = vmatpush1.msra.mxu0 %v3303
    %3334 = vmatprep.subr.mxu0 0.0
    %3335 = vmatpush1.msra.mxu0 %v3304
    %3336 = vmatprep.subr.mxu0 0.0
    %3337 = vmatpush1.msra.mxu0 %v3305
    %3338 = vmatprep.subr.mxu0 0.0
    %3339 = vmatpush1.msra.mxu0 0.0
    %3340 = vmatprep.subr.mxu0 0.0
    %3341 = vmatpush1.msra.mxu0 0.0
    %3342 = vmatprep.subr.mxu0 0.0
    %3343 = vmatpush1.msra.mxu0 0.0
    %3344 = vmatprep.subr.mxu0 0.0
    %3345 = vmatpush1.msra.mxu0 0.0
    %3346 = vmatprep.subr.mxu0 0.0
    %3347 = vmatpush1.msra.mxu0 0.0
    %3348 = vmatprep.subr.mxu0 0.0
    %3349 = vmatpush1.msra.mxu0 0.0
    %3350 = vmatprep.subr.mxu0 0.0
    %3351 = vmatpush1.msra.mxu0 0.0
    %3352 = vmatprep.subr.mxu0 0.0
    %3353 = vmatpush1.msra.mxu0 0.0
    %3354 = vmatprep.subr.mxu0 0.0
    %3355 = vmatpush1.msra.mxu0 0.0
    %3356 = vmatprep.subr.mxu0 0.0
    %3357 = vmatpush1.msra.mxu0 0.0
    %3358 = vmatprep.subr.mxu0 0.0
    %3359 = vmatpush1.msra.mxu0 0.0
    %3360 = vmatprep.subr.mxu0 0.0
    %3361 = vmatpush1.msra.mxu0 0.0
    %3362 = vmatprep.subr.mxu0 0.0
    %3363 = vmatpush1.msra.mxu0 0.0
    %3364 = vmatprep.subr.mxu0 0.0
    %3365 = vmatpush1.msra.mxu0 0.0
    %3366 = vmatprep.subr.mxu0 0.0
    %3367 = vmatpush1.msra.mxu0 0.0
    %3368 = vmatprep.subr.mxu0 0.0
    %3369 = vmatpush1.msra.mxu0 0.0
    %3370 = vmatprep.mubr.f32.mxu0 0.0
    %3371 = vmatmul.mubr.f32.gmra.mrb[0].mxu0 %v1677
    %v3372 = vpop.f32.mrb[0].mxu0
    %v3373 = vadd.f32 0.0, %v3372
    %v3374 = vpop.f32.mrb[0].mxu0
    %3375 = vdwg.mxu0
    %v3384 = vrot.slane %v2839, 7
    %v3385 = vsel %vm2675, %v3384, %v2767
    %v3386 = vrot.slane %v2911, 6
    %v3387 = vsel %vm2678, %v3386, %v3385
    %v3388 = vrot.slane %v2983, 5
    %v3389 = vsel %vm2681, %v3388, %v3387
    %v3390 = vrot.slane %v3055, 4
    %v3391 = vsel %vm2684, %v3390, %v3389
    %v3392 = vrot.slane %v3127, 3
    %v3393 = vsel %vm2687, %v3392, %v3391
    %v3394 = vrot.slane %v3199, 2
    %v3395 = vsel %vm2690, %v3394, %v3393
    %v3396 = vrot.slane %v3271, 1
    %v3397 = vsel %vm2693, %v3396, %v3395
    %3399 = vmatprep.subr.mxu0 0.0
    %3400 = vmatpush1.msra.mxu0 %v3274
    %3401 = vmatprep.subr.mxu0 0.0
    %3402 = vmatpush1.msra.mxu0 %v3275
    %3403 = vmatprep.subr.mxu0 0.0
    %3404 = vmatpush1.msra.mxu0 %v3276
    %3405 = vmatprep.subr.mxu0 0.0
    %3406 = vmatpush1.msra.mxu0 %v3277
    %3407 = vmatprep.subr.mxu0 0.0
    %3408 = vmatpush1.msra.mxu0 %v3278
    %3409 = vmatprep.subr.mxu0 0.0
    %3410 = vmatpush1.msra.mxu0 %v3279
    %3411 = vmatprep.subr.mxu0 0.0
    %3412 = vmatpush1.msra.mxu0 %v3280
    %3413 = vmatprep.subr.mxu0 0.0
    %3414 = vmatpush1.msra.mxu0 %v3281
    %3415 = vmatprep.subr.mxu0 0.0
    %3416 = vmatpush1.msra.mxu0 %v3282
    %3417 = vmatprep.subr.mxu0 0.0
    %3418 = vmatpush1.msra.mxu0 %v3283
    %3419 = vmatprep.subr.mxu0 0.0
    %3420 = vmatpush1.msra.mxu0 %v3284
    %3421 = vmatprep.subr.mxu0 0.0
    %3422 = vmatpush1.msra.mxu0 %v3285
    %3423 = vmatprep.subr.mxu0 0.0
    %3424 = vmatpush1.msra.mxu0 %v3286
    %3425 = vmatprep.subr.mxu0 0.0
    %3426 = vmatpush1.msra.mxu0 %v3287
    %3427 = vmatprep.subr.mxu0 0.0
    %3428 = vmatpush1.msra.mxu0 %v3288
    %3429 = vmatprep.subr.mxu0 0.0
    %3430 = vmatpush1.msra.mxu0 %v3289
    %3431 = vmatprep.subr.mxu0 0.0
    %3432 = vmatpush1.msra.mxu0 0.0
    %3433 = vmatprep.subr.mxu0 0.0
    %3434 = vmatpush1.msra.mxu0 0.0
    %3435 = vmatprep.subr.mxu0 0.0
    %3436 = vmatpush1.msra.mxu0 0.0
    %3437 = vmatprep.subr.mxu0 0.0
    %3438 = vmatpush1.msra.mxu0 0.0
    %3439 = vmatprep.subr.mxu0 0.0
    %3440 = vmatpush1.msra.mxu0 0.0
    %3441 = vmatprep.subr.mxu0 0.0
    %3442 = vmatpush1.msra.mxu0 0.0
    %3443 = vmatprep.subr.mxu0 0.0
    %3444 = vmatpush1.msra.mxu0 0.0
    %3445 = vmatprep.subr.mxu0 0.0
    %3446 = vmatpush1.msra.mxu0 0.0
    %3447 = vmatprep.subr.mxu0 0.0
    %3448 = vmatpush1.msra.mxu0 0.0
    %3449 = vmatprep.subr.mxu0 0.0
    %3450 = vmatpush1.msra.mxu0 0.0
    %3451 = vmatprep.subr.mxu0 0.0
    %3452 = vmatpush1.msra.mxu0 0.0
    %3453 = vmatprep.subr.mxu0 0.0
    %3454 = vmatpush1.msra.mxu0 0.0
    %3455 = vmatprep.subr.mxu0 0.0
    %3456 = vmatpush1.msra.mxu0 0.0
    %3457 = vmatprep.subr.mxu0 0.0
    %3458 = vmatpush1.msra.mxu0 0.0
    %3459 = vmatprep.subr.mxu0 0.0
    %3460 = vmatpush1.msra.mxu0 0.0
    %3461 = vmatprep.subr.mxu0 0.0
    %3462 = vmatpush1.msra.mxu0 0.0
    %3463 = vmatprep.mubr.f32.mxu0 0.0
    %3464 = vmatmul.mubr.f32.gmra.mrb[0].mxu0 %v3397
    %v3465 = vpop.f32.mrb[0].mxu0
    %v3466 = vadd.f32 %v3373, %v3465
    %v3467 = vpop.f32.mrb[0].mxu0
    %3468 = vdwg.mxu0
    %v3469 = vld [vmem:[#allocation11] sm:$0x1]
    %v3471 = vlaneseq
    %v3472 = vshrl.u32 %v3471, 7
    %v3473 = vsub.s32 0, %v3472
    %v3474 = vrot.slane %v3469, %v3473
    %v3476 = vadd.f32 %v3466, %v3474
    %v3477 = vtanh.pop %v3476
    %3478 = vst [vmem:[%s16] sm:$0xff] %v3477
    // Predicated region
    $region106: #{decoder_forward.2} parent=1 // pred_check
      _
    $region107: #{decoder_forward.2} parent=1 // pred_check_branch
      %3480 = sbr.rel (0) target = $region109
    $region108: #{decoder_forward.2} parent=1 // pred_region
      _
    $region109: #{decoder_forward.2} parent=1 // pred_fallthru
      _
    // Predicated region
    $region110: #{decoder_forward.2} parent=1 // pred_check
      _
    $region111: #{decoder_forward.2} parent=1 // pred_check_branch
      %3482 = sbr.rel (0) target = $region113
    $region112: #{decoder_forward.2} parent=1 // pred_region
      %s3484 = ssub.s32 256, 256
      %3485 = vsyncadd [#allocation4], %s3484
      %s3486 = sshll.u32 [#allocation19], 4
      %s3487 = int_to_ptr.vmem [resolvable:$true] %s3486
      %3492 = dma.vmem_to_hbm [thread:$0]  %s3487, 256, %s17, [#allocation4], 128, 128, 8
    $region113: #{decoder_forward.2} parent=1 // pred_fallthru
      _
    // Predicated region
    $region114: #{decoder_forward.2} parent=1 // pred_check
      _
    $region115: #{decoder_forward.2} parent=1 // pred_check_branch
      %3494 = sbr.rel (0) target = $region117
    $region116: #{decoder_forward.2} parent=1 // pred_region
      %s3496 = ssub.s32 256, 256
      %3497 = vsyncadd [#allocation21], %s3496
      %s3498 = sshll.u32 [#allocation20], 4
      %s3499 = int_to_ptr.vmem [resolvable:$true] %s3498
      %3504 = dma.vmem_to_hbm [thread:$0]  %s3499, 256, %s18, [#allocation21], 128, 128, 8
    $region117: #{decoder_forward.2} parent=1 // pred_fallthru
      _
    // Predicated region
    $region118: #{decoder_forward.2} parent=1 // pred_check
      _
    $region119: #{decoder_forward.2} parent=1 // pred_check_branch
      %3506 = sbr.rel (0) target = $region121
    $region120: #{decoder_forward.2} parent=1 // pred_region
      %s3508 = ssub.s32 128, 128
      %3509 = vsyncadd [#allocation21], %s3508
      %s3511 = sshll.u32 [#allocation22], 4
      %s3512 = int_to_ptr.vmem [resolvable:$true] %s3511
      %3514 = dma.vmem_to_hbm [thread:$0]  %s3512, 128, %s19, [#allocation21]
    $region121: #{decoder_forward.2} parent=1 // pred_fallthru
      _
    // Predicated region
    $region122: #{decoder_forward.2} parent=1 // pred_check
      _
    $region123: #{decoder_forward.2} parent=1 // pred_check_branch
      %3516 = sbr.rel (0) target = $region125
    $region124: #{decoder_forward.2} parent=1 // pred_region
      _
    $region125: #{decoder_forward.2} parent=1 // pred_fallthru
      _
    // Predicated region
    $region126: #{decoder_forward.2} parent=1 // pred_check
      _
    $region127: #{decoder_forward.2} parent=1 // pred_check_branch
      %3518 = sbr.rel (0) target = $region129
    $region128: #{decoder_forward.2} parent=1 // pred_region
      %3519 = dma.done [#allocation4], 256
    $region129: #{decoder_forward.2} parent=1 // pred_fallthru
      _
    // Predicated region
    $region130: #{decoder_forward.2} parent=1 // pred_check
      _
    $region131: #{decoder_forward.2} parent=1 // pred_check_branch
      %3521 = sbr.rel (0) target = $region133
    $region132: #{decoder_forward.2} parent=1 // pred_region
      %3522 = dma.done [#allocation21], 256
    $region133: #{decoder_forward.2} parent=1 // pred_fallthru
      _
    // Predicated region
    $region134: #{decoder_forward.2} parent=1 // pred_check
      _
    $region135: #{decoder_forward.2} parent=1 // pred_check_branch
      %3524 = sbr.rel (0) target = $region137
    $region136: #{decoder_forward.2} parent=1 // pred_region
      %3525 = dma.done [#allocation21], 128
    $region137: #{decoder_forward.2} parent=1 // pred_fallthru
      _
    %3526 = vsyncpa [#allocation3], 1
    %3527 = vsyncpa [#allocation6], 1
    %3528 = vsyncpa [#allocation9], 1
    %3529 = vsyncpa [#allocation12], 1
    %3530 = vsyncpa [#allocation15], 1
    %3531 = vsyncpa [#allocation18], 1
    %3532 = vsyncpa [#allocation4], 1
    %3533 = vsyncpa [#allocation21], 1

</llo_original>
